<compile_context>
chip_gen: v6e
topology: v6e:2x2x1
jax: 0.10.0
libtpu: 0.0.40
codegen_flags: <defaults>
</compile_context>

<pallas_src>
from functools import partial

import numpy as np
import jax
import jax.numpy as jnp
from jax import lax
from jax.experimental import pallas as pl
from jax.experimental.pallas import tpu as pltpu


# ---------------------------------------------------------------------------
# Fused kernel: Bt images per grid step
# ---------------------------------------------------------------------------
def _cnn_kernel(bt, x_ref, wb1_ref, b1_ref, se1_ref, so1_ref,
                wb2_ref, b2_ref, se2_ref, so2_ref, wfc_ref, bfc_ref, o_ref):
    f32 = jnp.float32
    mc1 = bt * 28 - 2            # conv1 matmul M (rows b*28+ho, ho<26 valid)
    mc2 = bt * 13 - 2            # conv2 matmul M (rows b*13+ho2, ho2<=10 valid)

    x = x_ref[...]                                           # (bt*28, 28)

    # --- conv1 (1->16, 3x3 valid), banded over kernel row ih, + bias + ReLU --
    z1 = jnp.dot(x[0:mc1, :], wb1_ref[0], preferred_element_type=f32)
    z1 = z1 + jnp.dot(x[1:mc1 + 1, :], wb1_ref[1], preferred_element_type=f32)
    z1 = z1 + jnp.dot(x[2:mc1 + 2, :], wb1_ref[2], preferred_element_type=f32)
    y1 = jnp.maximum(z1 + b1_ref[...], 0.0)                  # (mc1, 464)

    # --- maxpool1 2x2: W-pool = max of even/odd lane halves; H-pool via 0/1
    #     selection matmuls that also compact rows to (bt*13, .) -------------
    p1w = jnp.maximum(y1[:, 0:208], y1[:, 256:464])          # (mc1, 208)
    p1 = jnp.maximum(
        jnp.dot(se1_ref[...], p1w, preferred_element_type=f32),
        jnp.dot(so1_ref[...], p1w, preferred_element_type=f32))  # (bt*13, 208)

    # --- conv2 (16->32, 3x3 valid), banded over ih, + bias + ReLU ------------
    z2 = jnp.dot(p1[0:mc2, :], wb2_ref[0], preferred_element_type=f32)
    z2 = z2 + jnp.dot(p1[1:mc2 + 1, :], wb2_ref[1], preferred_element_type=f32)
    z2 = z2 + jnp.dot(p1[2:mc2 + 2, :], wb2_ref[2], preferred_element_type=f32)
    y2 = jnp.maximum(z2 + b2_ref[...], 0.0)                  # (mc2, 416)

    # --- maxpool2 2x2 (floor: wo2=10 / ho2=10 dropped) -----------------------
    p2w = jnp.maximum(y2[:, 0:160], y2[:, 256:416])          # (mc2, 160)
    p2 = jnp.maximum(
        jnp.dot(se2_ref[...], p2w, preferred_element_type=f32),
        jnp.dot(so2_ref[...], p2w, preferred_element_type=f32))  # (5*bt, 160)
    # p2 rows are hp-major: row = hp*bt + b, lanes = wp*32 + c

    # --- flatten (torch NCHW order folded into wfc blocks) + fc1 -------------
    acc = jnp.dot(p2[0:bt, :], wfc_ref[0], preferred_element_type=f32)
    for hp in range(1, 5):
        acc = acc + jnp.dot(p2[hp * bt:(hp + 1) * bt, :], wfc_ref[hp],
                            preferred_element_type=f32)
    o_ref[...] = acc + bfc_ref[...]                          # (bt, 10)


# ---------------------------------------------------------------------------
# Host-side parameter re-layout (banded conv weights, pool selection matrices)
# ---------------------------------------------------------------------------
def _band_weights_conv1(w1):
    # w1: (16, 1, 3, 3) -> (3, 28, 464); lane(wo,co) = wo even: (wo//2)*16+co
    #                                               wo odd : 256+(wo//2)*16+co
    wo, iw, co = np.meshgrid(np.arange(26), np.arange(3), np.arange(16),
                             indexing="ij")
    rows = (wo + iw).ravel()
    lanes = (np.where(wo % 2 == 0, 0, 256) + (wo // 2) * 16 + co).ravel()
    mats = []
    for ih in range(3):
        vals = w1[co.ravel(), 0, ih, iw.ravel()].astype(jnp.float32)
        mats.append(jnp.zeros((28, 464), jnp.float32).at[rows, lanes].set(vals))
    return jnp.stack(mats)


def _band_weights_conv2(w2):
    # w2: (32, 16, 3, 3) -> (3, 208, 416); row = wp_in*16+ci,
    # lane(wo2,co) = wo2 even: (wo2//2)*32+co ; wo2 odd: 256+(wo2//2)*32+co
    wo2, iw, ci, co = np.meshgrid(np.arange(10), np.arange(3), np.arange(16),
                                  np.arange(32), indexing="ij")
    rows = ((wo2 + iw) * 16 + ci).ravel()
    lanes = (np.where(wo2 % 2 == 0, 0, 256) + (wo2 // 2) * 32 + co).ravel()
    mats = []
    for ih in range(3):
        vals = w2[co.ravel(), ci.ravel(), ih, iw.ravel()].astype(jnp.float32)
        mats.append(jnp.zeros((208, 416), jnp.float32).at[rows, lanes].set(vals))
    return jnp.stack(mats)


def _pool_selection(bt):
    # H-direction pool selection / row-compaction matrices (constants of bt).
    mc1 = bt * 28 - 2
    se1 = np.zeros((bt * 13, mc1), np.float32)
    so1 = np.zeros((bt * 13, mc1), np.float32)
    for b in range(bt):
        for hp in range(13):
            se1[b * 13 + hp, b * 28 + 2 * hp] = 1.0
            so1[b * 13 + hp, b * 28 + 2 * hp + 1] = 1.0
    mc2 = bt * 13 - 2
    se2 = np.zeros((5 * bt, mc2), np.float32)     # hp-major row order
    so2 = np.zeros((5 * bt, mc2), np.float32)
    for b in range(bt):
        for hp in range(5):
            se2[hp * bt + b, b * 13 + 2 * hp] = 1.0
            so2[hp * bt + b, b * 13 + 2 * hp + 1] = 1.0
    return se1, so1, se2, so2


# ---------------------------------------------------------------------------
# Wrapper: single pallas_call over batch tiles
# ---------------------------------------------------------------------------
@partial(jax.jit, static_argnames=("block_batch",))
def cnn_forward(x_nchw, w1, b1, w2, b2, wfc, bfc, block_batch=8):
    """Equivalent to CNN.forward on a (B, 1, 28, 28) float32 input."""
    B = x_nchw.shape[0]
    assert x_nchw.shape[1:] == (1, 28, 28), x_nchw.shape
    bt = block_batch                      # multiple of 8
    bpad = ((B + bt - 1) // bt) * bt

    x = x_nchw.reshape(B, 28, 28).astype(jnp.float32)
    if bpad != B:
        x = jnp.concatenate([x, jnp.zeros((bpad - B, 28, 28), jnp.float32)], 0)
    x2d = x.reshape(bpad * 28, 28)        # contiguous: free reshape, rows = b*28+h

    wb1 = _band_weights_conv1(w1)                                     # (3, 28, 464)
    wb2 = _band_weights_conv2(w2)                                     # (3, 208, 416)
    b1f = b1.astype(jnp.float32)
    b2f = b2.astype(jnp.float32)
    b1row = jnp.concatenate([jnp.tile(b1f, 13), jnp.zeros(48, jnp.float32),
                             jnp.tile(b1f, 13)]).reshape(1, 464)
    b2row = jnp.concatenate([jnp.tile(b2f, 5), jnp.zeros(96, jnp.float32),
                             jnp.tile(b2f, 5)]).reshape(1, 416)
    se1, so1, se2, so2 = _pool_selection(bt)
    # fc weight blocks: row = wp*32 + co, block index = hp (torch NCHW flatten)
    wfcblk = jnp.transpose(wfc.astype(jnp.float32).reshape(10, 32, 5, 5),
                           (2, 3, 1, 0)).reshape(5, 160, 10)
    bfcrow = bfc.astype(jnp.float32).reshape(1, 10)

    mc1 = bt * 28 - 2
    mc2 = bt * 13 - 2
    out = pl.pallas_call(
        partial(_cnn_kernel, bt),
        out_shape=jax.ShapeDtypeStruct((bpad, 10), jnp.float32),
        grid=(bpad // bt,),
        in_specs=[
            pl.BlockSpec((bt * 28, 28), lambda i: (i, 0)),
            pl.BlockSpec((3, 28, 464), lambda i: (0, 0, 0)),
            pl.BlockSpec((1, 464), lambda i: (0, 0)),
            pl.BlockSpec((bt * 13, mc1), lambda i: (0, 0)),
            pl.BlockSpec((bt * 13, mc1), lambda i: (0, 0)),
            pl.BlockSpec((3, 208, 416), lambda i: (0, 0, 0)),
            pl.BlockSpec((1, 416), lambda i: (0, 0)),
            pl.BlockSpec((5 * bt, mc2), lambda i: (0, 0)),
            pl.BlockSpec((5 * bt, mc2), lambda i: (0, 0)),
            pl.BlockSpec((5, 160, 10), lambda i: (0, 0, 0)),
            pl.BlockSpec((1, 10), lambda i: (0, 0)),
        ],
        out_specs=pl.BlockSpec((bt, 10), lambda i: (i, 0)),
        compiler_params=pltpu.CompilerParams(
            dimension_semantics=("parallel",)),
    )(x2d, wb1, b1row, jnp.asarray(se1), jnp.asarray(so1),
      wb2, b2row, jnp.asarray(se2), jnp.asarray(so2), wfcblk, bfcrow)
    return out[:B]


# ---------------------------------------------------------------------------
# Pure-XLA reference (mirrors the PyTorch module) for a numerical self-check
# ---------------------------------------------------------------------------
def _reference_forward(x, w1, b1, w2, b2, wfc, bfc):
    y = lax.conv(x, w1, (1, 1), "VALID") + b1.reshape(1, -1, 1, 1)
    y = jnp.maximum(y, 0.0)
    y = lax.reduce_window(y, -jnp.inf, lax.max, (1, 1, 2, 2), (1, 1, 2, 2), "VALID")
    y = lax.conv(y, w2, (1, 1), "VALID") + b2.reshape(1, -1, 1, 1)
    y = jnp.maximum(y, 0.0)
    y = lax.reduce_window(y, -jnp.inf, lax.max, (1, 1, 2, 2), (1, 1, 2, 2), "VALID")
    flat = y.reshape(y.shape[0], -1)           # torch NCHW flatten order
    return flat @ wfc.T + bfc


# ---------------------------------------------------------------------------
# Entry point
# ---------------------------------------------------------------------------
if __name__ == "__main__":
    key = jax.random.PRNGKey(0)
    ks = jax.random.split(key, 7)

    # fc1 = Linear(32*5*5, 10) implies 28x28 single-channel input (MNIST-like).
    B = 16                                    # -> 2 grid steps of Bt=8 images
    x = jax.random.normal(ks[0], (B, 1, 28, 28), dtype=jnp.float32)

    w1 = jax.random.normal(ks[1], (16, 1, 3, 3), dtype=jnp.float32) * 0.1
    b1 = jax.random.normal(ks[2], (16,), dtype=jnp.float32) * 0.1
    w2 = jax.random.normal(ks[3], (32, 16, 3, 3), dtype=jnp.float32) * 0.05
    b2 = jax.random.normal(ks[4], (32,), dtype=jnp.float32) * 0.05
    wfc = jax.random.normal(ks[5], (10, 32 * 5 * 5), dtype=jnp.float32) * 0.02
    bfc = jax.random.normal(ks[6], (10,), dtype=jnp.float32) * 0.02

    out = cnn_forward(x, w1, b1, w2, b2, wfc, bfc)
    jax.block_until_ready(out)
    assert out.shape == (B, 10), out.shape
    assert out.dtype == jnp.float32

    ref = _reference_forward(x, w1, b1, w2, b2, wfc, bfc)
    max_err = float(jnp.max(jnp.abs(out - ref)))
    assert max_err < 3e-3, f"mismatch vs reference: {max_err}"
    print("KERNEL_OK")
</pallas_src>

<mosaic_0001>
module attributes {stable_mosaic.version = 11 : i64} {
  func.func @_cnn_kernel(%arg0: i32, %arg1: memref<224x28xf32, #tpu.memory_space<vmem>>, %arg2: memref<3x28x464xf32, #tpu.memory_space<vmem>>, %arg3: memref<1x464xf32, #tpu.memory_space<vmem>>, %arg4: memref<104x222xf32, #tpu.memory_space<vmem>>, %arg5: memref<104x222xf32, #tpu.memory_space<vmem>>, %arg6: memref<3x208x416xf32, #tpu.memory_space<vmem>>, %arg7: memref<1x416xf32, #tpu.memory_space<vmem>>, %arg8: memref<40x102xf32, #tpu.memory_space<vmem>>, %arg9: memref<40x102xf32, #tpu.memory_space<vmem>>, %arg10: memref<5x160x10xf32, #tpu.memory_space<vmem>>, %arg11: memref<1x10xf32, #tpu.memory_space<vmem>>, %arg12: memref<8x10xf32, #tpu.memory_space<vmem>>) attributes {dimension_semantics = [#tpu.dimension_semantics<parallel>], iteration_bounds = array<i64: 2>, scalar_prefetch = 0 : i64, scratch_operands = 0 : i64, tpu.core_type = #tpu.core_type<tc>, window_params = [{transform_indices = @transform_0, window_bounds = array<i64: 224, 28>}, {pipeline_mode = #tpu.pipeline_mode<synchronous>, transform_indices = @transform_1, window_bounds = array<i64: 3, 28, 464>}, {pipeline_mode = #tpu.pipeline_mode<synchronous>, transform_indices = @transform_2, window_bounds = array<i64: 1, 464>}, {pipeline_mode = #tpu.pipeline_mode<synchronous>, transform_indices = @transform_3, window_bounds = array<i64: 104, 222>}, {pipeline_mode = #tpu.pipeline_mode<synchronous>, transform_indices = @transform_4, window_bounds = array<i64: 104, 222>}, {pipeline_mode = #tpu.pipeline_mode<synchronous>, transform_indices = @transform_5, window_bounds = array<i64: 3, 208, 416>}, {pipeline_mode = #tpu.pipeline_mode<synchronous>, transform_indices = @transform_6, window_bounds = array<i64: 1, 416>}, {pipeline_mode = #tpu.pipeline_mode<synchronous>, transform_indices = @transform_7, window_bounds = array<i64: 40, 102>}, {pipeline_mode = #tpu.pipeline_mode<synchronous>, transform_indices = @transform_8, window_bounds = array<i64: 40, 102>}, {pipeline_mode = #tpu.pipeline_mode<synchronous>, transform_indices = @transform_9, window_bounds = array<i64: 5, 160, 10>}, {pipeline_mode = #tpu.pipeline_mode<synchronous>, transform_indices = @transform_10, window_bounds = array<i64: 1, 10>}, {transform_indices = @transform_11, window_bounds = array<i64: 8, 10>}]} {
    %c0 = arith.constant 0 : index
    %c0_0 = arith.constant 0 : index
    %0 = vector.load %arg1[%c0, %c0_0] : memref<224x28xf32, #tpu.memory_space<vmem>>, vector<224x28xf32>
    %1 = vector.extract_strided_slice %0 {offsets = [0, 0], sizes = [222, 28], strides = [1, 1]} : vector<224x28xf32> to vector<222x28xf32>
    %c0_1 = arith.constant 0 : index
    %c0_2 = arith.constant 0 : index
    %c0_3 = arith.constant 0 : index
    %2 = vector.load %arg2[%c0_1, %c0_2, %c0_3] : memref<3x28x464xf32, #tpu.memory_space<vmem>>, vector<1x28x464xf32>
    %3 = vector.shape_cast %2 : vector<1x28x464xf32> to vector<28x464xf32>
    %cst = arith.constant dense<0.000000e+00> : vector<222x464xf32>
    %4 = tpu.matmul %1, %3, %cst {dimension_numbers = #tpu.dot_dimension_numbers<[1], [0], [0], [1], [0, 0, 1, 1], [], []>} : vector<222x28xf32>, vector<28x464xf32>, vector<222x464xf32> -> vector<222x464xf32>
    %5 = vector.extract_strided_slice %0 {offsets = [1, 0], sizes = [222, 28], strides = [1, 1]} : vector<224x28xf32> to vector<222x28xf32>
    %c1 = arith.constant 1 : index
    %c0_4 = arith.constant 0 : index
    %c0_5 = arith.constant 0 : index
    %6 = vector.load %arg2[%c1, %c0_4, %c0_5] : memref<3x28x464xf32, #tpu.memory_space<vmem>>, vector<1x28x464xf32>
    %7 = vector.shape_cast %6 : vector<1x28x464xf32> to vector<28x464xf32>
    %cst_6 = arith.constant dense<0.000000e+00> : vector<222x464xf32>
    %8 = tpu.matmul %5, %7, %cst_6 {dimension_numbers = #tpu.dot_dimension_numbers<[1], [0], [0], [1], [0, 0, 1, 1], [], []>} : vector<222x28xf32>, vector<28x464xf32>, vector<222x464xf32> -> vector<222x464xf32>
    %9 = arith.addf %4, %8 : vector<222x464xf32>
    %10 = vector.extract_strided_slice %0 {offsets = [2, 0], sizes = [222, 28], strides = [1, 1]} : vector<224x28xf32> to vector<222x28xf32>
    %c2 = arith.constant 2 : index
    %c0_7 = arith.constant 0 : index
    %c0_8 = arith.constant 0 : index
    %11 = vector.load %arg2[%c2, %c0_7, %c0_8] : memref<3x28x464xf32, #tpu.memory_space<vmem>>, vector<1x28x464xf32>
    %12 = vector.shape_cast %11 : vector<1x28x464xf32> to vector<28x464xf32>
    %cst_9 = arith.constant dense<0.000000e+00> : vector<222x464xf32>
    %13 = tpu.matmul %10, %12, %cst_9 {dimension_numbers = #tpu.dot_dimension_numbers<[1], [0], [0], [1], [0, 0, 1, 1], [], []>} : vector<222x28xf32>, vector<28x464xf32>, vector<222x464xf32> -> vector<222x464xf32>
    %14 = arith.addf %9, %13 : vector<222x464xf32>
    %c0_10 = arith.constant 0 : index
    %c0_11 = arith.constant 0 : index
    %15 = vector.load %arg3[%c0_10, %c0_11] : memref<1x464xf32, #tpu.memory_space<vmem>>, vector<1x464xf32>
    %16 = vector.broadcast %15 : vector<1x464xf32> to vector<222x464xf32>
    %17 = arith.addf %14, %16 : vector<222x464xf32>
    %cst_12 = arith.constant 0.000000e+00 : f32
    %18 = vector.broadcast %cst_12 : f32 to vector<222x464xf32>
    %19 = arith.maximumf %17, %18 : vector<222x464xf32>
    %20 = vector.extract_strided_slice %19 {offsets = [0, 0], sizes = [222, 208], strides = [1, 1]} : vector<222x464xf32> to vector<222x208xf32>
    %21 = vector.extract_strided_slice %19 {offsets = [0, 256], sizes = [222, 208], strides = [1, 1]} : vector<222x464xf32> to vector<222x208xf32>
    %22 = arith.maximumf %20, %21 : vector<222x208xf32>
    %c0_13 = arith.constant 0 : index
    %c0_14 = arith.constant 0 : index
    %23 = vector.load %arg4[%c0_13, %c0_14] : memref<104x222xf32, #tpu.memory_space<vmem>>, vector<104x222xf32>
    %cst_15 = arith.constant dense<0.000000e+00> : vector<104x208xf32>
    %24 = tpu.matmul %23, %22, %cst_15 {dimension_numbers = #tpu.dot_dimension_numbers<[1], [0], [0], [1], [0, 0, 1, 1], [], []>} : vector<104x222xf32>, vector<222x208xf32>, vector<104x208xf32> -> vector<104x208xf32>
    %c0_16 = arith.constant 0 : index
    %c0_17 = arith.constant 0 : index
    %25 = vector.load %arg5[%c0_16, %c0_17] : memref<104x222xf32, #tpu.memory_space<vmem>>, vector<104x222xf32>
    %cst_18 = arith.constant dense<0.000000e+00> : vector<104x208xf32>
    %26 = tpu.matmul %25, %22, %cst_18 {dimension_numbers = #tpu.dot_dimension_numbers<[1], [0], [0], [1], [0, 0, 1, 1], [], []>} : vector<104x222xf32>, vector<222x208xf32>, vector<104x208xf32> -> vector<104x208xf32>
    %27 = arith.maximumf %24, %26 : vector<104x208xf32>
    %28 = vector.extract_strided_slice %27 {offsets = [0, 0], sizes = [102, 208], strides = [1, 1]} : vector<104x208xf32> to vector<102x208xf32>
    %c0_19 = arith.constant 0 : index
    %c0_20 = arith.constant 0 : index
    %c0_21 = arith.constant 0 : index
    %29 = vector.load %arg6[%c0_19, %c0_20, %c0_21] : memref<3x208x416xf32, #tpu.memory_space<vmem>>, vector<1x208x416xf32>
    %30 = vector.shape_cast %29 : vector<1x208x416xf32> to vector<208x416xf32>
    %cst_22 = arith.constant dense<0.000000e+00> : vector<102x416xf32>
    %31 = tpu.matmul %28, %30, %cst_22 {dimension_numbers = #tpu.dot_dimension_numbers<[1], [0], [0], [1], [0, 0, 1, 1], [], []>} : vector<102x208xf32>, vector<208x416xf32>, vector<102x416xf32> -> vector<102x416xf32>
    %32 = vector.extract_strided_slice %27 {offsets = [1, 0], sizes = [102, 208], strides = [1, 1]} : vector<104x208xf32> to vector<102x208xf32>
    %c1_23 = arith.constant 1 : index
    %c0_24 = arith.constant 0 : index
    %c0_25 = arith.constant 0 : index
    %33 = vector.load %arg6[%c1_23, %c0_24, %c0_25] : memref<3x208x416xf32, #tpu.memory_space<vmem>>, vector<1x208x416xf32>
    %34 = vector.shape_cast %33 : vector<1x208x416xf32> to vector<208x416xf32>
    %cst_26 = arith.constant dense<0.000000e+00> : vector<102x416xf32>
    %35 = tpu.matmul %32, %34, %cst_26 {dimension_numbers = #tpu.dot_dimension_numbers<[1], [0], [0], [1], [0, 0, 1, 1], [], []>} : vector<102x208xf32>, vector<208x416xf32>, vector<102x416xf32> -> vector<102x416xf32>
    %36 = arith.addf %31, %35 : vector<102x416xf32>
    %37 = vector.extract_strided_slice %27 {offsets = [2, 0], sizes = [102, 208], strides = [1, 1]} : vector<104x208xf32> to vector<102x208xf32>
    %c2_27 = arith.constant 2 : index
    %c0_28 = arith.constant 0 : index
    %c0_29 = arith.constant 0 : index
    %38 = vector.load %arg6[%c2_27, %c0_28, %c0_29] : memref<3x208x416xf32, #tpu.memory_space<vmem>>, vector<1x208x416xf32>
    %39 = vector.shape_cast %38 : vector<1x208x416xf32> to vector<208x416xf32>
    %cst_30 = arith.constant dense<0.000000e+00> : vector<102x416xf32>
    %40 = tpu.matmul %37, %39, %cst_30 {dimension_numbers = #tpu.dot_dimension_numbers<[1], [0], [0], [1], [0, 0, 1, 1], [], []>} : vector<102x208xf32>, vector<208x416xf32>, vector<102x416xf32> -> vector<102x416xf32>
    %41 = arith.addf %36, %40 : vector<102x416xf32>
    %c0_31 = arith.constant 0 : index
    %c0_32 = arith.constant 0 : index
    %42 = vector.load %arg7[%c0_31, %c0_32] : memref<1x416xf32, #tpu.memory_space<vmem>>, vector<1x416xf32>
    %43 = vector.broadcast %42 : vector<1x416xf32> to vector<102x416xf32>
    %44 = arith.addf %41, %43 : vector<102x416xf32>
    %cst_33 = arith.constant 0.000000e+00 : f32
    %45 = vector.broadcast %cst_33 : f32 to vector<102x416xf32>
    %46 = arith.maximumf %44, %45 : vector<102x416xf32>
    %47 = vector.extract_strided_slice %46 {offsets = [0, 0], sizes = [102, 160], strides = [1, 1]} : vector<102x416xf32> to vector<102x160xf32>
    %48 = vector.extract_strided_slice %46 {offsets = [0, 256], sizes = [102, 160], strides = [1, 1]} : vector<102x416xf32> to vector<102x160xf32>
    %49 = arith.maximumf %47, %48 : vector<102x160xf32>
    %c0_34 = arith.constant 0 : index
    %c0_35 = arith.constant 0 : index
    %50 = vector.load %arg8[%c0_34, %c0_35] : memref<40x102xf32, #tpu.memory_space<vmem>>, vector<40x102xf32>
    %cst_36 = arith.constant dense<0.000000e+00> : vector<40x160xf32>
    %51 = tpu.matmul %50, %49, %cst_36 {dimension_numbers = #tpu.dot_dimension_numbers<[1], [0], [0], [1], [0, 0, 1, 1], [], []>} : vector<40x102xf32>, vector<102x160xf32>, vector<40x160xf32> -> vector<40x160xf32>
    %c0_37 = arith.constant 0 : index
    %c0_38 = arith.constant 0 : index
    %52 = vector.load %arg9[%c0_37, %c0_38] : memref<40x102xf32, #tpu.memory_space<vmem>>, vector<40x102xf32>
    %cst_39 = arith.constant dense<0.000000e+00> : vector<40x160xf32>
    %53 = tpu.matmul %52, %49, %cst_39 {dimension_numbers = #tpu.dot_dimension_numbers<[1], [0], [0], [1], [0, 0, 1, 1], [], []>} : vector<40x102xf32>, vector<102x160xf32>, vector<40x160xf32> -> vector<40x160xf32>
    %54 = arith.maximumf %51, %53 : vector<40x160xf32>
    %55 = vector.extract_strided_slice %54 {offsets = [0, 0], sizes = [8, 160], strides = [1, 1]} : vector<40x160xf32> to vector<8x160xf32>
    %c0_40 = arith.constant 0 : index
    %c0_41 = arith.constant 0 : index
    %c0_42 = arith.constant 0 : index
    %56 = vector.load %arg10[%c0_40, %c0_41, %c0_42] : memref<5x160x10xf32, #tpu.memory_space<vmem>>, vector<1x160x10xf32>
    %57 = vector.shape_cast %56 : vector<1x160x10xf32> to vector<160x10xf32>
    %cst_43 = arith.constant dense<0.000000e+00> : vector<8x10xf32>
    %58 = tpu.matmul %55, %57, %cst_43 {dimension_numbers = #tpu.dot_dimension_numbers<[1], [0], [0], [1], [0, 0, 1, 1], [], []>} : vector<8x160xf32>, vector<160x10xf32>, vector<8x10xf32> -> vector<8x10xf32>
    %59 = vector.extract_strided_slice %54 {offsets = [8, 0], sizes = [8, 160], strides = [1, 1]} : vector<40x160xf32> to vector<8x160xf32>
    %c1_44 = arith.constant 1 : index
    %c0_45 = arith.constant 0 : index
    %c0_46 = arith.constant 0 : index
    %60 = vector.load %arg10[%c1_44, %c0_45, %c0_46] : memref<5x160x10xf32, #tpu.memory_space<vmem>>, vector<1x160x10xf32>
    %61 = vector.shape_cast %60 : vector<1x160x10xf32> to vector<160x10xf32>
    %cst_47 = arith.constant dense<0.000000e+00> : vector<8x10xf32>
    %62 = tpu.matmul %59, %61, %cst_47 {dimension_numbers = #tpu.dot_dimension_numbers<[1], [0], [0], [1], [0, 0, 1, 1], [], []>} : vector<8x160xf32>, vector<160x10xf32>, vector<8x10xf32> -> vector<8x10xf32>
    %63 = arith.addf %58, %62 : vector<8x10xf32>
    %64 = vector.extract_strided_slice %54 {offsets = [16, 0], sizes = [8, 160], strides = [1, 1]} : vector<40x160xf32> to vector<8x160xf32>
    %c2_48 = arith.constant 2 : index
    %c0_49 = arith.constant 0 : index
    %c0_50 = arith.constant 0 : index
    %65 = vector.load %arg10[%c2_48, %c0_49, %c0_50] : memref<5x160x10xf32, #tpu.memory_space<vmem>>, vector<1x160x10xf32>
    %66 = vector.shape_cast %65 : vector<1x160x10xf32> to vector<160x10xf32>
    %cst_51 = arith.constant dense<0.000000e+00> : vector<8x10xf32>
    %67 = tpu.matmul %64, %66, %cst_51 {dimension_numbers = #tpu.dot_dimension_numbers<[1], [0], [0], [1], [0, 0, 1, 1], [], []>} : vector<8x160xf32>, vector<160x10xf32>, vector<8x10xf32> -> vector<8x10xf32>
    %68 = arith.addf %63, %67 : vector<8x10xf32>
    %69 = vector.extract_strided_slice %54 {offsets = [24, 0], sizes = [8, 160], strides = [1, 1]} : vector<40x160xf32> to vector<8x160xf32>
    %c3 = arith.constant 3 : index
    %c0_52 = arith.constant 0 : index
    %c0_53 = arith.constant 0 : index
    %70 = vector.load %arg10[%c3, %c0_52, %c0_53] : memref<5x160x10xf32, #tpu.memory_space<vmem>>, vector<1x160x10xf32>
    %71 = vector.shape_cast %70 : vector<1x160x10xf32> to vector<160x10xf32>
    %cst_54 = arith.constant dense<0.000000e+00> : vector<8x10xf32>
    %72 = tpu.matmul %69, %71, %cst_54 {dimension_numbers = #tpu.dot_dimension_numbers<[1], [0], [0], [1], [0, 0, 1, 1], [], []>} : vector<8x160xf32>, vector<160x10xf32>, vector<8x10xf32> -> vector<8x10xf32>
    %73 = arith.addf %68, %72 : vector<8x10xf32>
    %74 = vector.extract_strided_slice %54 {offsets = [32, 0], sizes = [8, 160], strides = [1, 1]} : vector<40x160xf32> to vector<8x160xf32>
    %c4 = arith.constant 4 : index
    %c0_55 = arith.constant 0 : index
    %c0_56 = arith.constant 0 : index
    %75 = vector.load %arg10[%c4, %c0_55, %c0_56] : memref<5x160x10xf32, #tpu.memory_space<vmem>>, vector<1x160x10xf32>
    %76 = vector.shape_cast %75 : vector<1x160x10xf32> to vector<160x10xf32>
    %cst_57 = arith.constant dense<0.000000e+00> : vector<8x10xf32>
    %77 = tpu.matmul %74, %76, %cst_57 {dimension_numbers = #tpu.dot_dimension_numbers<[1], [0], [0], [1], [0, 0, 1, 1], [], []>} : vector<8x160xf32>, vector<160x10xf32>, vector<8x10xf32> -> vector<8x10xf32>
    %78 = arith.addf %73, %77 : vector<8x10xf32>
    %c0_58 = arith.constant 0 : index
    %c0_59 = arith.constant 0 : index
    %79 = vector.load %arg11[%c0_58, %c0_59] : memref<1x10xf32, #tpu.memory_space<vmem>>, vector<1x10xf32>
    %80 = vector.broadcast %79 : vector<1x10xf32> to vector<8x10xf32>
    %81 = arith.addf %78, %80 : vector<8x10xf32>
    %c0_60 = arith.constant 0 : index
    %c0_61 = arith.constant 0 : index
    %82 = vector.load %arg12[%c0_60, %c0_61] : memref<8x10xf32, #tpu.memory_space<vmem>>, vector<8x10xf32>
    tpu.vector_store %arg12[%c0_60, %c0_61], %81 {strides = array<i32>} : memref<8x10xf32, #tpu.memory_space<vmem>>, vector<8x10xf32>,
    return
  }
  func.func @transform_0(%arg0: i32) -> (i32, i32) {
    %c0_i32 = arith.constant 0 : i32
    %c0_i32_0 = arith.constant 0 : i32
    return %arg0, %c0_i32 : i32, i32
  }
  func.func @transform_1(%arg0: i32) -> (i32, i32, i32) {
    %c0_i32 = arith.constant 0 : i32
    %c0_i32_0 = arith.constant 0 : i32
    %c0_i32_1 = arith.constant 0 : i32
    %c0_i32_2 = arith.constant 0 : i32
    return %c0_i32, %c0_i32_0, %c0_i32_1 : i32, i32, i32
  }
  func.func @transform_2(%arg0: i32) -> (i32, i32) {
    %c0_i32 = arith.constant 0 : i32
    %c0_i32_0 = arith.constant 0 : i32
    %c0_i32_1 = arith.constant 0 : i32
    return %c0_i32, %c0_i32_0 : i32, i32
  }
  func.func @transform_3(%arg0: i32) -> (i32, i32) {
    %c0_i32 = arith.constant 0 : i32
    %c0_i32_0 = arith.constant 0 : i32
    %c0_i32_1 = arith.constant 0 : i32
    return %c0_i32, %c0_i32_0 : i32, i32
  }
  func.func @transform_4(%arg0: i32) -> (i32, i32) {
    %c0_i32 = arith.constant 0 : i32
    %c0_i32_0 = arith.constant 0 : i32
    %c0_i32_1 = arith.constant 0 : i32
    return %c0_i32, %c0_i32_0 : i32, i32
  }
  func.func @transform_5(%arg0: i32) -> (i32, i32, i32) {
    %c0_i32 = arith.constant 0 : i32
    %c0_i32_0 = arith.constant 0 : i32
    %c0_i32_1 = arith.constant 0 : i32
    %c0_i32_2 = arith.constant 0 : i32
    return %c0_i32, %c0_i32_0, %c0_i32_1 : i32, i32, i32
  }
  func.func @transform_6(%arg0: i32) -> (i32, i32) {
    %c0_i32 = arith.constant 0 : i32
    %c0_i32_0 = arith.constant 0 : i32
    %c0_i32_1 = arith.constant 0 : i32
    return %c0_i32, %c0_i32_0 : i32, i32
  }
  func.func @transform_7(%arg0: i32) -> (i32, i32) {
    %c0_i32 = arith.constant 0 : i32
    %c0_i32_0 = arith.constant 0 : i32
    %c0_i32_1 = arith.constant 0 : i32
    return %c0_i32, %c0_i32_0 : i32, i32
  }
  func.func @transform_8(%arg0: i32) -> (i32, i32) {
    %c0_i32 = arith.constant 0 : i32
    %c0_i32_0 = arith.constant 0 : i32
    %c0_i32_1 = arith.constant 0 : i32
    return %c0_i32, %c0_i32_0 : i32, i32
  }
  func.func @transform_9(%arg0: i32) -> (i32, i32, i32) {
    %c0_i32 = arith.constant 0 : i32
    %c0_i32_0 = arith.constant 0 : i32
    %c0_i32_1 = arith.constant 0 : i32
    %c0_i32_2 = arith.constant 0 : i32
    return %c0_i32, %c0_i32_0, %c0_i32_1 : i32, i32, i32
  }
  func.func @transform_10(%arg0: i32) -> (i32, i32) {
    %c0_i32 = arith.constant 0 : i32
    %c0_i32_0 = arith.constant 0 : i32
    %c0_i32_1 = arith.constant 0 : i32
    return %c0_i32, %c0_i32_0 : i32, i32
  }
  func.func @transform_11(%arg0: i32) -> (i32, i32) {
    %c0_i32 = arith.constant 0 : i32
    %c0_i32_0 = arith.constant 0 : i32
    return %arg0, %c0_i32 : i32, i32
  }
}

</mosaic_0001>

<llo_original>
// kernel: tile.23
$region0: #{tile.23}
  #allocation0 [shape = 's32[1]{0}', space=sflag, size = 0x4, scoped, tag = 'scoped memory for tile.23']
  %s0 = inlined_call_operand.vmem [shape: f32[16], index: 0, kind: input, shape index: {}]
  %s1 = inlined_call_operand.vmem [shape: f32[13,16], index: 1, kind: output, shape index: {}]
  // Predicated region
  $region2: #{tile.23} parent=0 // pred_check
    _
  $region3: #{tile.23} parent=0 // pred_check_branch
    %3 = sbr.rel (0) target = $region5
  $region4: #{tile.23} parent=0 // pred_region
    _
  $region5: #{tile.23} parent=0 // pred_fallthru
    _
  %v4 = vld [vmem:[%s0] ss:$0 sm:$0xff]
  %5 = vst [vmem:[%s1] sm:$0xff] %v4
  %s6 = scalar_lea.vmem %s1, 8
  %7 = vst [vmem:[%s6] sm:$0xff] %v4

// kernel: tile.24
$region0: #{tile.24}
  %s0 = inlined_call_operand.vmem [shape: f32[13,16], index: 0, kind: input, shape index: {}]
  %s1 = inlined_call_operand.vmem [shape: f32[208], index: 1, kind: output, shape index: {}]
  $region1: #{tile.24} parent=0
    #allocation0 [shape = 'u8[4096]{0}', space=vmem, size = 0x1000, scoped, tag = 'scoped mem for output reshape']
    %s2 = smov 3
    %v3 = vld [vmem:[%s0] ss:$8 sm:%s2]
    %vm4 = vcmask 130048
    %5 = vst.msk [vmem:[#allocation0] sm:$0x3] %vm4, %v3
    %s6 = scalar_lea.vmem %s0, 7
    %v7 = vld [vmem:[%s6] sm:$0x1]
    %8 = vrot.lane.b32.xlu0 %v7, 112
    %v9 = vpop.permute.xlu0 %8
    %vm10 = vcmask 1048448
    %11 = vst.msk [vmem:[#allocation0] sm:$0x1] %vm10, %v9
    %s12 = scalar_lea.vmem %s0, 6
    %v13 = vld [vmem:[%s12] sm:$0x1]
    %14 = vrot.lane.b32.xlu0 %v13, 96
    %v15 = vpop.permute.xlu0 %14
    %vm16 = vcmask 917248
    %17 = vst.msk [vmem:[#allocation0] sm:$0x1] %vm16, %v15
    %s18 = scalar_lea.vmem %s0, 5
    %v19 = vld [vmem:[%s18] sm:$0x1]
    %20 = vrot.lane.b32.xlu0 %v19, 80
    %v21 = vpop.permute.xlu0 %20
    %vm22 = vcmask 786048
    %23 = vst.msk [vmem:[#allocation0] sm:$0x1] %vm22, %v21
    %s24 = scalar_lea.vmem %s0, 4
    %s25 = smov 3
    %v26 = vld [vmem:[%s24] ss:$8 sm:%s25]
    %27 = vrot.lane.b32.xlu0 %v26, 64
    %v28 = vpop.permute.xlu0 %27
    %vm29 = vcmask 654848
    %30 = vst.msk [vmem:[#allocation0] sm:$0x3] %vm29, %v28
    %s31 = scalar_lea.vmem %s0, 3
    %s32 = smov 3
    %v33 = vld [vmem:[%s31] ss:$8 sm:%s32]
    %34 = vrot.lane.b32.xlu0 %v33, 48
    %v35 = vpop.permute.xlu0 %34
    %vm36 = vcmask 523648
    %37 = vst.msk [vmem:[#allocation0] sm:$0x3] %vm36, %v35
    %s38 = scalar_lea.vmem %s0, 2
    %s39 = smov 3
    %v40 = vld [vmem:[%s38] ss:$8 sm:%s39]
    %41 = vrot.lane.b32.xlu0 %v40, 32
    %v42 = vpop.permute.xlu0 %41
    %vm43 = vcmask 392448
    %44 = vst.msk [vmem:[#allocation0] sm:$0x3] %vm43, %v42
    %s45 = scalar_lea.vmem %s0, 1
    %s46 = smov 3
    %v47 = vld [vmem:[%s45] ss:$8 sm:%s46]
    %48 = vrot.lane.b32.xlu0 %v47, 16
    %v49 = vpop.permute.xlu0 %48
    %vm50 = vcmask 261248
    %51 = vst.msk [vmem:[#allocation0] sm:$0x3] %vm50, %v49
    %s53 = sshll.u32 1, 2
    %s54 = ssub.s32 %s53, 1
    %v56 = vld [vmem:[#allocation0] sm:%s54]
    %s57 = sshll.u32 1, 2
    %s58 = ssub.s32 %s57, 1
    %59 = vst [vmem:[%s1] sm:%s58] %v56

// kernel: tile.33
$region0: #{tile.33}
  #allocation0 [shape = 's32[1]{0}', space=sflag, size = 0x4, scoped, tag = 'scoped memory for tile.33']
  %s0 = inlined_call_operand.vmem [shape: f32[32], index: 0, kind: input, shape index: {}]
  %s1 = inlined_call_operand.vmem [shape: f32[5,32], index: 1, kind: output, shape index: {}]
  // Predicated region
  $region2: #{tile.33} parent=0 // pred_check
    _
  $region3: #{tile.33} parent=0 // pred_check_branch
    %3 = sbr.rel (0) target = $region5
  $region4: #{tile.33} parent=0 // pred_region
    _
  $region5: #{tile.33} parent=0 // pred_fallthru
    _
  %v4 = vld [vmem:[%s0] ss:$0 sm:$0xff]
  %5 = vst [vmem:[%s1] sm:$0xff] %v4

// kernel: tile.34
$region0: #{tile.34}
  %s0 = inlined_call_operand.vmem [shape: f32[5,32], index: 0, kind: input, shape index: {}]
  %s1 = inlined_call_operand.vmem [shape: f32[160], index: 1, kind: output, shape index: {}]
  $region1: #{tile.34} parent=0
    #allocation0 [shape = 'u8[4096]{0}', space=vmem, size = 0x1000, scoped, tag = 'scoped mem for output reshape']
    %s2 = smov 3
    %v3 = vld [vmem:[%s0] ss:$4 sm:%s2]
    %vm4 = vcmask 261120
    %5 = vst.msk [vmem:[#allocation0] sm:$0x3] %vm4, %v3
    %s6 = scalar_lea.vmem %s0, 3
    %v7 = vld [vmem:[%s6] sm:$0x1]
    %8 = vrot.lane.b32.xlu0 %v7, 96
    %v9 = vpop.permute.xlu0 %8
    %vm10 = vcmask 1048320
    %11 = vst.msk [vmem:[#allocation0] sm:$0x1] %vm10, %v9
    %s12 = scalar_lea.vmem %s0, 2
    %v13 = vld [vmem:[%s12] sm:$0x1]
    %14 = vrot.lane.b32.xlu0 %v13, 64
    %v15 = vpop.permute.xlu0 %14
    %vm16 = vcmask 785920
    %17 = vst.msk [vmem:[#allocation0] sm:$0x1] %vm16, %v15
    %s18 = scalar_lea.vmem %s0, 1
    %v19 = vld [vmem:[%s18] sm:$0x1]
    %20 = vrot.lane.b32.xlu0 %v19, 32
    %v21 = vpop.permute.xlu0 %20
    %vm22 = vcmask 523520
    %23 = vst.msk [vmem:[#allocation0] sm:$0x1] %vm22, %v21
    %s25 = sshll.u32 1, 2
    %s26 = ssub.s32 %s25, 1
    %v28 = vld [vmem:[#allocation0] sm:%s26]
    %s29 = sshll.u32 1, 2
    %s30 = ssub.s32 %s29, 1
    %31 = vst [vmem:[%s1] sm:%s30] %v28

// kernel: cnn_forward.1
$region0: #{cnn_forward.1}
  #allocation0 [shape = 'u32[]', space=smem, size = 0x4, offset = 0x4, fixed_abs, tag = 'smem constant byte address 0x4 - core index']
  #allocation1 [shape = 'u32[144,128]{1,0:T(1,128)}', space=vmem, size = 0x12000, scoped, tag = 'internal scratch']
  %s0 = inlined_call_operand.vmem [shape: f32[448,28], index: 0, kind: input, shape index: {}]
  %s1 = inlined_call_operand.vmem [shape: f32[3,28,464], index: 1, kind: input, shape index: {}]
  %s2 = inlined_call_operand.vmem [shape: f32[1,464], index: 2, kind: input, shape index: {}]
  %s3 = inlined_call_operand.vmem [shape: f32[104,222], index: 3, kind: input, shape index: {}]
  %s4 = inlined_call_operand.vmem [shape: f32[104,222], index: 4, kind: input, shape index: {}]
  %s5 = inlined_call_operand.vmem [shape: f32[3,208,416], index: 5, kind: input, shape index: {}]
  %s6 = inlined_call_operand.vmem [shape: f32[1,416], index: 6, kind: input, shape index: {}]
  %s7 = inlined_call_operand.vmem [shape: f32[40,102], index: 7, kind: input, shape index: {}]
  %s8 = inlined_call_operand.vmem [shape: f32[40,102], index: 8, kind: input, shape index: {}]
  %s9 = inlined_call_operand.vmem [shape: f32[5,160,10], index: 9, kind: input, shape index: {}]
  %s10 = inlined_call_operand.vmem [shape: f32[1,10], index: 10, kind: input, shape index: {}]
  %s11 = inlined_call_operand.hbm [shape: f32[16,10], index: 11, kind: output, shape index: {}]
  %s12 = sld [smem:[#allocation0]]
  $region77: #{cnn_forward.1} parent=0
    _
  %s14 = ssub.s32 1, %s12
  %s15 = scalar_select 0, %s14, %s12
  $region1: #{cnn_forward.1} parent=0
    #allocation2 [shape = 'u8[8192]{0}', space=vmem, size = 0x2000, scoped, tag = 'output window, operand 0']
    #allocation3 [shape = 's32[2]{0}', space=sflag, size = 0x8, scoped, tag = 'scoped memory for cnn_forward.1']
    %16 = vsyncpa [#allocation3], 0
    %s17 = scalar_lea.sflag [#allocation3], 1
    %18 = vsyncpa %s17, 0
    loop: start=0, step=1, limit=4
    $region2: #{cnn_forward.1} parent=1 // loop_pre_header
      _
    $region3: #{cnn_forward.1} parent=1 // loop_header
      %s20 = sphi 0, %s24
      %p21 = scmp.ge.s32.totalorder %s20, 4
      %s30 = sphi 0, %s32
      %s33 = sphi 0, %s30
      %s34 = sphi 0, %s33
      %s50 = sphi 0, %s34
      %s54 = sphi 0, %s54
      %s56 = sphi 0, %s54
      %s57 = sphi 0, %s56
      %s71 = sphi 0, %s57
      %s75 = sphi 0, %s75
      %s77 = sphi 0, %s75
      %s78 = sphi 0, %s77
      %s92 = sphi 0, %s78
      %s96 = sphi 0, %s96
      %s98 = sphi 0, %s96
      %s99 = sphi 0, %s98
      %s113 = sphi 0, %s99
      %s117 = sphi 0, %s117
      %s119 = sphi 0, %s117
      %s120 = sphi 0, %s119
      %s134 = sphi 0, %s120
      %s138 = sphi 0, %s138
      %s140 = sphi 0, %s138
      %s141 = sphi 0, %s140
      %s155 = sphi 0, %s141
      %s159 = sphi 0, %s159
      %s161 = sphi 0, %s159
      %s162 = sphi 0, %s161
      %s176 = sphi 0, %s162
      %s180 = sphi 0, %s180
      %s182 = sphi 0, %s180
      %s183 = sphi 0, %s182
      %s197 = sphi 0, %s183
      %s201 = sphi 0, %s201
      %s203 = sphi 0, %s201
      %s204 = sphi 0, %s203
      %s218 = sphi 0, %s204
      %s222 = sphi 0, %s222
      %s224 = sphi 0, %s222
      %s225 = sphi 0, %s224
      %s239 = sphi 0, %s225
      %s243 = sphi 0, %s243
      %s245 = sphi 0, %s243
      %s246 = sphi 0, %s245
      %s260 = sphi 0, %s246
      %s266 = sphi 0, %s268
      %s269 = sphi 0, %s266
      %s270 = sphi 0, %s269
      %s286 = sphi 0, %s270
    $region4: #{cnn_forward.1} parent=1 // loop_header_branch
      %23 = sbr.rel (%p21) target = $region8
    $region5: #{cnn_forward.1} parent=1 // loop_body
      %s25 = ssub.s32 %s20, 1
      %s26 = ssub.s32 %s20, 2
      %s27 = sadd.s32 %s20, 1
      %s28 = ssub.s32 %s20, %s27
      %p29 = scmp.eq.s32.totalorder %s28, 0
      %s31 = sadd.s32 %s30, 1
      %s32 = scalar_select %p29, %s30, %s31
      %p35 = pneg %p29
      %p36 = scmp.eq.s32.totalorder %s20, 1
      %p37 = por %p35, %p36
      %p38 = scmp.ne.s32.totalorder %s30, %s33
      %p39 = scmp.eq.s32.totalorder %s20, 0
      %p40 = por %p38, %p39
      %p41 = scmp.ne.s32.totalorder %s30, %s33
      %p42 = scmp.eq.s32.totalorder %s25, 1
      %p43 = por %p41, %p42
      %p44 = scmp.ne.s32.totalorder %s33, %s34
      %p45 = scmp.eq.s32.totalorder %s25, 0
      %p46 = por %p44, %p45
      %p47 = scmp.ne.s32.totalorder %s33, %s34
      %p48 = scmp.eq.s32.totalorder %s26, 1
      %p49 = por %p47, %p48
      %p51 = scmp.ne.s32.totalorder %s34, %s50
      %p52 = scmp.eq.s32.totalorder %s26, 0
      %p53 = por %p51, %p52
      %s55 = sadd.s32 %s54, 1
      %p58 = scmp.eq.s32.totalorder %s20, 1
      %p59 = scmp.ne.s32.totalorder %s54, %s56
      %p60 = scmp.eq.s32.totalorder %s20, 0
      %p61 = por %p59, %p60
      %p62 = scmp.ne.s32.totalorder %s54, %s56
      %p63 = scmp.eq.s32.totalorder %s25, 1
      %p64 = por %p62, %p63
      %p65 = scmp.ne.s32.totalorder %s56, %s57
      %p66 = scmp.eq.s32.totalorder %s25, 0
      %p67 = por %p65, %p66
      %p68 = scmp.ne.s32.totalorder %s56, %s57
      %p69 = scmp.eq.s32.totalorder %s26, 1
      %p70 = por %p68, %p69
      %p72 = scmp.ne.s32.totalorder %s57, %s71
      %p73 = scmp.eq.s32.totalorder %s26, 0
      %p74 = por %p72, %p73
      %s76 = sadd.s32 %s75, 1
      %p79 = scmp.eq.s32.totalorder %s20, 1
      %p80 = scmp.ne.s32.totalorder %s75, %s77
      %p81 = scmp.eq.s32.totalorder %s20, 0
      %p82 = por %p80, %p81
      %p83 = scmp.ne.s32.totalorder %s75, %s77
      %p84 = scmp.eq.s32.totalorder %s25, 1
      %p85 = por %p83, %p84
      %p86 = scmp.ne.s32.totalorder %s77, %s78
      %p87 = scmp.eq.s32.totalorder %s25, 0
      %p88 = por %p86, %p87
      %p89 = scmp.ne.s32.totalorder %s77, %s78
      %p90 = scmp.eq.s32.totalorder %s26, 1
      %p91 = por %p89, %p90
      %p93 = scmp.ne.s32.totalorder %s78, %s92
      %p94 = scmp.eq.s32.totalorder %s26, 0
      %p95 = por %p93, %p94
      %s97 = sadd.s32 %s96, 1
      %p100 = scmp.eq.s32.totalorder %s20, 1
      %p101 = scmp.ne.s32.totalorder %s96, %s98
      %p102 = scmp.eq.s32.totalorder %s20, 0
      %p103 = por %p101, %p102
      %p104 = scmp.ne.s32.totalorder %s96, %s98
      %p105 = scmp.eq.s32.totalorder %s25, 1
      %p106 = por %p104, %p105
      %p107 = scmp.ne.s32.totalorder %s98, %s99
      %p108 = scmp.eq.s32.totalorder %s25, 0
      %p109 = por %p107, %p108
      %p110 = scmp.ne.s32.totalorder %s98, %s99
      %p111 = scmp.eq.s32.totalorder %s26, 1
      %p112 = por %p110, %p111
      %p114 = scmp.ne.s32.totalorder %s99, %s113
      %p115 = scmp.eq.s32.totalorder %s26, 0
      %p116 = por %p114, %p115
      %s118 = sadd.s32 %s117, 1
      %p121 = scmp.eq.s32.totalorder %s20, 1
      %p122 = scmp.ne.s32.totalorder %s117, %s119
      %p123 = scmp.eq.s32.totalorder %s20, 0
      %p124 = por %p122, %p123
      %p125 = scmp.ne.s32.totalorder %s117, %s119
      %p126 = scmp.eq.s32.totalorder %s25, 1
      %p127 = por %p125, %p126
      %p128 = scmp.ne.s32.totalorder %s119, %s120
      %p129 = scmp.eq.s32.totalorder %s25, 0
      %p130 = por %p128, %p129
      %p131 = scmp.ne.s32.totalorder %s119, %s120
      %p132 = scmp.eq.s32.totalorder %s26, 1
      %p133 = por %p131, %p132
      %p135 = scmp.ne.s32.totalorder %s120, %s134
      %p136 = scmp.eq.s32.totalorder %s26, 0
      %p137 = por %p135, %p136
      %s139 = sadd.s32 %s138, 1
      %p142 = scmp.eq.s32.totalorder %s20, 1
      %p143 = scmp.ne.s32.totalorder %s138, %s140
      %p144 = scmp.eq.s32.totalorder %s20, 0
      %p145 = por %p143, %p144
      %p146 = scmp.ne.s32.totalorder %s138, %s140
      %p147 = scmp.eq.s32.totalorder %s25, 1
      %p148 = por %p146, %p147
      %p149 = scmp.ne.s32.totalorder %s140, %s141
      %p150 = scmp.eq.s32.totalorder %s25, 0
      %p151 = por %p149, %p150
      %p152 = scmp.ne.s32.totalorder %s140, %s141
      %p153 = scmp.eq.s32.totalorder %s26, 1
      %p154 = por %p152, %p153
      %p156 = scmp.ne.s32.totalorder %s141, %s155
      %p157 = scmp.eq.s32.totalorder %s26, 0
      %p158 = por %p156, %p157
      %s160 = sadd.s32 %s159, 1
      %p163 = scmp.eq.s32.totalorder %s20, 1
      %p164 = scmp.ne.s32.totalorder %s159, %s161
      %p165 = scmp.eq.s32.totalorder %s20, 0
      %p166 = por %p164, %p165
      %p167 = scmp.ne.s32.totalorder %s159, %s161
      %p168 = scmp.eq.s32.totalorder %s25, 1
      %p169 = por %p167, %p168
      %p170 = scmp.ne.s32.totalorder %s161, %s162
      %p171 = scmp.eq.s32.totalorder %s25, 0
      %p172 = por %p170, %p171
      %p173 = scmp.ne.s32.totalorder %s161, %s162
      %p174 = scmp.eq.s32.totalorder %s26, 1
      %p175 = por %p173, %p174
      %p177 = scmp.ne.s32.totalorder %s162, %s176
      %p178 = scmp.eq.s32.totalorder %s26, 0
      %p179 = por %p177, %p178
      %s181 = sadd.s32 %s180, 1
      %p184 = scmp.eq.s32.totalorder %s20, 1
      %p185 = scmp.ne.s32.totalorder %s180, %s182
      %p186 = scmp.eq.s32.totalorder %s20, 0
      %p187 = por %p185, %p186
      %p188 = scmp.ne.s32.totalorder %s180, %s182
      %p189 = scmp.eq.s32.totalorder %s25, 1
      %p190 = por %p188, %p189
      %p191 = scmp.ne.s32.totalorder %s182, %s183
      %p192 = scmp.eq.s32.totalorder %s25, 0
      %p193 = por %p191, %p192
      %p194 = scmp.ne.s32.totalorder %s182, %s183
      %p195 = scmp.eq.s32.totalorder %s26, 1
      %p196 = por %p194, %p195
      %p198 = scmp.ne.s32.totalorder %s183, %s197
      %p199 = scmp.eq.s32.totalorder %s26, 0
      %p200 = por %p198, %p199
      %s202 = sadd.s32 %s201, 1
      %p205 = scmp.eq.s32.totalorder %s20, 1
      %p206 = scmp.ne.s32.totalorder %s201, %s203
      %p207 = scmp.eq.s32.totalorder %s20, 0
      %p208 = por %p206, %p207
      %p209 = scmp.ne.s32.totalorder %s201, %s203
      %p210 = scmp.eq.s32.totalorder %s25, 1
      %p211 = por %p209, %p210
      %p212 = scmp.ne.s32.totalorder %s203, %s204
      %p213 = scmp.eq.s32.totalorder %s25, 0
      %p214 = por %p212, %p213
      %p215 = scmp.ne.s32.totalorder %s203, %s204
      %p216 = scmp.eq.s32.totalorder %s26, 1
      %p217 = por %p215, %p216
      %p219 = scmp.ne.s32.totalorder %s204, %s218
      %p220 = scmp.eq.s32.totalorder %s26, 0
      %p221 = por %p219, %p220
      %s223 = sadd.s32 %s222, 1
      %p226 = scmp.eq.s32.totalorder %s20, 1
      %p227 = scmp.ne.s32.totalorder %s222, %s224
      %p228 = scmp.eq.s32.totalorder %s20, 0
      %p229 = por %p227, %p228
      %p230 = scmp.ne.s32.totalorder %s222, %s224
      %p231 = scmp.eq.s32.totalorder %s25, 1
      %p232 = por %p230, %p231
      %p233 = scmp.ne.s32.totalorder %s224, %s225
      %p234 = scmp.eq.s32.totalorder %s25, 0
      %p235 = por %p233, %p234
      %p236 = scmp.ne.s32.totalorder %s224, %s225
      %p237 = scmp.eq.s32.totalorder %s26, 1
      %p238 = por %p236, %p237
      %p240 = scmp.ne.s32.totalorder %s225, %s239
      %p241 = scmp.eq.s32.totalorder %s26, 0
      %p242 = por %p240, %p241
      %s244 = sadd.s32 %s243, 1
      %p247 = scmp.eq.s32.totalorder %s20, 1
      %p248 = scmp.ne.s32.totalorder %s243, %s245
      %p249 = scmp.eq.s32.totalorder %s20, 0
      %p250 = por %p248, %p249
      %p251 = scmp.ne.s32.totalorder %s243, %s245
      %p252 = scmp.eq.s32.totalorder %s25, 1
      %p253 = por %p251, %p252
      %p254 = scmp.ne.s32.totalorder %s245, %s246
      %p255 = scmp.eq.s32.totalorder %s25, 0
      %p256 = por %p254, %p255
      %p257 = scmp.ne.s32.totalorder %s245, %s246
      %p258 = scmp.eq.s32.totalorder %s26, 1
      %p259 = por %p257, %p258
      %p261 = scmp.ne.s32.totalorder %s246, %s260
      %p262 = scmp.eq.s32.totalorder %s26, 0
      %p263 = por %p261, %p262
      %s264 = ssub.s32 %s20, %s27
      %p265 = scmp.eq.s32.totalorder %s264, 0
      %s267 = sadd.s32 %s266, 1
      %s268 = scalar_select %p265, %s266, %s267
      %p271 = pneg %p265
      %p272 = scmp.eq.s32.totalorder %s20, 1
      %p273 = por %p271, %p272
      %p274 = scmp.ne.s32.totalorder %s266, %s269
      %p275 = scmp.eq.s32.totalorder %s20, 0
      %p276 = por %p274, %p275
      %p277 = scmp.ne.s32.totalorder %s266, %s269
      %p278 = scmp.eq.s32.totalorder %s25, 1
      %p279 = por %p277, %p278
      %p280 = scmp.ne.s32.totalorder %s269, %s270
      %p281 = scmp.eq.s32.totalorder %s25, 0
      %p282 = por %p280, %p281
      %p283 = scmp.ne.s32.totalorder %s269, %s270
      %p284 = scmp.eq.s32.totalorder %s26, 1
      %p285 = por %p283, %p284
      %p287 = scmp.ne.s32.totalorder %s270, %s286
      %p288 = scmp.eq.s32.totalorder %s26, 0
      %p289 = por %p287, %p288
      %p290 = scmp.le.s32.totalorder 1, %s20
      %p291 = scmp.lt.s32.totalorder %s20, 3
      %p292 = pnand %p290, %p291
      %p293 = pneg %p292
      // Predicated region
      $region9: #{cnn_forward.1} parent=5 // pred_check
        _
      $region10: #{cnn_forward.1} parent=5 // pred_check_branch
        %295 = sbr.rel (%p292) target = $region12
      $region11: #{cnn_forward.1} parent=5 // pred_region
        %s296 = ssub.s32 %s20, 1
        // Predicated region
        $region13: #{cnn_forward.1} parent=11 // pred_check
          %p297 = pneg %p67
        $region14: #{cnn_forward.1} parent=11 // pred_check_branch
          %299 = sbr.rel (%p297) target = $region16
        $region15: #{cnn_forward.1} parent=11 // pred_region
          _
        $region16: #{cnn_forward.1} parent=11 // pred_fallthru
          _
        // Predicated region
        $region17: #{cnn_forward.1} parent=11 // pred_check
          %p300 = pneg %p88
        $region18: #{cnn_forward.1} parent=11 // pred_check_branch
          %302 = sbr.rel (%p300) target = $region20
        $region19: #{cnn_forward.1} parent=11 // pred_region
          _
        $region20: #{cnn_forward.1} parent=11 // pred_fallthru
          _
        // Predicated region
        $region21: #{cnn_forward.1} parent=11 // pred_check
          %p303 = pneg %p109
        $region22: #{cnn_forward.1} parent=11 // pred_check_branch
          %305 = sbr.rel (%p303) target = $region24
        $region23: #{cnn_forward.1} parent=11 // pred_region
          _
        $region24: #{cnn_forward.1} parent=11 // pred_fallthru
          _
        // Predicated region
        $region25: #{cnn_forward.1} parent=11 // pred_check
          %p306 = pneg %p130
        $region26: #{cnn_forward.1} parent=11 // pred_check_branch
          %308 = sbr.rel (%p306) target = $region28
        $region27: #{cnn_forward.1} parent=11 // pred_region
          _
        $region28: #{cnn_forward.1} parent=11 // pred_fallthru
          _
        // Predicated region
        $region29: #{cnn_forward.1} parent=11 // pred_check
          %p309 = pneg %p151
        $region30: #{cnn_forward.1} parent=11 // pred_check_branch
          %311 = sbr.rel (%p309) target = $region32
        $region31: #{cnn_forward.1} parent=11 // pred_region
          _
        $region32: #{cnn_forward.1} parent=11 // pred_fallthru
          _
        // Predicated region
        $region33: #{cnn_forward.1} parent=11 // pred_check
          %p312 = pneg %p172
        $region34: #{cnn_forward.1} parent=11 // pred_check_branch
          %314 = sbr.rel (%p312) target = $region36
        $region35: #{cnn_forward.1} parent=11 // pred_region
          _
        $region36: #{cnn_forward.1} parent=11 // pred_fallthru
          _
        // Predicated region
        $region37: #{cnn_forward.1} parent=11 // pred_check
          %p315 = pneg %p193
        $region38: #{cnn_forward.1} parent=11 // pred_check_branch
          %317 = sbr.rel (%p315) target = $region40
        $region39: #{cnn_forward.1} parent=11 // pred_region
          _
        $region40: #{cnn_forward.1} parent=11 // pred_fallthru
          _
        // Predicated region
        $region41: #{cnn_forward.1} parent=11 // pred_check
          %p318 = pneg %p214
        $region42: #{cnn_forward.1} parent=11 // pred_check_branch
          %320 = sbr.rel (%p318) target = $region44
        $region43: #{cnn_forward.1} parent=11 // pred_region
          _
        $region44: #{cnn_forward.1} parent=11 // pred_fallthru
          _
        // Predicated region
        $region45: #{cnn_forward.1} parent=11 // pred_check
          %p321 = pneg %p235
        $region46: #{cnn_forward.1} parent=11 // pred_check_branch
          %323 = sbr.rel (%p321) target = $region48
        $region47: #{cnn_forward.1} parent=11 // pred_region
          _
        $region48: #{cnn_forward.1} parent=11 // pred_fallthru
          _
        // Predicated region
        $region49: #{cnn_forward.1} parent=11 // pred_check
          %p324 = pneg %p256
        $region50: #{cnn_forward.1} parent=11 // pred_check_branch
          %326 = sbr.rel (%p324) target = $region52
        $region51: #{cnn_forward.1} parent=11 // pred_region
          _
        $region52: #{cnn_forward.1} parent=11 // pred_fallthru
          _
      $region12: #{cnn_forward.1} parent=5 // pred_fallthru
        _
      %p327 = scmp.lt.s32.totalorder %s20, 2
      // Predicated region
      $region53: #{cnn_forward.1} parent=5 // pred_check
        %p328 = pneg %p327
      $region54: #{cnn_forward.1} parent=5 // pred_check_branch
        %330 = sbr.rel (%p328) target = $region56
      $region55: #{cnn_forward.1} parent=5 // pred_region
        // Predicated region
        $region57: #{cnn_forward.1} parent=55 // pred_check
          %p331 = pneg %p40
        $region58: #{cnn_forward.1} parent=55 // pred_check_branch
          %333 = sbr.rel (%p331) target = $region60
        $region59: #{cnn_forward.1} parent=55 // pred_region
          %s334 = smul.u32 28, %s20
          %p335 = scmp.lt.s32.totalorder %s334, 55
          %s336 = scalar_select %p335, %s334, 55
          %s337 = smul.addr %s336, 8
          %s338 = scalar_lea.vmem %s0, %s337
          %s339 = smul.u32 28, %s20
        $region60: #{cnn_forward.1} parent=55 // pred_fallthru
          _
      $region56: #{cnn_forward.1} parent=5 // pred_fallthru
        _
      %p340 = scmp.le.s32.totalorder 1, %s20
      %p341 = scmp.lt.s32.totalorder %s20, 3
      %p342 = pnand %p340, %p341
      %p343 = pneg %p342
      // Predicated region
      $region61: #{cnn_forward.1} parent=5 // pred_check
        _
      $region62: #{cnn_forward.1} parent=5 // pred_check_branch
        %345 = sbr.rel (%p342) target = $region64
      $region63: #{cnn_forward.1} parent=5 // pred_region
        %s346 = ssub.s32 %s20, 1
        %s347 = smul.u32 28, %s25
        %p348 = scmp.lt.s32.totalorder %s347, 55
        %s349 = scalar_select %p348, %s347, 55
        %s350 = smul.addr %s349, 8
        %s351 = scalar_lea.vmem %s0, %s350
        %p352 = pneg %p46
        %p353 = pneg %p43
        %p354 = pneg %p67
        %p355 = pneg %p64
        %p356 = pneg %p88
        %p357 = pneg %p85
        %p358 = pneg %p109
        %p359 = pneg %p106
        %p360 = pneg %p130
        %p361 = pneg %p127
        %p362 = pneg %p151
        %p363 = pneg %p148
        %p364 = pneg %p172
        %p365 = pneg %p169
        %p366 = pneg %p193
        %p367 = pneg %p190
        %p368 = pneg %p214
        %p369 = pneg %p211
        %p370 = pneg %p235
        %p371 = pneg %p232
        %p372 = pneg %p256
        %p373 = pneg %p253
        %p374 = pneg %p282
        %p375 = pneg %p279
        %s376 = sand.u32 %s269, 1
        %s377 = scalar_lea.sflag [#allocation3], %s376
        %s378 = sand.u32 %s269, 1
        %s379 = smul.addr %s378, 8
        %s380 = scalar_lea.vmem [#allocation2], %s379
        %s381 = smul.u32 28, %s25
        %p382 = scmp.lt.s32.totalorder %s381, 55
        %s383 = scalar_select %p382, %s381, 55
        %s384 = smul.addr %s383, 8
        %s385 = scalar_lea.vmem %s0, %s384
        %s386 = smul.u32 28, %s25
        %v387 = vld [vmem:[%s385] sm:$0xff]
        %v388 = vld [vmem:[%s385 + $0x8] sm:$0xff]
        %v389 = vld [vmem:[%s385 + $0x10] sm:$0xff]
        %v390 = vld [vmem:[%s385 + $0x18] sm:$0xff]
        %v391 = vld [vmem:[%s385 + $0x20] sm:$0xff]
        %v392 = vld [vmem:[%s385 + $0x28] sm:$0xff]
        %v393 = vld [vmem:[%s385 + $0x30] sm:$0xff]
        %v394 = vld [vmem:[%s385 + $0x38] sm:$0xff]
        %v395 = vld [vmem:[%s385 + $0x40] sm:$0xff]
        %v396 = vld [vmem:[%s385 + $0x48] sm:$0xff]
        %v397 = vld [vmem:[%s385 + $0x50] sm:$0xff]
        %v398 = vld [vmem:[%s385 + $0x58] sm:$0xff]
        %v399 = vld [vmem:[%s385 + $0x60] sm:$0xff]
        %v400 = vld [vmem:[%s385 + $0x68] sm:$0xff]
        %v401 = vld [vmem:[%s385 + $0x70] sm:$0xff]
        %v402 = vld [vmem:[%s385 + $0x78] sm:$0xff]
        %v403 = vld [vmem:[%s385 + $0x80] sm:$0xff]
        %v404 = vld [vmem:[%s385 + $0x88] sm:$0xff]
        %v405 = vld [vmem:[%s385 + $0x90] sm:$0xff]
        %v406 = vld [vmem:[%s385 + $0x98] sm:$0xff]
        %v407 = vld [vmem:[%s385 + $0xa0] sm:$0xff]
        %v408 = vld [vmem:[%s385 + $0xa8] sm:$0xff]
        %v409 = vld [vmem:[%s385 + $0xb0] sm:$0xff]
        %v410 = vld [vmem:[%s385 + $0xb8] sm:$0xff]
        %v411 = vld [vmem:[%s385 + $0xc0] sm:$0xff]
        %v412 = vld [vmem:[%s385 + $0xc8] sm:$0xff]
        %v413 = vld [vmem:[%s385 + $0xd0] sm:$0xff]
        %v414 = vld [vmem:[%s385 + $0xd8] sm:$0xff]
        %v415 = vld [vmem:[%s1] sm:$0xff]
        %v416 = vld [vmem:[%s1 + $0x8] sm:$0xff]
        %v417 = vld [vmem:[%s1 + $0x10] sm:$0xff]
        %v418 = vld [vmem:[%s1 + $0x18] sm:$0xff]
        %v419 = vld [vmem:[%s1 + $0x20] sm:$0xff]
        %v420 = vld [vmem:[%s1 + $0x28] sm:$0xff]
        %v421 = vld [vmem:[%s1 + $0x30] sm:$0xff]
        %v422 = vld [vmem:[%s1 + $0x38] sm:$0xff]
        %v423 = vld [vmem:[%s1 + $0x40] sm:$0xff]
        %v424 = vld [vmem:[%s1 + $0x48] sm:$0xff]
        %v425 = vld [vmem:[%s1 + $0x50] sm:$0xff]
        %v426 = vld [vmem:[%s1 + $0x58] sm:$0xff]
        %v427 = vld [vmem:[%s1 + $0x60] sm:$0xf]
        %v428 = vld [vmem:[%s1 + $0x68] sm:$0xf]
        %v429 = vld [vmem:[%s1 + $0x70] sm:$0xf]
        %v430 = vld [vmem:[%s1 + $0x78] sm:$0xf]
        %s431 = scalar_lea.vmem %s1, 128
        %v432 = vld [vmem:[%s431] sm:$0xff]
        %v433 = vld [vmem:[%s431 + $0x8] sm:$0xff]
        %v434 = vld [vmem:[%s431 + $0x10] sm:$0xff]
        %v435 = vld [vmem:[%s431 + $0x18] sm:$0xff]
        %v436 = vld [vmem:[%s431 + $0x20] sm:$0xff]
        %v437 = vld [vmem:[%s431 + $0x28] sm:$0xff]
        %v438 = vld [vmem:[%s431 + $0x30] sm:$0xff]
        %v439 = vld [vmem:[%s431 + $0x38] sm:$0xff]
        %v440 = vld [vmem:[%s431 + $0x40] sm:$0xff]
        %v441 = vld [vmem:[%s431 + $0x48] sm:$0xff]
        %v442 = vld [vmem:[%s431 + $0x50] sm:$0xff]
        %v443 = vld [vmem:[%s431 + $0x58] sm:$0xff]
        %v444 = vld [vmem:[%s431 + $0x60] sm:$0xf]
        %v445 = vld [vmem:[%s431 + $0x68] sm:$0xf]
        %v446 = vld [vmem:[%s431 + $0x70] sm:$0xf]
        %v447 = vld [vmem:[%s431 + $0x78] sm:$0xf]
        %vm476 = vcmask 1046528
        %v477 = vrot.slane %v387, 1
        %v478 = vrot.slane %v388, 1
        %v479 = vsel %vm476, %v477, %v478
        %v480 = vrot.slane %v389, 1
        %v481 = vsel %vm476, %v478, %v480
        %v482 = vrot.slane %v390, 1
        %v483 = vsel %vm476, %v480, %v482
        %v484 = vrot.slane %v391, 1
        %v485 = vsel %vm476, %v482, %v484
        %v486 = vrot.slane %v392, 1
        %v487 = vsel %vm476, %v484, %v486
        %v488 = vrot.slane %v393, 1
        %v489 = vsel %vm476, %v486, %v488
        %v490 = vrot.slane %v394, 1
        %v491 = vsel %vm476, %v488, %v490
        %v492 = vrot.slane %v395, 1
        %v493 = vsel %vm476, %v490, %v492
        %v494 = vrot.slane %v396, 1
        %v495 = vsel %vm476, %v492, %v494
        %v496 = vrot.slane %v397, 1
        %v497 = vsel %vm476, %v494, %v496
        %v498 = vrot.slane %v398, 1
        %v499 = vsel %vm476, %v496, %v498
        %v500 = vrot.slane %v399, 1
        %v501 = vsel %vm476, %v498, %v500
        %v502 = vrot.slane %v400, 1
        %v503 = vsel %vm476, %v500, %v502
        %v504 = vrot.slane %v401, 1
        %v505 = vsel %vm476, %v502, %v504
        %v506 = vrot.slane %v402, 1
        %v507 = vsel %vm476, %v504, %v506
        %v508 = vrot.slane %v403, 1
        %v509 = vsel %vm476, %v506, %v508
        %v510 = vrot.slane %v404, 1
        %v511 = vsel %vm476, %v508, %v510
        %v512 = vrot.slane %v405, 1
        %v513 = vsel %vm476, %v510, %v512
        %v514 = vrot.slane %v406, 1
        %v515 = vsel %vm476, %v512, %v514
        %v516 = vrot.slane %v407, 1
        %v517 = vsel %vm476, %v514, %v516
        %v518 = vrot.slane %v408, 1
        %v519 = vsel %vm476, %v516, %v518
        %v520 = vrot.slane %v409, 1
        %v521 = vsel %vm476, %v518, %v520
        %v522 = vrot.slane %v410, 1
        %v523 = vsel %vm476, %v520, %v522
        %v524 = vrot.slane %v411, 1
        %v525 = vsel %vm476, %v522, %v524
        %v526 = vrot.slane %v412, 1
        %v527 = vsel %vm476, %v524, %v526
        %v528 = vrot.slane %v413, 1
        %v529 = vsel %vm476, %v526, %v528
        %v530 = vrot.slane %v414, 1
        %v531 = vsel %vm476, %v528, %v530
        %vm532 = vcmask 228352
        %v533 = vsel %vm532, %v479, 0
        %v535 = vsel %vm532, %v481, 0
        %v537 = vsel %vm532, %v483, 0
        %v539 = vsel %vm532, %v485, 0
        %v541 = vsel %vm532, %v487, 0
        %v543 = vsel %vm532, %v489, 0
        %v545 = vsel %vm532, %v491, 0
        %v547 = vsel %vm532, %v493, 0
        %v549 = vsel %vm532, %v495, 0
        %v551 = vsel %vm532, %v497, 0
        %v553 = vsel %vm532, %v499, 0
        %v555 = vsel %vm532, %v501, 0
        %v557 = vsel %vm532, %v503, 0
        %v559 = vsel %vm532, %v505, 0
        %v561 = vsel %vm532, %v507, 0
        %v563 = vsel %vm532, %v509, 0
        %v565 = vsel %vm532, %v511, 0
        %v567 = vsel %vm532, %v513, 0
        %v569 = vsel %vm532, %v515, 0
        %v571 = vsel %vm532, %v517, 0
        %v573 = vsel %vm532, %v519, 0
        %v575 = vsel %vm532, %v521, 0
        %v577 = vsel %vm532, %v523, 0
        %v579 = vsel %vm532, %v525, 0
        %v581 = vsel %vm532, %v527, 0
        %v583 = vsel %vm532, %v529, 0
        %v585 = vsel %vm532, %v531, 0
        %v587 = vsel %vm532, %v530, 0
        %vm589 = vcmask 1043456
        %v591 = vsel %vm589, %v444, 0
        %v594 = vsel %vm589, %v445, 0
        %v597 = vsel %vm589, %v446, 0
        %v600 = vsel %vm589, %v447, 0
        %602 = vmatprep.subr.mxu0 0.0
        %603 = vmatpush1.msra.mxu0 0.0
        %604 = vmatprep.subr.mxu0 0.0
        %605 = vmatpush1.msra.mxu0 0.0
        %606 = vmatprep.subr.mxu0 0.0
        %607 = vmatpush1.msra.mxu0 0.0
        %608 = vmatprep.subr.mxu0 0.0
        %609 = vmatpush1.msra.mxu0 0.0
        %610 = vmatprep.subr.mxu0 0.0
        %611 = vmatpush1.msra.mxu0 0.0
        %612 = vmatprep.subr.mxu0 0.0
        %613 = vmatpush1.msra.mxu0 0.0
        %614 = vmatprep.subr.mxu0 0.0
        %615 = vmatpush1.msra.mxu0 0.0
        %616 = vmatprep.subr.mxu0 0.0
        %617 = vmatpush1.msra.mxu0 0.0
        %618 = vmatprep.subr.mxu0 0.0
        %619 = vmatpush1.msra.mxu0 0.0
        %620 = vmatprep.subr.mxu0 0.0
        %621 = vmatpush1.msra.mxu0 0.0
        %622 = vmatprep.subr.mxu0 0.0
        %623 = vmatpush1.msra.mxu0 0.0
        %624 = vmatprep.subr.mxu0 0.0
        %625 = vmatpush1.msra.mxu0 0.0
        %626 = vmatprep.subr.mxu0 %v594
        %627 = vmatpush1.msra.mxu0 %v591
        %628 = vmatprep.subr.mxu0 %v441
        %629 = vmatpush1.msra.mxu0 %v440
        %630 = vmatprep.subr.mxu0 %v437
        %631 = vmatpush1.msra.mxu0 %v436
        %632 = vmatprep.subr.mxu0 %v433
        %633 = vmatpush1.msra.mxu0 %v432
        %634 = vmatprep.subr.mxu0 0.0
        %635 = vmatpush2.msra.mxu0 0.0
        %636 = vmatprep.subr.mxu0 0.0
        %637 = vmatpush2.msra.mxu0 0.0
        %638 = vmatprep.subr.mxu0 0.0
        %639 = vmatpush2.msra.mxu0 0.0
        %640 = vmatprep.subr.mxu0 0.0
        %641 = vmatpush2.msra.mxu0 0.0
        %642 = vmatprep.subr.mxu0 0.0
        %643 = vmatpush2.msra.mxu0 0.0
        %644 = vmatprep.subr.mxu0 0.0
        %645 = vmatpush2.msra.mxu0 0.0
        %646 = vmatprep.subr.mxu0 0.0
        %647 = vmatpush2.msra.mxu0 0.0
        %648 = vmatprep.subr.mxu0 0.0
        %649 = vmatpush2.msra.mxu0 0.0
        %650 = vmatprep.subr.mxu0 0.0
        %651 = vmatpush2.msra.mxu0 0.0
        %652 = vmatprep.subr.mxu0 0.0
        %653 = vmatpush2.msra.mxu0 0.0
        %654 = vmatprep.subr.mxu0 0.0
        %655 = vmatpush2.msra.mxu0 0.0
        %656 = vmatprep.subr.mxu0 0.0
        %657 = vmatpush2.msra.mxu0 0.0
        %658 = vmatprep.subr.mxu0 0.0
        %659 = vmatpush2.msra.mxu0 0.0
        %660 = vmatprep.subr.mxu0 0.0
        %661 = vmatpush2.msra.mxu0 0.0
        %662 = vmatprep.subr.mxu0 0.0
        %663 = vmatpush2.msra.mxu0 0.0
        %664 = vmatprep.subr.mxu0 0.0
        %665 = vmatpush2.msra.mxu0 0.0
        %666 = vmatprep.mubr.f32.mxu0 0.0
        %667 = vmatmul.mubr.f32.gmra.mxu0 %v533
        %v668 = vpop.f32.mrf.mxu0
        %v669 = vadd.f32 0.0, %v668
        %v670 = vpop.f32.mrf.mxu0
        %v671 = vadd.f32 0.0, %v670
        %672 = vmatprep.mubr.f32.mxu0 0.0
        %673 = vmatmul.mubr.f32.gmra.mxu0 %v535
        %v674 = vpop.f32.mrf.mxu0
        %v675 = vadd.f32 0.0, %v674
        %v676 = vpop.f32.mrf.mxu0
        %v677 = vadd.f32 0.0, %v676
        %678 = vmatprep.mubr.f32.mxu0 0.0
        %679 = vmatmul.mubr.f32.gmra.mxu0 %v537
        %v680 = vpop.f32.mrf.mxu0
        %v681 = vadd.f32 0.0, %v680
        %v682 = vpop.f32.mrf.mxu0
        %v683 = vadd.f32 0.0, %v682
        %684 = vmatprep.mubr.f32.mxu0 0.0
        %685 = vmatmul.mubr.f32.gmra.mxu0 %v539
        %v686 = vpop.f32.mrf.mxu0
        %v687 = vadd.f32 0.0, %v686
        %v688 = vpop.f32.mrf.mxu0
        %v689 = vadd.f32 0.0, %v688
        %690 = vmatprep.mubr.f32.mxu0 0.0
        %691 = vmatmul.mubr.f32.gmra.mxu0 %v541
        %v692 = vpop.f32.mrf.mxu0
        %v693 = vadd.f32 0.0, %v692
        %v694 = vpop.f32.mrf.mxu0
        %v695 = vadd.f32 0.0, %v694
        %696 = vmatprep.mubr.f32.mxu0 0.0
        %697 = vmatmul.mubr.f32.gmra.mxu0 %v543
        %v698 = vpop.f32.mrf.mxu0
        %v699 = vadd.f32 0.0, %v698
        %v700 = vpop.f32.mrf.mxu0
        %v701 = vadd.f32 0.0, %v700
        %702 = vmatprep.mubr.f32.mxu0 0.0
        %703 = vmatmul.mubr.f32.gmra.mxu0 %v545
        %v704 = vpop.f32.mrf.mxu0
        %v705 = vadd.f32 0.0, %v704
        %v706 = vpop.f32.mrf.mxu0
        %v707 = vadd.f32 0.0, %v706
        %708 = vmatprep.mubr.f32.mxu0 0.0
        %709 = vmatmul.mubr.f32.gmra.mxu0 %v547
        %v710 = vpop.f32.mrf.mxu0
        %v711 = vadd.f32 0.0, %v710
        %v712 = vpop.f32.mrf.mxu0
        %v713 = vadd.f32 0.0, %v712
        %714 = vmatprep.mubr.f32.mxu0 0.0
        %715 = vmatmul.mubr.f32.gmra.mxu0 %v549
        %v716 = vpop.f32.mrf.mxu0
        %v717 = vadd.f32 0.0, %v716
        %v718 = vpop.f32.mrf.mxu0
        %v719 = vadd.f32 0.0, %v718
        %720 = vmatprep.mubr.f32.mxu0 0.0
        %721 = vmatmul.mubr.f32.gmra.mxu0 %v551
        %v722 = vpop.f32.mrf.mxu0
        %v723 = vadd.f32 0.0, %v722
        %v724 = vpop.f32.mrf.mxu0
        %v725 = vadd.f32 0.0, %v724
        %726 = vmatprep.mubr.f32.mxu0 0.0
        %727 = vmatmul.mubr.f32.gmra.mxu0 %v553
        %v728 = vpop.f32.mrf.mxu0
        %v729 = vadd.f32 0.0, %v728
        %v730 = vpop.f32.mrf.mxu0
        %v731 = vadd.f32 0.0, %v730
        %732 = vmatprep.mubr.f32.mxu0 0.0
        %733 = vmatmul.mubr.f32.gmra.mxu0 %v555
        %v734 = vpop.f32.mrf.mxu0
        %v735 = vadd.f32 0.0, %v734
        %v736 = vpop.f32.mrf.mxu0
        %v737 = vadd.f32 0.0, %v736
        %738 = vmatprep.mubr.f32.mxu0 0.0
        %739 = vmatmul.mubr.f32.gmra.mxu0 %v557
        %v740 = vpop.f32.mrf.mxu0
        %v741 = vadd.f32 0.0, %v740
        %v742 = vpop.f32.mrf.mxu0
        %v743 = vadd.f32 0.0, %v742
        %744 = vmatprep.mubr.f32.mxu0 0.0
        %745 = vmatmul.mubr.f32.gmra.mxu0 %v559
        %v746 = vpop.f32.mrf.mxu0
        %v747 = vadd.f32 0.0, %v746
        %v748 = vpop.f32.mrf.mxu0
        %v749 = vadd.f32 0.0, %v748
        %750 = vmatprep.mubr.f32.mxu0 0.0
        %751 = vmatmul.mubr.f32.gmra.mxu0 %v561
        %v752 = vpop.f32.mrf.mxu0
        %v753 = vadd.f32 0.0, %v752
        %v754 = vpop.f32.mrf.mxu0
        %v755 = vadd.f32 0.0, %v754
        %756 = vmatprep.mubr.f32.mxu0 0.0
        %757 = vmatmul.mubr.f32.gmra.mxu0 %v563
        %v758 = vpop.f32.mrf.mxu0
        %v759 = vadd.f32 0.0, %v758
        %v760 = vpop.f32.mrf.mxu0
        %v761 = vadd.f32 0.0, %v760
        %762 = vmatprep.mubr.f32.mxu0 0.0
        %763 = vmatmul.mubr.f32.gmra.mxu0 %v565
        %v764 = vpop.f32.mrf.mxu0
        %v765 = vadd.f32 0.0, %v764
        %v766 = vpop.f32.mrf.mxu0
        %v767 = vadd.f32 0.0, %v766
        %768 = vmatprep.mubr.f32.mxu0 0.0
        %769 = vmatmul.mubr.f32.gmra.mxu0 %v567
        %v770 = vpop.f32.mrf.mxu0
        %v771 = vadd.f32 0.0, %v770
        %v772 = vpop.f32.mrf.mxu0
        %v773 = vadd.f32 0.0, %v772
        %774 = vmatprep.mubr.f32.mxu0 0.0
        %775 = vmatmul.mubr.f32.gmra.mxu0 %v569
        %v776 = vpop.f32.mrf.mxu0
        %v777 = vadd.f32 0.0, %v776
        %v778 = vpop.f32.mrf.mxu0
        %v779 = vadd.f32 0.0, %v778
        %780 = vmatprep.mubr.f32.mxu0 0.0
        %781 = vmatmul.mubr.f32.gmra.mxu0 %v571
        %v782 = vpop.f32.mrf.mxu0
        %v783 = vadd.f32 0.0, %v782
        %v784 = vpop.f32.mrf.mxu0
        %v785 = vadd.f32 0.0, %v784
        %786 = vmatprep.mubr.f32.mxu0 0.0
        %787 = vmatmul.mubr.f32.gmra.mxu0 %v573
        %v788 = vpop.f32.mrf.mxu0
        %v789 = vadd.f32 0.0, %v788
        %v790 = vpop.f32.mrf.mxu0
        %v791 = vadd.f32 0.0, %v790
        %792 = vmatprep.mubr.f32.mxu0 0.0
        %793 = vmatmul.mubr.f32.gmra.mxu0 %v575
        %v794 = vpop.f32.mrf.mxu0
        %v795 = vadd.f32 0.0, %v794
        %v796 = vpop.f32.mrf.mxu0
        %v797 = vadd.f32 0.0, %v796
        %798 = vmatprep.mubr.f32.mxu0 0.0
        %799 = vmatmul.mubr.f32.gmra.mxu0 %v577
        %v800 = vpop.f32.mrf.mxu0
        %v801 = vadd.f32 0.0, %v800
        %v802 = vpop.f32.mrf.mxu0
        %v803 = vadd.f32 0.0, %v802
        %804 = vmatprep.mubr.f32.mxu0 0.0
        %805 = vmatmul.mubr.f32.gmra.mxu0 %v579
        %v806 = vpop.f32.mrf.mxu0
        %v807 = vadd.f32 0.0, %v806
        %v808 = vpop.f32.mrf.mxu0
        %v809 = vadd.f32 0.0, %v808
        %810 = vmatprep.mubr.f32.mxu0 0.0
        %811 = vmatmul.mubr.f32.gmra.mxu0 %v581
        %v812 = vpop.f32.mrf.mxu0
        %v813 = vadd.f32 0.0, %v812
        %v814 = vpop.f32.mrf.mxu0
        %v815 = vadd.f32 0.0, %v814
        %816 = vmatprep.mubr.f32.mxu0 0.0
        %817 = vmatmul.mubr.f32.gmra.mxu0 %v583
        %v818 = vpop.f32.mrf.mxu0
        %v819 = vadd.f32 0.0, %v818
        %v820 = vpop.f32.mrf.mxu0
        %v821 = vadd.f32 0.0, %v820
        %822 = vmatprep.mubr.f32.mxu0 0.0
        %823 = vmatmul.mubr.f32.gmra.mxu0 %v585
        %v824 = vpop.f32.mrf.mxu0
        %v825 = vadd.f32 0.0, %v824
        %v826 = vpop.f32.mrf.mxu0
        %v827 = vadd.f32 0.0, %v826
        %828 = vmatprep.mubr.f32.mxu0 0.0
        %829 = vmatmul.mubr.f32.gmra.mxu0 %v587
        %v830 = vpop.f32.mrf.mxu0
        %v831 = vadd.f32 0.0, %v830
        %v832 = vpop.f32.mrf.mxu0
        %v833 = vadd.f32 0.0, %v832
        %834 = vdwg.mxu0
        %835 = vmatprep.subr.mxu0 0.0
        %836 = vmatpush1.msra.mxu0 0.0
        %837 = vmatprep.subr.mxu0 0.0
        %838 = vmatpush1.msra.mxu0 0.0
        %839 = vmatprep.subr.mxu0 0.0
        %840 = vmatpush1.msra.mxu0 0.0
        %841 = vmatprep.subr.mxu0 0.0
        %842 = vmatpush1.msra.mxu0 0.0
        %843 = vmatprep.subr.mxu0 0.0
        %844 = vmatpush1.msra.mxu0 0.0
        %845 = vmatprep.subr.mxu0 0.0
        %846 = vmatpush1.msra.mxu0 0.0
        %847 = vmatprep.subr.mxu0 0.0
        %848 = vmatpush1.msra.mxu0 0.0
        %849 = vmatprep.subr.mxu0 0.0
        %850 = vmatpush1.msra.mxu0 0.0
        %851 = vmatprep.subr.mxu0 0.0
        %852 = vmatpush1.msra.mxu0 0.0
        %853 = vmatprep.subr.mxu0 0.0
        %854 = vmatpush1.msra.mxu0 0.0
        %855 = vmatprep.subr.mxu0 0.0
        %856 = vmatpush1.msra.mxu0 0.0
        %857 = vmatprep.subr.mxu0 0.0
        %858 = vmatpush1.msra.mxu0 0.0
        %859 = vmatprep.subr.mxu0 %v600
        %860 = vmatpush1.msra.mxu0 %v597
        %861 = vmatprep.subr.mxu0 %v443
        %862 = vmatpush1.msra.mxu0 %v442
        %863 = vmatprep.subr.mxu0 %v439
        %864 = vmatpush1.msra.mxu0 %v438
        %865 = vmatprep.subr.mxu0 %v435
        %866 = vmatpush1.msra.mxu0 %v434
        %867 = vmatprep.subr.mxu0 0.0
        %868 = vmatpush2.msra.mxu0 0.0
        %869 = vmatprep.subr.mxu0 0.0
        %870 = vmatpush2.msra.mxu0 0.0
        %871 = vmatprep.subr.mxu0 0.0
        %872 = vmatpush2.msra.mxu0 0.0
        %873 = vmatprep.subr.mxu0 0.0
        %874 = vmatpush2.msra.mxu0 0.0
        %875 = vmatprep.subr.mxu0 0.0
        %876 = vmatpush2.msra.mxu0 0.0
        %877 = vmatprep.subr.mxu0 0.0
        %878 = vmatpush2.msra.mxu0 0.0
        %879 = vmatprep.subr.mxu0 0.0
        %880 = vmatpush2.msra.mxu0 0.0
        %881 = vmatprep.subr.mxu0 0.0
        %882 = vmatpush2.msra.mxu0 0.0
        %883 = vmatprep.subr.mxu0 0.0
        %884 = vmatpush2.msra.mxu0 0.0
        %885 = vmatprep.subr.mxu0 0.0
        %886 = vmatpush2.msra.mxu0 0.0
        %887 = vmatprep.subr.mxu0 0.0
        %888 = vmatpush2.msra.mxu0 0.0
        %889 = vmatprep.subr.mxu0 0.0
        %890 = vmatpush2.msra.mxu0 0.0
        %891 = vmatprep.subr.mxu0 0.0
        %892 = vmatpush2.msra.mxu0 0.0
        %893 = vmatprep.subr.mxu0 0.0
        %894 = vmatpush2.msra.mxu0 0.0
        %895 = vmatprep.subr.mxu0 0.0
        %896 = vmatpush2.msra.mxu0 0.0
        %897 = vmatprep.subr.mxu0 0.0
        %898 = vmatpush2.msra.mxu0 0.0
        %899 = vmatprep.mubr.f32.mxu0 0.0
        %900 = vmatmul.mubr.f32.gmra.mxu0 %v533
        %v901 = vpop.f32.mrf.mxu0
        %v902 = vadd.f32 0.0, %v901
        %v903 = vpop.f32.mrf.mxu0
        %v904 = vadd.f32 0.0, %v903
        %905 = vmatprep.mubr.f32.mxu0 0.0
        %906 = vmatmul.mubr.f32.gmra.mxu0 %v535
        %v907 = vpop.f32.mrf.mxu0
        %v908 = vadd.f32 0.0, %v907
        %v909 = vpop.f32.mrf.mxu0
        %v910 = vadd.f32 0.0, %v909
        %911 = vmatprep.mubr.f32.mxu0 0.0
        %912 = vmatmul.mubr.f32.gmra.mxu0 %v537
        %v913 = vpop.f32.mrf.mxu0
        %v914 = vadd.f32 0.0, %v913
        %v915 = vpop.f32.mrf.mxu0
        %v916 = vadd.f32 0.0, %v915
        %917 = vmatprep.mubr.f32.mxu0 0.0
        %918 = vmatmul.mubr.f32.gmra.mxu0 %v539
        %v919 = vpop.f32.mrf.mxu0
        %v920 = vadd.f32 0.0, %v919
        %v921 = vpop.f32.mrf.mxu0
        %v922 = vadd.f32 0.0, %v921
        %923 = vmatprep.mubr.f32.mxu0 0.0
        %924 = vmatmul.mubr.f32.gmra.mxu0 %v541
        %v925 = vpop.f32.mrf.mxu0
        %v926 = vadd.f32 0.0, %v925
        %v927 = vpop.f32.mrf.mxu0
        %v928 = vadd.f32 0.0, %v927
        %929 = vmatprep.mubr.f32.mxu0 0.0
        %930 = vmatmul.mubr.f32.gmra.mxu0 %v543
        %v931 = vpop.f32.mrf.mxu0
        %v932 = vadd.f32 0.0, %v931
        %v933 = vpop.f32.mrf.mxu0
        %v934 = vadd.f32 0.0, %v933
        %935 = vmatprep.mubr.f32.mxu0 0.0
        %936 = vmatmul.mubr.f32.gmra.mxu0 %v545
        %v937 = vpop.f32.mrf.mxu0
        %v938 = vadd.f32 0.0, %v937
        %v939 = vpop.f32.mrf.mxu0
        %v940 = vadd.f32 0.0, %v939
        %941 = vmatprep.mubr.f32.mxu0 0.0
        %942 = vmatmul.mubr.f32.gmra.mxu0 %v547
        %v943 = vpop.f32.mrf.mxu0
        %v944 = vadd.f32 0.0, %v943
        %v945 = vpop.f32.mrf.mxu0
        %v946 = vadd.f32 0.0, %v945
        %947 = vmatprep.mubr.f32.mxu0 0.0
        %948 = vmatmul.mubr.f32.gmra.mxu0 %v549
        %v949 = vpop.f32.mrf.mxu0
        %v950 = vadd.f32 0.0, %v949
        %v951 = vpop.f32.mrf.mxu0
        %v952 = vadd.f32 0.0, %v951
        %953 = vmatprep.mubr.f32.mxu0 0.0
        %954 = vmatmul.mubr.f32.gmra.mxu0 %v551
        %v955 = vpop.f32.mrf.mxu0
        %v956 = vadd.f32 0.0, %v955
        %v957 = vpop.f32.mrf.mxu0
        %v958 = vadd.f32 0.0, %v957
        %959 = vmatprep.mubr.f32.mxu0 0.0
        %960 = vmatmul.mubr.f32.gmra.mxu0 %v553
        %v961 = vpop.f32.mrf.mxu0
        %v962 = vadd.f32 0.0, %v961
        %v963 = vpop.f32.mrf.mxu0
        %v964 = vadd.f32 0.0, %v963
        %965 = vmatprep.mubr.f32.mxu0 0.0
        %966 = vmatmul.mubr.f32.gmra.mxu0 %v555
        %v967 = vpop.f32.mrf.mxu0
        %v968 = vadd.f32 0.0, %v967
        %v969 = vpop.f32.mrf.mxu0
        %v970 = vadd.f32 0.0, %v969
        %971 = vmatprep.mubr.f32.mxu0 0.0
        %972 = vmatmul.mubr.f32.gmra.mxu0 %v557
        %v973 = vpop.f32.mrf.mxu0
        %v974 = vadd.f32 0.0, %v973
        %v975 = vpop.f32.mrf.mxu0
        %v976 = vadd.f32 0.0, %v975
        %977 = vmatprep.mubr.f32.mxu0 0.0
        %978 = vmatmul.mubr.f32.gmra.mxu0 %v559
        %v979 = vpop.f32.mrf.mxu0
        %v980 = vadd.f32 0.0, %v979
        %v981 = vpop.f32.mrf.mxu0
        %v982 = vadd.f32 0.0, %v981
        %983 = vmatprep.mubr.f32.mxu0 0.0
        %984 = vmatmul.mubr.f32.gmra.mxu0 %v561
        %v985 = vpop.f32.mrf.mxu0
        %v986 = vadd.f32 0.0, %v985
        %v987 = vpop.f32.mrf.mxu0
        %v988 = vadd.f32 0.0, %v987
        %989 = vmatprep.mubr.f32.mxu0 0.0
        %990 = vmatmul.mubr.f32.gmra.mxu0 %v563
        %v991 = vpop.f32.mrf.mxu0
        %v992 = vadd.f32 0.0, %v991
        %v993 = vpop.f32.mrf.mxu0
        %v994 = vadd.f32 0.0, %v993
        %995 = vmatprep.mubr.f32.mxu0 0.0
        %996 = vmatmul.mubr.f32.gmra.mxu0 %v565
        %v997 = vpop.f32.mrf.mxu0
        %v998 = vadd.f32 0.0, %v997
        %v999 = vpop.f32.mrf.mxu0
        %v1000 = vadd.f32 0.0, %v999
        %1001 = vmatprep.mubr.f32.mxu0 0.0
        %1002 = vmatmul.mubr.f32.gmra.mxu0 %v567
        %v1003 = vpop.f32.mrf.mxu0
        %v1004 = vadd.f32 0.0, %v1003
        %v1005 = vpop.f32.mrf.mxu0
        %v1006 = vadd.f32 0.0, %v1005
        %1007 = vmatprep.mubr.f32.mxu0 0.0
        %1008 = vmatmul.mubr.f32.gmra.mxu0 %v569
        %v1009 = vpop.f32.mrf.mxu0
        %v1010 = vadd.f32 0.0, %v1009
        %v1011 = vpop.f32.mrf.mxu0
        %v1012 = vadd.f32 0.0, %v1011
        %1013 = vmatprep.mubr.f32.mxu0 0.0
        %1014 = vmatmul.mubr.f32.gmra.mxu0 %v571
        %v1015 = vpop.f32.mrf.mxu0
        %v1016 = vadd.f32 0.0, %v1015
        %v1017 = vpop.f32.mrf.mxu0
        %v1018 = vadd.f32 0.0, %v1017
        %1019 = vmatprep.mubr.f32.mxu0 0.0
        %1020 = vmatmul.mubr.f32.gmra.mxu0 %v573
        %v1021 = vpop.f32.mrf.mxu0
        %v1022 = vadd.f32 0.0, %v1021
        %v1023 = vpop.f32.mrf.mxu0
        %v1024 = vadd.f32 0.0, %v1023
        %1025 = vmatprep.mubr.f32.mxu0 0.0
        %1026 = vmatmul.mubr.f32.gmra.mxu0 %v575
        %v1027 = vpop.f32.mrf.mxu0
        %v1028 = vadd.f32 0.0, %v1027
        %v1029 = vpop.f32.mrf.mxu0
        %v1030 = vadd.f32 0.0, %v1029
        %1031 = vmatprep.mubr.f32.mxu0 0.0
        %1032 = vmatmul.mubr.f32.gmra.mxu0 %v577
        %v1033 = vpop.f32.mrf.mxu0
        %v1034 = vadd.f32 0.0, %v1033
        %v1035 = vpop.f32.mrf.mxu0
        %v1036 = vadd.f32 0.0, %v1035
        %1037 = vmatprep.mubr.f32.mxu0 0.0
        %1038 = vmatmul.mubr.f32.gmra.mxu0 %v579
        %v1039 = vpop.f32.mrf.mxu0
        %v1040 = vadd.f32 0.0, %v1039
        %v1041 = vpop.f32.mrf.mxu0
        %v1042 = vadd.f32 0.0, %v1041
        %1043 = vmatprep.mubr.f32.mxu0 0.0
        %1044 = vmatmul.mubr.f32.gmra.mxu0 %v581
        %v1045 = vpop.f32.mrf.mxu0
        %v1046 = vadd.f32 0.0, %v1045
        %v1047 = vpop.f32.mrf.mxu0
        %v1048 = vadd.f32 0.0, %v1047
        %1049 = vmatprep.mubr.f32.mxu0 0.0
        %1050 = vmatmul.mubr.f32.gmra.mxu0 %v583
        %v1051 = vpop.f32.mrf.mxu0
        %v1052 = vadd.f32 0.0, %v1051
        %v1053 = vpop.f32.mrf.mxu0
        %v1054 = vadd.f32 0.0, %v1053
        %1055 = vmatprep.mubr.f32.mxu0 0.0
        %1056 = vmatmul.mubr.f32.gmra.mxu0 %v585
        %v1057 = vpop.f32.mrf.mxu0
        %v1058 = vadd.f32 0.0, %v1057
        %v1059 = vpop.f32.mrf.mxu0
        %v1060 = vadd.f32 0.0, %v1059
        %1061 = vmatprep.mubr.f32.mxu0 0.0
        %1062 = vmatmul.mubr.f32.gmra.mxu0 %v587
        %v1063 = vpop.f32.mrf.mxu0
        %v1064 = vadd.f32 0.0, %v1063
        %v1065 = vpop.f32.mrf.mxu0
        %v1066 = vadd.f32 0.0, %v1065
        %1067 = vdwg.mxu0
        %v1068 = vsel %vm532, %v387, 0
        %v1070 = vsel %vm532, %v388, 0
        %v1072 = vsel %vm532, %v389, 0
        %v1074 = vsel %vm532, %v390, 0
        %v1076 = vsel %vm532, %v391, 0
        %v1078 = vsel %vm532, %v392, 0
        %v1080 = vsel %vm532, %v393, 0
        %v1082 = vsel %vm532, %v394, 0
        %v1084 = vsel %vm532, %v395, 0
        %v1086 = vsel %vm532, %v396, 0
        %v1088 = vsel %vm532, %v397, 0
        %v1090 = vsel %vm532, %v398, 0
        %v1092 = vsel %vm532, %v399, 0
        %v1094 = vsel %vm532, %v400, 0
        %v1096 = vsel %vm532, %v401, 0
        %v1098 = vsel %vm532, %v402, 0
        %v1100 = vsel %vm532, %v403, 0
        %v1102 = vsel %vm532, %v404, 0
        %v1104 = vsel %vm532, %v405, 0
        %v1106 = vsel %vm532, %v406, 0
        %v1108 = vsel %vm532, %v407, 0
        %v1110 = vsel %vm532, %v408, 0
        %v1112 = vsel %vm532, %v409, 0
        %v1114 = vsel %vm532, %v410, 0
        %v1116 = vsel %vm532, %v411, 0
        %v1118 = vsel %vm532, %v412, 0
        %v1120 = vsel %vm532, %v413, 0
        %v1122 = vsel %vm532, %v414, 0
        %v1125 = vsel %vm589, %v427, 0
        %v1128 = vsel %vm589, %v428, 0
        %v1131 = vsel %vm589, %v429, 0
        %v1134 = vsel %vm589, %v430, 0
        %1136 = vmatprep.subr.mxu0 0.0
        %1137 = vmatpush1.msra.mxu0 0.0
        %1138 = vmatprep.subr.mxu0 0.0
        %1139 = vmatpush1.msra.mxu0 0.0
        %1140 = vmatprep.subr.mxu0 0.0
        %1141 = vmatpush1.msra.mxu0 0.0
        %1142 = vmatprep.subr.mxu0 0.0
        %1143 = vmatpush1.msra.mxu0 0.0
        %1144 = vmatprep.subr.mxu0 0.0
        %1145 = vmatpush1.msra.mxu0 0.0
        %1146 = vmatprep.subr.mxu0 0.0
        %1147 = vmatpush1.msra.mxu0 0.0
        %1148 = vmatprep.subr.mxu0 0.0
        %1149 = vmatpush1.msra.mxu0 0.0
        %1150 = vmatprep.subr.mxu0 0.0
        %1151 = vmatpush1.msra.mxu0 0.0
        %1152 = vmatprep.subr.mxu0 0.0
        %1153 = vmatpush1.msra.mxu0 0.0
        %1154 = vmatprep.subr.mxu0 0.0
        %1155 = vmatpush1.msra.mxu0 0.0
        %1156 = vmatprep.subr.mxu0 0.0
        %1157 = vmatpush1.msra.mxu0 0.0
        %1158 = vmatprep.subr.mxu0 0.0
        %1159 = vmatpush1.msra.mxu0 0.0
        %1160 = vmatprep.subr.mxu0 %v1128
        %1161 = vmatpush1.msra.mxu0 %v1125
        %1162 = vmatprep.subr.mxu0 %v424
        %1163 = vmatpush1.msra.mxu0 %v423
        %1164 = vmatprep.subr.mxu0 %v420
        %1165 = vmatpush1.msra.mxu0 %v419
        %1166 = vmatprep.subr.mxu0 %v416
        %1167 = vmatpush1.msra.mxu0 %v415
        %1168 = vmatprep.subr.mxu0 0.0
        %1169 = vmatpush2.msra.mxu0 0.0
        %1170 = vmatprep.subr.mxu0 0.0
        %1171 = vmatpush2.msra.mxu0 0.0
        %1172 = vmatprep.subr.mxu0 0.0
        %1173 = vmatpush2.msra.mxu0 0.0
        %1174 = vmatprep.subr.mxu0 0.0
        %1175 = vmatpush2.msra.mxu0 0.0
        %1176 = vmatprep.subr.mxu0 0.0
        %1177 = vmatpush2.msra.mxu0 0.0
        %1178 = vmatprep.subr.mxu0 0.0
        %1179 = vmatpush2.msra.mxu0 0.0
        %1180 = vmatprep.subr.mxu0 0.0
        %1181 = vmatpush2.msra.mxu0 0.0
        %1182 = vmatprep.subr.mxu0 0.0
        %1183 = vmatpush2.msra.mxu0 0.0
        %1184 = vmatprep.subr.mxu0 0.0
        %1185 = vmatpush2.msra.mxu0 0.0
        %1186 = vmatprep.subr.mxu0 0.0
        %1187 = vmatpush2.msra.mxu0 0.0
        %1188 = vmatprep.subr.mxu0 0.0
        %1189 = vmatpush2.msra.mxu0 0.0
        %1190 = vmatprep.subr.mxu0 0.0
        %1191 = vmatpush2.msra.mxu0 0.0
        %1192 = vmatprep.subr.mxu0 0.0
        %1193 = vmatpush2.msra.mxu0 0.0
        %1194 = vmatprep.subr.mxu0 0.0
        %1195 = vmatpush2.msra.mxu0 0.0
        %1196 = vmatprep.subr.mxu0 0.0
        %1197 = vmatpush2.msra.mxu0 0.0
        %1198 = vmatprep.subr.mxu0 0.0
        %1199 = vmatpush2.msra.mxu0 0.0
        %1200 = vmatprep.mubr.f32.mxu0 0.0
        %1201 = vmatmul.mubr.f32.gmra.mxu0 %v1068
        %v1202 = vpop.f32.mrf.mxu0
        %v1203 = vadd.f32 %v669, %v1202
        %v1204 = vpop.f32.mrf.mxu0
        %v1205 = vadd.f32 %v671, %v1204
        %1206 = vmatprep.mubr.f32.mxu0 0.0
        %1207 = vmatmul.mubr.f32.gmra.mxu0 %v1070
        %v1208 = vpop.f32.mrf.mxu0
        %v1209 = vadd.f32 %v675, %v1208
        %v1210 = vpop.f32.mrf.mxu0
        %v1211 = vadd.f32 %v677, %v1210
        %1212 = vmatprep.mubr.f32.mxu0 0.0
        %1213 = vmatmul.mubr.f32.gmra.mxu0 %v1072
        %v1214 = vpop.f32.mrf.mxu0
        %v1215 = vadd.f32 %v681, %v1214
        %v1216 = vpop.f32.mrf.mxu0
        %v1217 = vadd.f32 %v683, %v1216
        %1218 = vmatprep.mubr.f32.mxu0 0.0
        %1219 = vmatmul.mubr.f32.gmra.mxu0 %v1074
        %v1220 = vpop.f32.mrf.mxu0
        %v1221 = vadd.f32 %v687, %v1220
        %v1222 = vpop.f32.mrf.mxu0
        %v1223 = vadd.f32 %v689, %v1222
        %1224 = vmatprep.mubr.f32.mxu0 0.0
        %1225 = vmatmul.mubr.f32.gmra.mxu0 %v1076
        %v1226 = vpop.f32.mrf.mxu0
        %v1227 = vadd.f32 %v693, %v1226
        %v1228 = vpop.f32.mrf.mxu0
        %v1229 = vadd.f32 %v695, %v1228
        %1230 = vmatprep.mubr.f32.mxu0 0.0
        %1231 = vmatmul.mubr.f32.gmra.mxu0 %v1078
        %v1232 = vpop.f32.mrf.mxu0
        %v1233 = vadd.f32 %v699, %v1232
        %v1234 = vpop.f32.mrf.mxu0
        %v1235 = vadd.f32 %v701, %v1234
        %1236 = vmatprep.mubr.f32.mxu0 0.0
        %1237 = vmatmul.mubr.f32.gmra.mxu0 %v1080
        %v1238 = vpop.f32.mrf.mxu0
        %v1239 = vadd.f32 %v705, %v1238
        %v1240 = vpop.f32.mrf.mxu0
        %v1241 = vadd.f32 %v707, %v1240
        %1242 = vmatprep.mubr.f32.mxu0 0.0
        %1243 = vmatmul.mubr.f32.gmra.mxu0 %v1082
        %v1244 = vpop.f32.mrf.mxu0
        %v1245 = vadd.f32 %v711, %v1244
        %v1246 = vpop.f32.mrf.mxu0
        %v1247 = vadd.f32 %v713, %v1246
        %1248 = vmatprep.mubr.f32.mxu0 0.0
        %1249 = vmatmul.mubr.f32.gmra.mxu0 %v1084
        %v1250 = vpop.f32.mrf.mxu0
        %v1251 = vadd.f32 %v717, %v1250
        %v1252 = vpop.f32.mrf.mxu0
        %v1253 = vadd.f32 %v719, %v1252
        %1254 = vmatprep.mubr.f32.mxu0 0.0
        %1255 = vmatmul.mubr.f32.gmra.mxu0 %v1086
        %v1256 = vpop.f32.mrf.mxu0
        %v1257 = vadd.f32 %v723, %v1256
        %v1258 = vpop.f32.mrf.mxu0
        %v1259 = vadd.f32 %v725, %v1258
        %1260 = vmatprep.mubr.f32.mxu0 0.0
        %1261 = vmatmul.mubr.f32.gmra.mxu0 %v1088
        %v1262 = vpop.f32.mrf.mxu0
        %v1263 = vadd.f32 %v729, %v1262
        %v1264 = vpop.f32.mrf.mxu0
        %v1265 = vadd.f32 %v731, %v1264
        %1266 = vmatprep.mubr.f32.mxu0 0.0
        %1267 = vmatmul.mubr.f32.gmra.mxu0 %v1090
        %v1268 = vpop.f32.mrf.mxu0
        %v1269 = vadd.f32 %v735, %v1268
        %v1270 = vpop.f32.mrf.mxu0
        %v1271 = vadd.f32 %v737, %v1270
        %1272 = vmatprep.mubr.f32.mxu0 0.0
        %1273 = vmatmul.mubr.f32.gmra.mxu0 %v1092
        %v1274 = vpop.f32.mrf.mxu0
        %v1275 = vadd.f32 %v741, %v1274
        %v1276 = vpop.f32.mrf.mxu0
        %v1277 = vadd.f32 %v743, %v1276
        %1278 = vmatprep.mubr.f32.mxu0 0.0
        %1279 = vmatmul.mubr.f32.gmra.mxu0 %v1094
        %v1280 = vpop.f32.mrf.mxu0
        %v1281 = vadd.f32 %v747, %v1280
        %v1282 = vpop.f32.mrf.mxu0
        %v1283 = vadd.f32 %v749, %v1282
        %1284 = vmatprep.mubr.f32.mxu0 0.0
        %1285 = vmatmul.mubr.f32.gmra.mxu0 %v1096
        %v1286 = vpop.f32.mrf.mxu0
        %v1287 = vadd.f32 %v753, %v1286
        %v1288 = vpop.f32.mrf.mxu0
        %v1289 = vadd.f32 %v755, %v1288
        %1290 = vmatprep.mubr.f32.mxu0 0.0
        %1291 = vmatmul.mubr.f32.gmra.mxu0 %v1098
        %v1292 = vpop.f32.mrf.mxu0
        %v1293 = vadd.f32 %v759, %v1292
        %v1294 = vpop.f32.mrf.mxu0
        %v1295 = vadd.f32 %v761, %v1294
        %1296 = vmatprep.mubr.f32.mxu0 0.0
        %1297 = vmatmul.mubr.f32.gmra.mxu0 %v1100
        %v1298 = vpop.f32.mrf.mxu0
        %v1299 = vadd.f32 %v765, %v1298
        %v1300 = vpop.f32.mrf.mxu0
        %v1301 = vadd.f32 %v767, %v1300
        %1302 = vmatprep.mubr.f32.mxu0 0.0
        %1303 = vmatmul.mubr.f32.gmra.mxu0 %v1102
        %v1304 = vpop.f32.mrf.mxu0
        %v1305 = vadd.f32 %v771, %v1304
        %v1306 = vpop.f32.mrf.mxu0
        %v1307 = vadd.f32 %v773, %v1306
        %1308 = vmatprep.mubr.f32.mxu0 0.0
        %1309 = vmatmul.mubr.f32.gmra.mxu0 %v1104
        %v1310 = vpop.f32.mrf.mxu0
        %v1311 = vadd.f32 %v777, %v1310
        %v1312 = vpop.f32.mrf.mxu0
        %v1313 = vadd.f32 %v779, %v1312
        %1314 = vmatprep.mubr.f32.mxu0 0.0
        %1315 = vmatmul.mubr.f32.gmra.mxu0 %v1106
        %v1316 = vpop.f32.mrf.mxu0
        %v1317 = vadd.f32 %v783, %v1316
        %v1318 = vpop.f32.mrf.mxu0
        %v1319 = vadd.f32 %v785, %v1318
        %1320 = vmatprep.mubr.f32.mxu0 0.0
        %1321 = vmatmul.mubr.f32.gmra.mxu0 %v1108
        %v1322 = vpop.f32.mrf.mxu0
        %v1323 = vadd.f32 %v789, %v1322
        %v1324 = vpop.f32.mrf.mxu0
        %v1325 = vadd.f32 %v791, %v1324
        %1326 = vmatprep.mubr.f32.mxu0 0.0
        %1327 = vmatmul.mubr.f32.gmra.mxu0 %v1110
        %v1328 = vpop.f32.mrf.mxu0
        %v1329 = vadd.f32 %v795, %v1328
        %v1330 = vpop.f32.mrf.mxu0
        %v1331 = vadd.f32 %v797, %v1330
        %1332 = vmatprep.mubr.f32.mxu0 0.0
        %1333 = vmatmul.mubr.f32.gmra.mxu0 %v1112
        %v1334 = vpop.f32.mrf.mxu0
        %v1335 = vadd.f32 %v801, %v1334
        %v1336 = vpop.f32.mrf.mxu0
        %v1337 = vadd.f32 %v803, %v1336
        %1338 = vmatprep.mubr.f32.mxu0 0.0
        %1339 = vmatmul.mubr.f32.gmra.mxu0 %v1114
        %v1340 = vpop.f32.mrf.mxu0
        %v1341 = vadd.f32 %v807, %v1340
        %v1342 = vpop.f32.mrf.mxu0
        %v1343 = vadd.f32 %v809, %v1342
        %1344 = vmatprep.mubr.f32.mxu0 0.0
        %1345 = vmatmul.mubr.f32.gmra.mxu0 %v1116
        %v1346 = vpop.f32.mrf.mxu0
        %v1347 = vadd.f32 %v813, %v1346
        %v1348 = vpop.f32.mrf.mxu0
        %v1349 = vadd.f32 %v815, %v1348
        %1350 = vmatprep.mubr.f32.mxu0 0.0
        %1351 = vmatmul.mubr.f32.gmra.mxu0 %v1118
        %v1352 = vpop.f32.mrf.mxu0
        %v1353 = vadd.f32 %v819, %v1352
        %v1354 = vpop.f32.mrf.mxu0
        %v1355 = vadd.f32 %v821, %v1354
        %1356 = vmatprep.mubr.f32.mxu0 0.0
        %1357 = vmatmul.mubr.f32.gmra.mxu0 %v1120
        %v1358 = vpop.f32.mrf.mxu0
        %v1359 = vadd.f32 %v825, %v1358
        %v1360 = vpop.f32.mrf.mxu0
        %v1361 = vadd.f32 %v827, %v1360
        %1362 = vmatprep.mubr.f32.mxu0 0.0
        %1363 = vmatmul.mubr.f32.gmra.mxu0 %v1122
        %v1364 = vpop.f32.mrf.mxu0
        %v1365 = vadd.f32 %v831, %v1364
        %v1366 = vpop.f32.mrf.mxu0
        %v1367 = vadd.f32 %v833, %v1366
        %1368 = vdwg.mxu0
        %1369 = vmatprep.subr.mxu0 0.0
        %1370 = vmatpush1.msra.mxu0 0.0
        %1371 = vmatprep.subr.mxu0 0.0
        %1372 = vmatpush1.msra.mxu0 0.0
        %1373 = vmatprep.subr.mxu0 0.0
        %1374 = vmatpush1.msra.mxu0 0.0
        %1375 = vmatprep.subr.mxu0 0.0
        %1376 = vmatpush1.msra.mxu0 0.0
        %1377 = vmatprep.subr.mxu0 0.0
        %1378 = vmatpush1.msra.mxu0 0.0
        %1379 = vmatprep.subr.mxu0 0.0
        %1380 = vmatpush1.msra.mxu0 0.0
        %1381 = vmatprep.subr.mxu0 0.0
        %1382 = vmatpush1.msra.mxu0 0.0
        %1383 = vmatprep.subr.mxu0 0.0
        %1384 = vmatpush1.msra.mxu0 0.0
        %1385 = vmatprep.subr.mxu0 0.0
        %1386 = vmatpush1.msra.mxu0 0.0
        %1387 = vmatprep.subr.mxu0 0.0
        %1388 = vmatpush1.msra.mxu0 0.0
        %1389 = vmatprep.subr.mxu0 0.0
        %1390 = vmatpush1.msra.mxu0 0.0
        %1391 = vmatprep.subr.mxu0 0.0
        %1392 = vmatpush1.msra.mxu0 0.0
        %1393 = vmatprep.subr.mxu0 %v1134
        %1394 = vmatpush1.msra.mxu0 %v1131
        %1395 = vmatprep.subr.mxu0 %v426
        %1396 = vmatpush1.msra.mxu0 %v425
        %1397 = vmatprep.subr.mxu0 %v422
        %1398 = vmatpush1.msra.mxu0 %v421
        %1399 = vmatprep.subr.mxu0 %v418
        %1400 = vmatpush1.msra.mxu0 %v417
        %1401 = vmatprep.subr.mxu0 0.0
        %1402 = vmatpush2.msra.mxu0 0.0
        %1403 = vmatprep.subr.mxu0 0.0
        %1404 = vmatpush2.msra.mxu0 0.0
        %1405 = vmatprep.subr.mxu0 0.0
        %1406 = vmatpush2.msra.mxu0 0.0
        %1407 = vmatprep.subr.mxu0 0.0
        %1408 = vmatpush2.msra.mxu0 0.0
        %1409 = vmatprep.subr.mxu0 0.0
        %1410 = vmatpush2.msra.mxu0 0.0
        %1411 = vmatprep.subr.mxu0 0.0
        %1412 = vmatpush2.msra.mxu0 0.0
        %1413 = vmatprep.subr.mxu0 0.0
        %1414 = vmatpush2.msra.mxu0 0.0
        %1415 = vmatprep.subr.mxu0 0.0
        %1416 = vmatpush2.msra.mxu0 0.0
        %1417 = vmatprep.subr.mxu0 0.0
        %1418 = vmatpush2.msra.mxu0 0.0
        %1419 = vmatprep.subr.mxu0 0.0
        %1420 = vmatpush2.msra.mxu0 0.0
        %1421 = vmatprep.subr.mxu0 0.0
        %1422 = vmatpush2.msra.mxu0 0.0
        %1423 = vmatprep.subr.mxu0 0.0
        %1424 = vmatpush2.msra.mxu0 0.0
        %1425 = vmatprep.subr.mxu0 0.0
        %1426 = vmatpush2.msra.mxu0 0.0
        %1427 = vmatprep.subr.mxu0 0.0
        %1428 = vmatpush2.msra.mxu0 0.0
        %1429 = vmatprep.subr.mxu0 0.0
        %1430 = vmatpush2.msra.mxu0 0.0
        %1431 = vmatprep.subr.mxu0 0.0
        %1432 = vmatpush2.msra.mxu0 0.0
        %1433 = vmatprep.mubr.f32.mxu0 0.0
        %1434 = vmatmul.mubr.f32.gmra.mxu0 %v1068
        %v1435 = vpop.f32.mrf.mxu0
        %v1436 = vadd.f32 %v902, %v1435
        %v1437 = vpop.f32.mrf.mxu0
        %v1438 = vadd.f32 %v904, %v1437
        %1439 = vmatprep.mubr.f32.mxu0 0.0
        %1440 = vmatmul.mubr.f32.gmra.mxu0 %v1070
        %v1441 = vpop.f32.mrf.mxu0
        %v1442 = vadd.f32 %v908, %v1441
        %v1443 = vpop.f32.mrf.mxu0
        %v1444 = vadd.f32 %v910, %v1443
        %1445 = vmatprep.mubr.f32.mxu0 0.0
        %1446 = vmatmul.mubr.f32.gmra.mxu0 %v1072
        %v1447 = vpop.f32.mrf.mxu0
        %v1448 = vadd.f32 %v914, %v1447
        %v1449 = vpop.f32.mrf.mxu0
        %v1450 = vadd.f32 %v916, %v1449
        %1451 = vmatprep.mubr.f32.mxu0 0.0
        %1452 = vmatmul.mubr.f32.gmra.mxu0 %v1074
        %v1453 = vpop.f32.mrf.mxu0
        %v1454 = vadd.f32 %v920, %v1453
        %v1455 = vpop.f32.mrf.mxu0
        %v1456 = vadd.f32 %v922, %v1455
        %1457 = vmatprep.mubr.f32.mxu0 0.0
        %1458 = vmatmul.mubr.f32.gmra.mxu0 %v1076
        %v1459 = vpop.f32.mrf.mxu0
        %v1460 = vadd.f32 %v926, %v1459
        %v1461 = vpop.f32.mrf.mxu0
        %v1462 = vadd.f32 %v928, %v1461
        %1463 = vmatprep.mubr.f32.mxu0 0.0
        %1464 = vmatmul.mubr.f32.gmra.mxu0 %v1078
        %v1465 = vpop.f32.mrf.mxu0
        %v1466 = vadd.f32 %v932, %v1465
        %v1467 = vpop.f32.mrf.mxu0
        %v1468 = vadd.f32 %v934, %v1467
        %1469 = vmatprep.mubr.f32.mxu0 0.0
        %1470 = vmatmul.mubr.f32.gmra.mxu0 %v1080
        %v1471 = vpop.f32.mrf.mxu0
        %v1472 = vadd.f32 %v938, %v1471
        %v1473 = vpop.f32.mrf.mxu0
        %v1474 = vadd.f32 %v940, %v1473
        %1475 = vmatprep.mubr.f32.mxu0 0.0
        %1476 = vmatmul.mubr.f32.gmra.mxu0 %v1082
        %v1477 = vpop.f32.mrf.mxu0
        %v1478 = vadd.f32 %v944, %v1477
        %v1479 = vpop.f32.mrf.mxu0
        %v1480 = vadd.f32 %v946, %v1479
        %1481 = vmatprep.mubr.f32.mxu0 0.0
        %1482 = vmatmul.mubr.f32.gmra.mxu0 %v1084
        %v1483 = vpop.f32.mrf.mxu0
        %v1484 = vadd.f32 %v950, %v1483
        %v1485 = vpop.f32.mrf.mxu0
        %v1486 = vadd.f32 %v952, %v1485
        %1487 = vmatprep.mubr.f32.mxu0 0.0
        %1488 = vmatmul.mubr.f32.gmra.mxu0 %v1086
        %v1489 = vpop.f32.mrf.mxu0
        %v1490 = vadd.f32 %v956, %v1489
        %v1491 = vpop.f32.mrf.mxu0
        %v1492 = vadd.f32 %v958, %v1491
        %1493 = vmatprep.mubr.f32.mxu0 0.0
        %1494 = vmatmul.mubr.f32.gmra.mxu0 %v1088
        %v1495 = vpop.f32.mrf.mxu0
        %v1496 = vadd.f32 %v962, %v1495
        %v1497 = vpop.f32.mrf.mxu0
        %v1498 = vadd.f32 %v964, %v1497
        %1499 = vmatprep.mubr.f32.mxu0 0.0
        %1500 = vmatmul.mubr.f32.gmra.mxu0 %v1090
        %v1501 = vpop.f32.mrf.mxu0
        %v1502 = vadd.f32 %v968, %v1501
        %v1503 = vpop.f32.mrf.mxu0
        %v1504 = vadd.f32 %v970, %v1503
        %1505 = vmatprep.mubr.f32.mxu0 0.0
        %1506 = vmatmul.mubr.f32.gmra.mxu0 %v1092
        %v1507 = vpop.f32.mrf.mxu0
        %v1508 = vadd.f32 %v974, %v1507
        %v1509 = vpop.f32.mrf.mxu0
        %v1510 = vadd.f32 %v976, %v1509
        %1511 = vmatprep.mubr.f32.mxu0 0.0
        %1512 = vmatmul.mubr.f32.gmra.mxu0 %v1094
        %v1513 = vpop.f32.mrf.mxu0
        %v1514 = vadd.f32 %v980, %v1513
        %v1515 = vpop.f32.mrf.mxu0
        %v1516 = vadd.f32 %v982, %v1515
        %1517 = vmatprep.mubr.f32.mxu0 0.0
        %1518 = vmatmul.mubr.f32.gmra.mxu0 %v1096
        %v1519 = vpop.f32.mrf.mxu0
        %v1520 = vadd.f32 %v986, %v1519
        %v1521 = vpop.f32.mrf.mxu0
        %v1522 = vadd.f32 %v988, %v1521
        %1523 = vmatprep.mubr.f32.mxu0 0.0
        %1524 = vmatmul.mubr.f32.gmra.mxu0 %v1098
        %v1525 = vpop.f32.mrf.mxu0
        %v1526 = vadd.f32 %v992, %v1525
        %v1527 = vpop.f32.mrf.mxu0
        %v1528 = vadd.f32 %v994, %v1527
        %1529 = vmatprep.mubr.f32.mxu0 0.0
        %1530 = vmatmul.mubr.f32.gmra.mxu0 %v1100
        %v1531 = vpop.f32.mrf.mxu0
        %v1532 = vadd.f32 %v998, %v1531
        %v1533 = vpop.f32.mrf.mxu0
        %v1534 = vadd.f32 %v1000, %v1533
        %1535 = vmatprep.mubr.f32.mxu0 0.0
        %1536 = vmatmul.mubr.f32.gmra.mxu0 %v1102
        %v1537 = vpop.f32.mrf.mxu0
        %v1538 = vadd.f32 %v1004, %v1537
        %v1539 = vpop.f32.mrf.mxu0
        %v1540 = vadd.f32 %v1006, %v1539
        %1541 = vmatprep.mubr.f32.mxu0 0.0
        %1542 = vmatmul.mubr.f32.gmra.mxu0 %v1104
        %v1543 = vpop.f32.mrf.mxu0
        %v1544 = vadd.f32 %v1010, %v1543
        %v1545 = vpop.f32.mrf.mxu0
        %v1546 = vadd.f32 %v1012, %v1545
        %1547 = vmatprep.mubr.f32.mxu0 0.0
        %1548 = vmatmul.mubr.f32.gmra.mxu0 %v1106
        %v1549 = vpop.f32.mrf.mxu0
        %v1550 = vadd.f32 %v1016, %v1549
        %v1551 = vpop.f32.mrf.mxu0
        %v1552 = vadd.f32 %v1018, %v1551
        %1553 = vmatprep.mubr.f32.mxu0 0.0
        %1554 = vmatmul.mubr.f32.gmra.mxu0 %v1108
        %v1555 = vpop.f32.mrf.mxu0
        %v1556 = vadd.f32 %v1022, %v1555
        %v1557 = vpop.f32.mrf.mxu0
        %v1558 = vadd.f32 %v1024, %v1557
        %1559 = vmatprep.mubr.f32.mxu0 0.0
        %1560 = vmatmul.mubr.f32.gmra.mxu0 %v1110
        %v1561 = vpop.f32.mrf.mxu0
        %v1562 = vadd.f32 %v1028, %v1561
        %v1563 = vpop.f32.mrf.mxu0
        %v1564 = vadd.f32 %v1030, %v1563
        %1565 = vmatprep.mubr.f32.mxu0 0.0
        %1566 = vmatmul.mubr.f32.gmra.mxu0 %v1112
        %v1567 = vpop.f32.mrf.mxu0
        %v1568 = vadd.f32 %v1034, %v1567
        %v1569 = vpop.f32.mrf.mxu0
        %v1570 = vadd.f32 %v1036, %v1569
        %1571 = vmatprep.mubr.f32.mxu0 0.0
        %1572 = vmatmul.mubr.f32.gmra.mxu0 %v1114
        %v1573 = vpop.f32.mrf.mxu0
        %v1574 = vadd.f32 %v1040, %v1573
        %v1575 = vpop.f32.mrf.mxu0
        %v1576 = vadd.f32 %v1042, %v1575
        %1577 = vmatprep.mubr.f32.mxu0 0.0
        %1578 = vmatmul.mubr.f32.gmra.mxu0 %v1116
        %v1579 = vpop.f32.mrf.mxu0
        %v1580 = vadd.f32 %v1046, %v1579
        %v1581 = vpop.f32.mrf.mxu0
        %v1582 = vadd.f32 %v1048, %v1581
        %1583 = vmatprep.mubr.f32.mxu0 0.0
        %1584 = vmatmul.mubr.f32.gmra.mxu0 %v1118
        %v1585 = vpop.f32.mrf.mxu0
        %v1586 = vadd.f32 %v1052, %v1585
        %v1587 = vpop.f32.mrf.mxu0
        %v1588 = vadd.f32 %v1054, %v1587
        %1589 = vmatprep.mubr.f32.mxu0 0.0
        %1590 = vmatmul.mubr.f32.gmra.mxu0 %v1120
        %v1591 = vpop.f32.mrf.mxu0
        %v1592 = vadd.f32 %v1058, %v1591
        %v1593 = vpop.f32.mrf.mxu0
        %v1594 = vadd.f32 %v1060, %v1593
        %1595 = vmatprep.mubr.f32.mxu0 0.0
        %1596 = vmatmul.mubr.f32.gmra.mxu0 %v1122
        %v1597 = vpop.f32.mrf.mxu0
        %v1598 = vadd.f32 %v1064, %v1597
        %v1599 = vpop.f32.mrf.mxu0
        %v1600 = vadd.f32 %v1066, %v1599
        %1601 = vdwg.mxu0
        %s1602 = scalar_lea.vmem %s1, 256
        %v1603 = vld [vmem:[%s1602] sm:$0xff]
        %v1604 = vld [vmem:[%s1602 + $0x8] sm:$0xff]
        %v1605 = vld [vmem:[%s1602 + $0x10] sm:$0xff]
        %v1606 = vld [vmem:[%s1602 + $0x18] sm:$0xff]
        %v1607 = vld [vmem:[%s1602 + $0x20] sm:$0xff]
        %v1608 = vld [vmem:[%s1602 + $0x28] sm:$0xff]
        %v1609 = vld [vmem:[%s1602 + $0x30] sm:$0xff]
        %v1610 = vld [vmem:[%s1602 + $0x38] sm:$0xff]
        %v1611 = vld [vmem:[%s1602 + $0x40] sm:$0xff]
        %v1612 = vld [vmem:[%s1602 + $0x48] sm:$0xff]
        %v1613 = vld [vmem:[%s1602 + $0x50] sm:$0xff]
        %v1614 = vld [vmem:[%s1602 + $0x58] sm:$0xff]
        %v1615 = vld [vmem:[%s1602 + $0x60] sm:$0xf]
        %v1616 = vld [vmem:[%s1602 + $0x68] sm:$0xf]
        %v1617 = vld [vmem:[%s1602 + $0x70] sm:$0xf]
        %v1618 = vld [vmem:[%s1602 + $0x78] sm:$0xf]
        %vm1619 = vcmask 1045504
        %v1620 = vrot.slane %v387, 2
        %v1621 = vrot.slane %v388, 2
        %v1622 = vsel %vm1619, %v1620, %v1621
        %v1623 = vrot.slane %v389, 2
        %v1624 = vsel %vm1619, %v1621, %v1623
        %v1625 = vrot.slane %v390, 2
        %v1626 = vsel %vm1619, %v1623, %v1625
        %v1627 = vrot.slane %v391, 2
        %v1628 = vsel %vm1619, %v1625, %v1627
        %v1629 = vrot.slane %v392, 2
        %v1630 = vsel %vm1619, %v1627, %v1629
        %v1631 = vrot.slane %v393, 2
        %v1632 = vsel %vm1619, %v1629, %v1631
        %v1633 = vrot.slane %v394, 2
        %v1634 = vsel %vm1619, %v1631, %v1633
        %v1635 = vrot.slane %v395, 2
        %v1636 = vsel %vm1619, %v1633, %v1635
        %v1637 = vrot.slane %v396, 2
        %v1638 = vsel %vm1619, %v1635, %v1637
        %v1639 = vrot.slane %v397, 2
        %v1640 = vsel %vm1619, %v1637, %v1639
        %v1641 = vrot.slane %v398, 2
        %v1642 = vsel %vm1619, %v1639, %v1641
        %v1643 = vrot.slane %v399, 2
        %v1644 = vsel %vm1619, %v1641, %v1643
        %v1645 = vrot.slane %v400, 2
        %v1646 = vsel %vm1619, %v1643, %v1645
        %v1647 = vrot.slane %v401, 2
        %v1648 = vsel %vm1619, %v1645, %v1647
        %v1649 = vrot.slane %v402, 2
        %v1650 = vsel %vm1619, %v1647, %v1649
        %v1651 = vrot.slane %v403, 2
        %v1652 = vsel %vm1619, %v1649, %v1651
        %v1653 = vrot.slane %v404, 2
        %v1654 = vsel %vm1619, %v1651, %v1653
        %v1655 = vrot.slane %v405, 2
        %v1656 = vsel %vm1619, %v1653, %v1655
        %v1657 = vrot.slane %v406, 2
        %v1658 = vsel %vm1619, %v1655, %v1657
        %v1659 = vrot.slane %v407, 2
        %v1660 = vsel %vm1619, %v1657, %v1659
        %v1661 = vrot.slane %v408, 2
        %v1662 = vsel %vm1619, %v1659, %v1661
        %v1663 = vrot.slane %v409, 2
        %v1664 = vsel %vm1619, %v1661, %v1663
        %v1665 = vrot.slane %v410, 2
        %v1666 = vsel %vm1619, %v1663, %v1665
        %v1667 = vrot.slane %v411, 2
        %v1668 = vsel %vm1619, %v1665, %v1667
        %v1669 = vrot.slane %v412, 2
        %v1670 = vsel %vm1619, %v1667, %v1669
        %v1671 = vrot.slane %v413, 2
        %v1672 = vsel %vm1619, %v1669, %v1671
        %v1673 = vrot.slane %v414, 2
        %v1674 = vsel %vm1619, %v1671, %v1673
        %v1675 = vsel %vm532, %v1622, 0
        %v1677 = vsel %vm532, %v1624, 0
        %v1679 = vsel %vm532, %v1626, 0
        %v1681 = vsel %vm532, %v1628, 0
        %v1683 = vsel %vm532, %v1630, 0
        %v1685 = vsel %vm532, %v1632, 0
        %v1687 = vsel %vm532, %v1634, 0
        %v1689 = vsel %vm532, %v1636, 0
        %v1691 = vsel %vm532, %v1638, 0
        %v1693 = vsel %vm532, %v1640, 0
        %v1695 = vsel %vm532, %v1642, 0
        %v1697 = vsel %vm532, %v1644, 0
        %v1699 = vsel %vm532, %v1646, 0
        %v1701 = vsel %vm532, %v1648, 0
        %v1703 = vsel %vm532, %v1650, 0
        %v1705 = vsel %vm532, %v1652, 0
        %v1707 = vsel %vm532, %v1654, 0
        %v1709 = vsel %vm532, %v1656, 0
        %v1711 = vsel %vm532, %v1658, 0
        %v1713 = vsel %vm532, %v1660, 0
        %v1715 = vsel %vm532, %v1662, 0
        %v1717 = vsel %vm532, %v1664, 0
        %v1719 = vsel %vm532, %v1666, 0
        %v1721 = vsel %vm532, %v1668, 0
        %v1723 = vsel %vm532, %v1670, 0
        %v1725 = vsel %vm532, %v1672, 0
        %v1727 = vsel %vm532, %v1674, 0
        %v1729 = vsel %vm532, %v1673, 0
        %v1732 = vsel %vm589, %v1615, 0
        %v1735 = vsel %vm589, %v1616, 0
        %v1738 = vsel %vm589, %v1617, 0
        %v1741 = vsel %vm589, %v1618, 0
        %1743 = vmatprep.subr.mxu0 0.0
        %1744 = vmatpush1.msra.mxu0 0.0
        %1745 = vmatprep.subr.mxu0 0.0
        %1746 = vmatpush1.msra.mxu0 0.0
        %1747 = vmatprep.subr.mxu0 0.0
        %1748 = vmatpush1.msra.mxu0 0.0
        %1749 = vmatprep.subr.mxu0 0.0
        %1750 = vmatpush1.msra.mxu0 0.0
        %1751 = vmatprep.subr.mxu0 0.0
        %1752 = vmatpush1.msra.mxu0 0.0
        %1753 = vmatprep.subr.mxu0 0.0
        %1754 = vmatpush1.msra.mxu0 0.0
        %1755 = vmatprep.subr.mxu0 0.0
        %1756 = vmatpush1.msra.mxu0 0.0
        %1757 = vmatprep.subr.mxu0 0.0
        %1758 = vmatpush1.msra.mxu0 0.0
        %1759 = vmatprep.subr.mxu0 0.0
        %1760 = vmatpush1.msra.mxu0 0.0
        %1761 = vmatprep.subr.mxu0 0.0
        %1762 = vmatpush1.msra.mxu0 0.0
        %1763 = vmatprep.subr.mxu0 0.0
        %1764 = vmatpush1.msra.mxu0 0.0
        %1765 = vmatprep.subr.mxu0 0.0
        %1766 = vmatpush1.msra.mxu0 0.0
        %1767 = vmatprep.subr.mxu0 %v1735
        %1768 = vmatpush1.msra.mxu0 %v1732
        %1769 = vmatprep.subr.mxu0 %v1612
        %1770 = vmatpush1.msra.mxu0 %v1611
        %1771 = vmatprep.subr.mxu0 %v1608
        %1772 = vmatpush1.msra.mxu0 %v1607
        %1773 = vmatprep.subr.mxu0 %v1604
        %1774 = vmatpush1.msra.mxu0 %v1603
        %1775 = vmatprep.subr.mxu0 0.0
        %1776 = vmatpush2.msra.mxu0 0.0
        %1777 = vmatprep.subr.mxu0 0.0
        %1778 = vmatpush2.msra.mxu0 0.0
        %1779 = vmatprep.subr.mxu0 0.0
        %1780 = vmatpush2.msra.mxu0 0.0
        %1781 = vmatprep.subr.mxu0 0.0
        %1782 = vmatpush2.msra.mxu0 0.0
        %1783 = vmatprep.subr.mxu0 0.0
        %1784 = vmatpush2.msra.mxu0 0.0
        %1785 = vmatprep.subr.mxu0 0.0
        %1786 = vmatpush2.msra.mxu0 0.0
        %1787 = vmatprep.subr.mxu0 0.0
        %1788 = vmatpush2.msra.mxu0 0.0
        %1789 = vmatprep.subr.mxu0 0.0
        %1790 = vmatpush2.msra.mxu0 0.0
        %1791 = vmatprep.subr.mxu0 0.0
        %1792 = vmatpush2.msra.mxu0 0.0
        %1793 = vmatprep.subr.mxu0 0.0
        %1794 = vmatpush2.msra.mxu0 0.0
        %1795 = vmatprep.subr.mxu0 0.0
        %1796 = vmatpush2.msra.mxu0 0.0
        %1797 = vmatprep.subr.mxu0 0.0
        %1798 = vmatpush2.msra.mxu0 0.0
        %1799 = vmatprep.subr.mxu0 0.0
        %1800 = vmatpush2.msra.mxu0 0.0
        %1801 = vmatprep.subr.mxu0 0.0
        %1802 = vmatpush2.msra.mxu0 0.0
        %1803 = vmatprep.subr.mxu0 0.0
        %1804 = vmatpush2.msra.mxu0 0.0
        %1805 = vmatprep.subr.mxu0 0.0
        %1806 = vmatpush2.msra.mxu0 0.0
        %1807 = vmatprep.mubr.f32.mxu0 0.0
        %1808 = vmatmul.mubr.f32.gmra.mxu0 %v1675
        %v1809 = vpop.f32.mrf.mxu0
        %v1810 = vadd.f32 0.0, %v1809
        %v1811 = vpop.f32.mrf.mxu0
        %v1812 = vadd.f32 0.0, %v1811
        %1813 = vmatprep.mubr.f32.mxu0 0.0
        %1814 = vmatmul.mubr.f32.gmra.mxu0 %v1677
        %v1815 = vpop.f32.mrf.mxu0
        %v1816 = vadd.f32 0.0, %v1815
        %v1817 = vpop.f32.mrf.mxu0
        %v1818 = vadd.f32 0.0, %v1817
        %1819 = vmatprep.mubr.f32.mxu0 0.0
        %1820 = vmatmul.mubr.f32.gmra.mxu0 %v1679
        %v1821 = vpop.f32.mrf.mxu0
        %v1822 = vadd.f32 0.0, %v1821
        %v1823 = vpop.f32.mrf.mxu0
        %v1824 = vadd.f32 0.0, %v1823
        %1825 = vmatprep.mubr.f32.mxu0 0.0
        %1826 = vmatmul.mubr.f32.gmra.mxu0 %v1681
        %v1827 = vpop.f32.mrf.mxu0
        %v1828 = vadd.f32 0.0, %v1827
        %v1829 = vpop.f32.mrf.mxu0
        %v1830 = vadd.f32 0.0, %v1829
        %1831 = vmatprep.mubr.f32.mxu0 0.0
        %1832 = vmatmul.mubr.f32.gmra.mxu0 %v1683
        %v1833 = vpop.f32.mrf.mxu0
        %v1834 = vadd.f32 0.0, %v1833
        %v1835 = vpop.f32.mrf.mxu0
        %v1836 = vadd.f32 0.0, %v1835
        %1837 = vmatprep.mubr.f32.mxu0 0.0
        %1838 = vmatmul.mubr.f32.gmra.mxu0 %v1685
        %v1839 = vpop.f32.mrf.mxu0
        %v1840 = vadd.f32 0.0, %v1839
        %v1841 = vpop.f32.mrf.mxu0
        %v1842 = vadd.f32 0.0, %v1841
        %1843 = vmatprep.mubr.f32.mxu0 0.0
        %1844 = vmatmul.mubr.f32.gmra.mxu0 %v1687
        %v1845 = vpop.f32.mrf.mxu0
        %v1846 = vadd.f32 0.0, %v1845
        %v1847 = vpop.f32.mrf.mxu0
        %v1848 = vadd.f32 0.0, %v1847
        %1849 = vmatprep.mubr.f32.mxu0 0.0
        %1850 = vmatmul.mubr.f32.gmra.mxu0 %v1689
        %v1851 = vpop.f32.mrf.mxu0
        %v1852 = vadd.f32 0.0, %v1851
        %v1853 = vpop.f32.mrf.mxu0
        %v1854 = vadd.f32 0.0, %v1853
        %1855 = vmatprep.mubr.f32.mxu0 0.0
        %1856 = vmatmul.mubr.f32.gmra.mxu0 %v1691
        %v1857 = vpop.f32.mrf.mxu0
        %v1858 = vadd.f32 0.0, %v1857
        %v1859 = vpop.f32.mrf.mxu0
        %v1860 = vadd.f32 0.0, %v1859
        %1861 = vmatprep.mubr.f32.mxu0 0.0
        %1862 = vmatmul.mubr.f32.gmra.mxu0 %v1693
        %v1863 = vpop.f32.mrf.mxu0
        %v1864 = vadd.f32 0.0, %v1863
        %v1865 = vpop.f32.mrf.mxu0
        %v1866 = vadd.f32 0.0, %v1865
        %1867 = vmatprep.mubr.f32.mxu0 0.0
        %1868 = vmatmul.mubr.f32.gmra.mxu0 %v1695
        %v1869 = vpop.f32.mrf.mxu0
        %v1870 = vadd.f32 0.0, %v1869
        %v1871 = vpop.f32.mrf.mxu0
        %v1872 = vadd.f32 0.0, %v1871
        %1873 = vmatprep.mubr.f32.mxu0 0.0
        %1874 = vmatmul.mubr.f32.gmra.mxu0 %v1697
        %v1875 = vpop.f32.mrf.mxu0
        %v1876 = vadd.f32 0.0, %v1875
        %v1877 = vpop.f32.mrf.mxu0
        %v1878 = vadd.f32 0.0, %v1877
        %1879 = vmatprep.mubr.f32.mxu0 0.0
        %1880 = vmatmul.mubr.f32.gmra.mxu0 %v1699
        %v1881 = vpop.f32.mrf.mxu0
        %v1882 = vadd.f32 0.0, %v1881
        %v1883 = vpop.f32.mrf.mxu0
        %v1884 = vadd.f32 0.0, %v1883
        %1885 = vmatprep.mubr.f32.mxu0 0.0
        %1886 = vmatmul.mubr.f32.gmra.mxu0 %v1701
        %v1887 = vpop.f32.mrf.mxu0
        %v1888 = vadd.f32 0.0, %v1887
        %v1889 = vpop.f32.mrf.mxu0
        %v1890 = vadd.f32 0.0, %v1889
        %1891 = vmatprep.mubr.f32.mxu0 0.0
        %1892 = vmatmul.mubr.f32.gmra.mxu0 %v1703
        %v1893 = vpop.f32.mrf.mxu0
        %v1894 = vadd.f32 0.0, %v1893
        %v1895 = vpop.f32.mrf.mxu0
        %v1896 = vadd.f32 0.0, %v1895
        %1897 = vmatprep.mubr.f32.mxu0 0.0
        %1898 = vmatmul.mubr.f32.gmra.mxu0 %v1705
        %v1899 = vpop.f32.mrf.mxu0
        %v1900 = vadd.f32 0.0, %v1899
        %v1901 = vpop.f32.mrf.mxu0
        %v1902 = vadd.f32 0.0, %v1901
        %1903 = vmatprep.mubr.f32.mxu0 0.0
        %1904 = vmatmul.mubr.f32.gmra.mxu0 %v1707
        %v1905 = vpop.f32.mrf.mxu0
        %v1906 = vadd.f32 0.0, %v1905
        %v1907 = vpop.f32.mrf.mxu0
        %v1908 = vadd.f32 0.0, %v1907
        %1909 = vmatprep.mubr.f32.mxu0 0.0
        %1910 = vmatmul.mubr.f32.gmra.mxu0 %v1709
        %v1911 = vpop.f32.mrf.mxu0
        %v1912 = vadd.f32 0.0, %v1911
        %v1913 = vpop.f32.mrf.mxu0
        %v1914 = vadd.f32 0.0, %v1913
        %1915 = vmatprep.mubr.f32.mxu0 0.0
        %1916 = vmatmul.mubr.f32.gmra.mxu0 %v1711
        %v1917 = vpop.f32.mrf.mxu0
        %v1918 = vadd.f32 0.0, %v1917
        %v1919 = vpop.f32.mrf.mxu0
        %v1920 = vadd.f32 0.0, %v1919
        %1921 = vmatprep.mubr.f32.mxu0 0.0
        %1922 = vmatmul.mubr.f32.gmra.mxu0 %v1713
        %v1923 = vpop.f32.mrf.mxu0
        %v1924 = vadd.f32 0.0, %v1923
        %v1925 = vpop.f32.mrf.mxu0
        %v1926 = vadd.f32 0.0, %v1925
        %1927 = vmatprep.mubr.f32.mxu0 0.0
        %1928 = vmatmul.mubr.f32.gmra.mxu0 %v1715
        %v1929 = vpop.f32.mrf.mxu0
        %v1930 = vadd.f32 0.0, %v1929
        %v1931 = vpop.f32.mrf.mxu0
        %v1932 = vadd.f32 0.0, %v1931
        %1933 = vmatprep.mubr.f32.mxu0 0.0
        %1934 = vmatmul.mubr.f32.gmra.mxu0 %v1717
        %v1935 = vpop.f32.mrf.mxu0
        %v1936 = vadd.f32 0.0, %v1935
        %v1937 = vpop.f32.mrf.mxu0
        %v1938 = vadd.f32 0.0, %v1937
        %1939 = vmatprep.mubr.f32.mxu0 0.0
        %1940 = vmatmul.mubr.f32.gmra.mxu0 %v1719
        %v1941 = vpop.f32.mrf.mxu0
        %v1942 = vadd.f32 0.0, %v1941
        %v1943 = vpop.f32.mrf.mxu0
        %v1944 = vadd.f32 0.0, %v1943
        %1945 = vmatprep.mubr.f32.mxu0 0.0
        %1946 = vmatmul.mubr.f32.gmra.mxu0 %v1721
        %v1947 = vpop.f32.mrf.mxu0
        %v1948 = vadd.f32 0.0, %v1947
        %v1949 = vpop.f32.mrf.mxu0
        %v1950 = vadd.f32 0.0, %v1949
        %1951 = vmatprep.mubr.f32.mxu0 0.0
        %1952 = vmatmul.mubr.f32.gmra.mxu0 %v1723
        %v1953 = vpop.f32.mrf.mxu0
        %v1954 = vadd.f32 0.0, %v1953
        %v1955 = vpop.f32.mrf.mxu0
        %v1956 = vadd.f32 0.0, %v1955
        %1957 = vmatprep.mubr.f32.mxu0 0.0
        %1958 = vmatmul.mubr.f32.gmra.mxu0 %v1725
        %v1959 = vpop.f32.mrf.mxu0
        %v1960 = vadd.f32 0.0, %v1959
        %v1961 = vpop.f32.mrf.mxu0
        %v1962 = vadd.f32 0.0, %v1961
        %1963 = vmatprep.mubr.f32.mxu0 0.0
        %1964 = vmatmul.mubr.f32.gmra.mxu0 %v1727
        %v1965 = vpop.f32.mrf.mxu0
        %v1966 = vadd.f32 0.0, %v1965
        %v1967 = vpop.f32.mrf.mxu0
        %v1968 = vadd.f32 0.0, %v1967
        %1969 = vmatprep.mubr.f32.mxu0 0.0
        %1970 = vmatmul.mubr.f32.gmra.mxu0 %v1729
        %v1971 = vpop.f32.mrf.mxu0
        %v1972 = vadd.f32 0.0, %v1971
        %v1973 = vpop.f32.mrf.mxu0
        %v1974 = vadd.f32 0.0, %v1973
        %1975 = vdwg.mxu0
        %1976 = vmatprep.subr.mxu0 0.0
        %1977 = vmatpush1.msra.mxu0 0.0
        %1978 = vmatprep.subr.mxu0 0.0
        %1979 = vmatpush1.msra.mxu0 0.0
        %1980 = vmatprep.subr.mxu0 0.0
        %1981 = vmatpush1.msra.mxu0 0.0
        %1982 = vmatprep.subr.mxu0 0.0
        %1983 = vmatpush1.msra.mxu0 0.0
        %1984 = vmatprep.subr.mxu0 0.0
        %1985 = vmatpush1.msra.mxu0 0.0
        %1986 = vmatprep.subr.mxu0 0.0
        %1987 = vmatpush1.msra.mxu0 0.0
        %1988 = vmatprep.subr.mxu0 0.0
        %1989 = vmatpush1.msra.mxu0 0.0
        %1990 = vmatprep.subr.mxu0 0.0
        %1991 = vmatpush1.msra.mxu0 0.0
        %1992 = vmatprep.subr.mxu0 0.0
        %1993 = vmatpush1.msra.mxu0 0.0
        %1994 = vmatprep.subr.mxu0 0.0
        %1995 = vmatpush1.msra.mxu0 0.0
        %1996 = vmatprep.subr.mxu0 0.0
        %1997 = vmatpush1.msra.mxu0 0.0
        %1998 = vmatprep.subr.mxu0 0.0
        %1999 = vmatpush1.msra.mxu0 0.0
        %2000 = vmatprep.subr.mxu0 %v1741
        %2001 = vmatpush1.msra.mxu0 %v1738
        %2002 = vmatprep.subr.mxu0 %v1614
        %2003 = vmatpush1.msra.mxu0 %v1613
        %2004 = vmatprep.subr.mxu0 %v1610
        %2005 = vmatpush1.msra.mxu0 %v1609
        %2006 = vmatprep.subr.mxu0 %v1606
        %2007 = vmatpush1.msra.mxu0 %v1605
        %2008 = vmatprep.subr.mxu0 0.0
        %2009 = vmatpush2.msra.mxu0 0.0
        %2010 = vmatprep.subr.mxu0 0.0
        %2011 = vmatpush2.msra.mxu0 0.0
        %2012 = vmatprep.subr.mxu0 0.0
        %2013 = vmatpush2.msra.mxu0 0.0
        %2014 = vmatprep.subr.mxu0 0.0
        %2015 = vmatpush2.msra.mxu0 0.0
        %2016 = vmatprep.subr.mxu0 0.0
        %2017 = vmatpush2.msra.mxu0 0.0
        %2018 = vmatprep.subr.mxu0 0.0
        %2019 = vmatpush2.msra.mxu0 0.0
        %2020 = vmatprep.subr.mxu0 0.0
        %2021 = vmatpush2.msra.mxu0 0.0
        %2022 = vmatprep.subr.mxu0 0.0
        %2023 = vmatpush2.msra.mxu0 0.0
        %2024 = vmatprep.subr.mxu0 0.0
        %2025 = vmatpush2.msra.mxu0 0.0
        %2026 = vmatprep.subr.mxu0 0.0
        %2027 = vmatpush2.msra.mxu0 0.0
        %2028 = vmatprep.subr.mxu0 0.0
        %2029 = vmatpush2.msra.mxu0 0.0
        %2030 = vmatprep.subr.mxu0 0.0
        %2031 = vmatpush2.msra.mxu0 0.0
        %2032 = vmatprep.subr.mxu0 0.0
        %2033 = vmatpush2.msra.mxu0 0.0
        %2034 = vmatprep.subr.mxu0 0.0
        %2035 = vmatpush2.msra.mxu0 0.0
        %2036 = vmatprep.subr.mxu0 0.0
        %2037 = vmatpush2.msra.mxu0 0.0
        %2038 = vmatprep.subr.mxu0 0.0
        %2039 = vmatpush2.msra.mxu0 0.0
        %2040 = vmatprep.mubr.f32.mxu0 0.0
        %2041 = vmatmul.mubr.f32.gmra.mxu0 %v1675
        %v2042 = vpop.f32.mrf.mxu0
        %v2043 = vadd.f32 0.0, %v2042
        %v2044 = vpop.f32.mrf.mxu0
        %v2045 = vadd.f32 0.0, %v2044
        %2046 = vmatprep.mubr.f32.mxu0 0.0
        %2047 = vmatmul.mubr.f32.gmra.mxu0 %v1677
        %v2048 = vpop.f32.mrf.mxu0
        %v2049 = vadd.f32 0.0, %v2048
        %v2050 = vpop.f32.mrf.mxu0
        %v2051 = vadd.f32 0.0, %v2050
        %2052 = vmatprep.mubr.f32.mxu0 0.0
        %2053 = vmatmul.mubr.f32.gmra.mxu0 %v1679
        %v2054 = vpop.f32.mrf.mxu0
        %v2055 = vadd.f32 0.0, %v2054
        %v2056 = vpop.f32.mrf.mxu0
        %v2057 = vadd.f32 0.0, %v2056
        %2058 = vmatprep.mubr.f32.mxu0 0.0
        %2059 = vmatmul.mubr.f32.gmra.mxu0 %v1681
        %v2060 = vpop.f32.mrf.mxu0
        %v2061 = vadd.f32 0.0, %v2060
        %v2062 = vpop.f32.mrf.mxu0
        %v2063 = vadd.f32 0.0, %v2062
        %2064 = vmatprep.mubr.f32.mxu0 0.0
        %2065 = vmatmul.mubr.f32.gmra.mxu0 %v1683
        %v2066 = vpop.f32.mrf.mxu0
        %v2067 = vadd.f32 0.0, %v2066
        %v2068 = vpop.f32.mrf.mxu0
        %v2069 = vadd.f32 0.0, %v2068
        %2070 = vmatprep.mubr.f32.mxu0 0.0
        %2071 = vmatmul.mubr.f32.gmra.mxu0 %v1685
        %v2072 = vpop.f32.mrf.mxu0
        %v2073 = vadd.f32 0.0, %v2072
        %v2074 = vpop.f32.mrf.mxu0
        %v2075 = vadd.f32 0.0, %v2074
        %2076 = vmatprep.mubr.f32.mxu0 0.0
        %2077 = vmatmul.mubr.f32.gmra.mxu0 %v1687
        %v2078 = vpop.f32.mrf.mxu0
        %v2079 = vadd.f32 0.0, %v2078
        %v2080 = vpop.f32.mrf.mxu0
        %v2081 = vadd.f32 0.0, %v2080
        %2082 = vmatprep.mubr.f32.mxu0 0.0
        %2083 = vmatmul.mubr.f32.gmra.mxu0 %v1689
        %v2084 = vpop.f32.mrf.mxu0
        %v2085 = vadd.f32 0.0, %v2084
        %v2086 = vpop.f32.mrf.mxu0
        %v2087 = vadd.f32 0.0, %v2086
        %2088 = vmatprep.mubr.f32.mxu0 0.0
        %2089 = vmatmul.mubr.f32.gmra.mxu0 %v1691
        %v2090 = vpop.f32.mrf.mxu0
        %v2091 = vadd.f32 0.0, %v2090
        %v2092 = vpop.f32.mrf.mxu0
        %v2093 = vadd.f32 0.0, %v2092
        %2094 = vmatprep.mubr.f32.mxu0 0.0
        %2095 = vmatmul.mubr.f32.gmra.mxu0 %v1693
        %v2096 = vpop.f32.mrf.mxu0
        %v2097 = vadd.f32 0.0, %v2096
        %v2098 = vpop.f32.mrf.mxu0
        %v2099 = vadd.f32 0.0, %v2098
        %2100 = vmatprep.mubr.f32.mxu0 0.0
        %2101 = vmatmul.mubr.f32.gmra.mxu0 %v1695
        %v2102 = vpop.f32.mrf.mxu0
        %v2103 = vadd.f32 0.0, %v2102
        %v2104 = vpop.f32.mrf.mxu0
        %v2105 = vadd.f32 0.0, %v2104
        %2106 = vmatprep.mubr.f32.mxu0 0.0
        %2107 = vmatmul.mubr.f32.gmra.mxu0 %v1697
        %v2108 = vpop.f32.mrf.mxu0
        %v2109 = vadd.f32 0.0, %v2108
        %v2110 = vpop.f32.mrf.mxu0
        %v2111 = vadd.f32 0.0, %v2110
        %2112 = vmatprep.mubr.f32.mxu0 0.0
        %2113 = vmatmul.mubr.f32.gmra.mxu0 %v1699
        %v2114 = vpop.f32.mrf.mxu0
        %v2115 = vadd.f32 0.0, %v2114
        %v2116 = vpop.f32.mrf.mxu0
        %v2117 = vadd.f32 0.0, %v2116
        %2118 = vmatprep.mubr.f32.mxu0 0.0
        %2119 = vmatmul.mubr.f32.gmra.mxu0 %v1701
        %v2120 = vpop.f32.mrf.mxu0
        %v2121 = vadd.f32 0.0, %v2120
        %v2122 = vpop.f32.mrf.mxu0
        %v2123 = vadd.f32 0.0, %v2122
        %2124 = vmatprep.mubr.f32.mxu0 0.0
        %2125 = vmatmul.mubr.f32.gmra.mxu0 %v1703
        %v2126 = vpop.f32.mrf.mxu0
        %v2127 = vadd.f32 0.0, %v2126
        %v2128 = vpop.f32.mrf.mxu0
        %v2129 = vadd.f32 0.0, %v2128
        %2130 = vmatprep.mubr.f32.mxu0 0.0
        %2131 = vmatmul.mubr.f32.gmra.mxu0 %v1705
        %v2132 = vpop.f32.mrf.mxu0
        %v2133 = vadd.f32 0.0, %v2132
        %v2134 = vpop.f32.mrf.mxu0
        %v2135 = vadd.f32 0.0, %v2134
        %2136 = vmatprep.mubr.f32.mxu0 0.0
        %2137 = vmatmul.mubr.f32.gmra.mxu0 %v1707
        %v2138 = vpop.f32.mrf.mxu0
        %v2139 = vadd.f32 0.0, %v2138
        %v2140 = vpop.f32.mrf.mxu0
        %v2141 = vadd.f32 0.0, %v2140
        %2142 = vmatprep.mubr.f32.mxu0 0.0
        %2143 = vmatmul.mubr.f32.gmra.mxu0 %v1709
        %v2144 = vpop.f32.mrf.mxu0
        %v2145 = vadd.f32 0.0, %v2144
        %v2146 = vpop.f32.mrf.mxu0
        %v2147 = vadd.f32 0.0, %v2146
        %2148 = vmatprep.mubr.f32.mxu0 0.0
        %2149 = vmatmul.mubr.f32.gmra.mxu0 %v1711
        %v2150 = vpop.f32.mrf.mxu0
        %v2151 = vadd.f32 0.0, %v2150
        %v2152 = vpop.f32.mrf.mxu0
        %v2153 = vadd.f32 0.0, %v2152
        %2154 = vmatprep.mubr.f32.mxu0 0.0
        %2155 = vmatmul.mubr.f32.gmra.mxu0 %v1713
        %v2156 = vpop.f32.mrf.mxu0
        %v2157 = vadd.f32 0.0, %v2156
        %v2158 = vpop.f32.mrf.mxu0
        %v2159 = vadd.f32 0.0, %v2158
        %2160 = vmatprep.mubr.f32.mxu0 0.0
        %2161 = vmatmul.mubr.f32.gmra.mxu0 %v1715
        %v2162 = vpop.f32.mrf.mxu0
        %v2163 = vadd.f32 0.0, %v2162
        %v2164 = vpop.f32.mrf.mxu0
        %v2165 = vadd.f32 0.0, %v2164
        %2166 = vmatprep.mubr.f32.mxu0 0.0
        %2167 = vmatmul.mubr.f32.gmra.mxu0 %v1717
        %v2168 = vpop.f32.mrf.mxu0
        %v2169 = vadd.f32 0.0, %v2168
        %v2170 = vpop.f32.mrf.mxu0
        %v2171 = vadd.f32 0.0, %v2170
        %2172 = vmatprep.mubr.f32.mxu0 0.0
        %2173 = vmatmul.mubr.f32.gmra.mxu0 %v1719
        %v2174 = vpop.f32.mrf.mxu0
        %v2175 = vadd.f32 0.0, %v2174
        %v2176 = vpop.f32.mrf.mxu0
        %v2177 = vadd.f32 0.0, %v2176
        %2178 = vmatprep.mubr.f32.mxu0 0.0
        %2179 = vmatmul.mubr.f32.gmra.mxu0 %v1721
        %v2180 = vpop.f32.mrf.mxu0
        %v2181 = vadd.f32 0.0, %v2180
        %v2182 = vpop.f32.mrf.mxu0
        %v2183 = vadd.f32 0.0, %v2182
        %2184 = vmatprep.mubr.f32.mxu0 0.0
        %2185 = vmatmul.mubr.f32.gmra.mxu0 %v1723
        %v2186 = vpop.f32.mrf.mxu0
        %v2187 = vadd.f32 0.0, %v2186
        %v2188 = vpop.f32.mrf.mxu0
        %v2189 = vadd.f32 0.0, %v2188
        %2190 = vmatprep.mubr.f32.mxu0 0.0
        %2191 = vmatmul.mubr.f32.gmra.mxu0 %v1725
        %v2192 = vpop.f32.mrf.mxu0
        %v2193 = vadd.f32 0.0, %v2192
        %v2194 = vpop.f32.mrf.mxu0
        %v2195 = vadd.f32 0.0, %v2194
        %2196 = vmatprep.mubr.f32.mxu0 0.0
        %2197 = vmatmul.mubr.f32.gmra.mxu0 %v1727
        %v2198 = vpop.f32.mrf.mxu0
        %v2199 = vadd.f32 0.0, %v2198
        %v2200 = vpop.f32.mrf.mxu0
        %v2201 = vadd.f32 0.0, %v2200
        %2202 = vmatprep.mubr.f32.mxu0 0.0
        %2203 = vmatmul.mubr.f32.gmra.mxu0 %v1729
        %v2204 = vpop.f32.mrf.mxu0
        %v2205 = vadd.f32 0.0, %v2204
        %v2206 = vpop.f32.mrf.mxu0
        %v2207 = vadd.f32 0.0, %v2206
        %2208 = vdwg.mxu0
        %v2209 = vadd.f32 %v1203, %v1810
        %v2210 = vadd.f32 %v1205, %v1812
        %v2211 = vadd.f32 %v1436, %v2043
        %v2212 = vadd.f32 %v1438, %v2045
        %v2213 = vadd.f32 %v1209, %v1816
        %v2214 = vadd.f32 %v1211, %v1818
        %v2215 = vadd.f32 %v1442, %v2049
        %v2216 = vadd.f32 %v1444, %v2051
        %v2217 = vadd.f32 %v1215, %v1822
        %v2218 = vadd.f32 %v1217, %v1824
        %v2219 = vadd.f32 %v1448, %v2055
        %v2220 = vadd.f32 %v1450, %v2057
        %v2221 = vadd.f32 %v1221, %v1828
        %v2222 = vadd.f32 %v1223, %v1830
        %v2223 = vadd.f32 %v1454, %v2061
        %v2224 = vadd.f32 %v1456, %v2063
        %v2225 = vadd.f32 %v1227, %v1834
        %v2226 = vadd.f32 %v1229, %v1836
        %v2227 = vadd.f32 %v1460, %v2067
        %v2228 = vadd.f32 %v1462, %v2069
        %v2229 = vadd.f32 %v1233, %v1840
        %v2230 = vadd.f32 %v1235, %v1842
        %v2231 = vadd.f32 %v1466, %v2073
        %v2232 = vadd.f32 %v1468, %v2075
        %v2233 = vadd.f32 %v1239, %v1846
        %v2234 = vadd.f32 %v1241, %v1848
        %v2235 = vadd.f32 %v1472, %v2079
        %v2236 = vadd.f32 %v1474, %v2081
        %v2237 = vadd.f32 %v1245, %v1852
        %v2238 = vadd.f32 %v1247, %v1854
        %v2239 = vadd.f32 %v1478, %v2085
        %v2240 = vadd.f32 %v1480, %v2087
        %v2241 = vadd.f32 %v1251, %v1858
        %v2242 = vadd.f32 %v1253, %v1860
        %v2243 = vadd.f32 %v1484, %v2091
        %v2244 = vadd.f32 %v1486, %v2093
        %v2245 = vadd.f32 %v1257, %v1864
        %v2246 = vadd.f32 %v1259, %v1866
        %v2247 = vadd.f32 %v1490, %v2097
        %v2248 = vadd.f32 %v1492, %v2099
        %v2249 = vadd.f32 %v1263, %v1870
        %v2250 = vadd.f32 %v1265, %v1872
        %v2251 = vadd.f32 %v1496, %v2103
        %v2252 = vadd.f32 %v1498, %v2105
        %v2253 = vadd.f32 %v1269, %v1876
        %v2254 = vadd.f32 %v1271, %v1878
        %v2255 = vadd.f32 %v1502, %v2109
        %v2256 = vadd.f32 %v1504, %v2111
        %v2257 = vadd.f32 %v1275, %v1882
        %v2258 = vadd.f32 %v1277, %v1884
        %v2259 = vadd.f32 %v1508, %v2115
        %v2260 = vadd.f32 %v1510, %v2117
        %v2261 = vadd.f32 %v1281, %v1888
        %v2262 = vadd.f32 %v1283, %v1890
        %v2263 = vadd.f32 %v1514, %v2121
        %v2264 = vadd.f32 %v1516, %v2123
        %v2265 = vadd.f32 %v1287, %v1894
        %v2266 = vadd.f32 %v1289, %v1896
        %v2267 = vadd.f32 %v1520, %v2127
        %v2268 = vadd.f32 %v1522, %v2129
        %v2269 = vadd.f32 %v1293, %v1900
        %v2270 = vadd.f32 %v1295, %v1902
        %v2271 = vadd.f32 %v1526, %v2133
        %v2272 = vadd.f32 %v1528, %v2135
        %v2273 = vadd.f32 %v1299, %v1906
        %v2274 = vadd.f32 %v1301, %v1908
        %v2275 = vadd.f32 %v1532, %v2139
        %v2276 = vadd.f32 %v1534, %v2141
        %v2277 = vadd.f32 %v1305, %v1912
        %v2278 = vadd.f32 %v1307, %v1914
        %v2279 = vadd.f32 %v1538, %v2145
        %v2280 = vadd.f32 %v1540, %v2147
        %v2281 = vadd.f32 %v1311, %v1918
        %v2282 = vadd.f32 %v1313, %v1920
        %v2283 = vadd.f32 %v1544, %v2151
        %v2284 = vadd.f32 %v1546, %v2153
        %v2285 = vadd.f32 %v1317, %v1924
        %v2286 = vadd.f32 %v1319, %v1926
        %v2287 = vadd.f32 %v1550, %v2157
        %v2288 = vadd.f32 %v1552, %v2159
        %v2289 = vadd.f32 %v1323, %v1930
        %v2290 = vadd.f32 %v1325, %v1932
        %v2291 = vadd.f32 %v1556, %v2163
        %v2292 = vadd.f32 %v1558, %v2165
        %v2293 = vadd.f32 %v1329, %v1936
        %v2294 = vadd.f32 %v1331, %v1938
        %v2295 = vadd.f32 %v1562, %v2169
        %v2296 = vadd.f32 %v1564, %v2171
        %v2297 = vadd.f32 %v1335, %v1942
        %v2298 = vadd.f32 %v1337, %v1944
        %v2299 = vadd.f32 %v1568, %v2175
        %v2300 = vadd.f32 %v1570, %v2177
        %v2301 = vadd.f32 %v1341, %v1948
        %v2302 = vadd.f32 %v1343, %v1950
        %v2303 = vadd.f32 %v1574, %v2181
        %v2304 = vadd.f32 %v1576, %v2183
        %v2305 = vadd.f32 %v1347, %v1954
        %v2306 = vadd.f32 %v1349, %v1956
        %v2307 = vadd.f32 %v1580, %v2187
        %v2308 = vadd.f32 %v1582, %v2189
        %v2309 = vadd.f32 %v1353, %v1960
        %v2310 = vadd.f32 %v1355, %v1962
        %v2311 = vadd.f32 %v1586, %v2193
        %v2312 = vadd.f32 %v1588, %v2195
        %v2313 = vadd.f32 %v1359, %v1966
        %v2314 = vadd.f32 %v1361, %v1968
        %v2315 = vadd.f32 %v1592, %v2199
        %v2316 = vadd.f32 %v1594, %v2201
        %v2317 = vadd.f32 %v1365, %v1972
        %v2318 = vadd.f32 %v1367, %v1974
        %v2319 = vadd.f32 %v1598, %v2205
        %v2320 = vadd.f32 %v1600, %v2207
        %v2321 = vld [vmem:[%s2] sm:$0xf]
        %v2323 = vlaneseq
        %v2324 = vshrl.u32 %v2323, 7
        %v2325 = vsub.s32 0, %v2324
        %v2326 = vrot.slane %v2321, %v2325
        %v2327 = vlaneseq
        %v2328 = vshrl.u32 %v2327, 7
        %v2329 = vsub.s32 1, %v2328
        %v2330 = vrot.slane %v2321, %v2329
        %v2331 = vlaneseq
        %v2332 = vshrl.u32 %v2331, 7
        %v2333 = vsub.s32 2, %v2332
        %v2334 = vrot.slane %v2321, %v2333
        %v2335 = vlaneseq
        %v2336 = vshrl.u32 %v2335, 7
        %v2337 = vsub.s32 3, %v2336
        %v2338 = vrot.slane %v2321, %v2337
        %v2343 = vadd.f32 %v2209, %v2326
        %v2344 = vadd.f32 %v2210, %v2330
        %v2345 = vadd.f32 %v2211, %v2334
        %v2346 = vadd.f32 %v2212, %v2338
        %v2347 = vadd.f32 %v2213, %v2326
        %v2348 = vadd.f32 %v2214, %v2330
        %v2349 = vadd.f32 %v2215, %v2334
        %v2350 = vadd.f32 %v2216, %v2338
        %v2351 = vadd.f32 %v2217, %v2326
        %v2352 = vadd.f32 %v2218, %v2330
        %v2353 = vadd.f32 %v2219, %v2334
        %v2354 = vadd.f32 %v2220, %v2338
        %v2355 = vadd.f32 %v2221, %v2326
        %v2356 = vadd.f32 %v2222, %v2330
        %v2357 = vadd.f32 %v2223, %v2334
        %v2358 = vadd.f32 %v2224, %v2338
        %v2359 = vadd.f32 %v2225, %v2326
        %v2360 = vadd.f32 %v2226, %v2330
        %v2361 = vadd.f32 %v2227, %v2334
        %v2362 = vadd.f32 %v2228, %v2338
        %v2363 = vadd.f32 %v2229, %v2326
        %v2364 = vadd.f32 %v2230, %v2330
        %v2365 = vadd.f32 %v2231, %v2334
        %v2366 = vadd.f32 %v2232, %v2338
        %v2367 = vadd.f32 %v2233, %v2326
        %v2368 = vadd.f32 %v2234, %v2330
        %v2369 = vadd.f32 %v2235, %v2334
        %v2370 = vadd.f32 %v2236, %v2338
        %v2371 = vadd.f32 %v2237, %v2326
        %v2372 = vadd.f32 %v2238, %v2330
        %v2373 = vadd.f32 %v2239, %v2334
        %v2374 = vadd.f32 %v2240, %v2338
        %v2375 = vadd.f32 %v2241, %v2326
        %v2376 = vadd.f32 %v2242, %v2330
        %v2377 = vadd.f32 %v2243, %v2334
        %v2378 = vadd.f32 %v2244, %v2338
        %v2379 = vadd.f32 %v2245, %v2326
        %v2380 = vadd.f32 %v2246, %v2330
        %v2381 = vadd.f32 %v2247, %v2334
        %v2382 = vadd.f32 %v2248, %v2338
        %v2383 = vadd.f32 %v2249, %v2326
        %v2384 = vadd.f32 %v2250, %v2330
        %v2385 = vadd.f32 %v2251, %v2334
        %v2386 = vadd.f32 %v2252, %v2338
        %v2387 = vadd.f32 %v2253, %v2326
        %v2388 = vadd.f32 %v2254, %v2330
        %v2389 = vadd.f32 %v2255, %v2334
        %v2390 = vadd.f32 %v2256, %v2338
        %v2391 = vadd.f32 %v2257, %v2326
        %v2392 = vadd.f32 %v2258, %v2330
        %v2393 = vadd.f32 %v2259, %v2334
        %v2394 = vadd.f32 %v2260, %v2338
        %v2395 = vadd.f32 %v2261, %v2326
        %v2396 = vadd.f32 %v2262, %v2330
        %v2397 = vadd.f32 %v2263, %v2334
        %v2398 = vadd.f32 %v2264, %v2338
        %v2399 = vadd.f32 %v2265, %v2326
        %v2400 = vadd.f32 %v2266, %v2330
        %v2401 = vadd.f32 %v2267, %v2334
        %v2402 = vadd.f32 %v2268, %v2338
        %v2403 = vadd.f32 %v2269, %v2326
        %v2404 = vadd.f32 %v2270, %v2330
        %v2405 = vadd.f32 %v2271, %v2334
        %v2406 = vadd.f32 %v2272, %v2338
        %v2407 = vadd.f32 %v2273, %v2326
        %v2408 = vadd.f32 %v2274, %v2330
        %v2409 = vadd.f32 %v2275, %v2334
        %v2410 = vadd.f32 %v2276, %v2338
        %v2411 = vadd.f32 %v2277, %v2326
        %v2412 = vadd.f32 %v2278, %v2330
        %v2413 = vadd.f32 %v2279, %v2334
        %v2414 = vadd.f32 %v2280, %v2338
        %v2415 = vadd.f32 %v2281, %v2326
        %v2416 = vadd.f32 %v2282, %v2330
        %v2417 = vadd.f32 %v2283, %v2334
        %v2418 = vadd.f32 %v2284, %v2338
        %v2419 = vadd.f32 %v2285, %v2326
        %v2420 = vadd.f32 %v2286, %v2330
        %v2421 = vadd.f32 %v2287, %v2334
        %v2422 = vadd.f32 %v2288, %v2338
        %v2423 = vadd.f32 %v2289, %v2326
        %v2424 = vadd.f32 %v2290, %v2330
        %v2425 = vadd.f32 %v2291, %v2334
        %v2426 = vadd.f32 %v2292, %v2338
        %v2427 = vadd.f32 %v2293, %v2326
        %v2428 = vadd.f32 %v2294, %v2330
        %v2429 = vadd.f32 %v2295, %v2334
        %v2430 = vadd.f32 %v2296, %v2338
        %v2431 = vadd.f32 %v2297, %v2326
        %v2432 = vadd.f32 %v2298, %v2330
        %v2433 = vadd.f32 %v2299, %v2334
        %v2434 = vadd.f32 %v2300, %v2338
        %v2435 = vadd.f32 %v2301, %v2326
        %v2436 = vadd.f32 %v2302, %v2330
        %v2437 = vadd.f32 %v2303, %v2334
        %v2438 = vadd.f32 %v2304, %v2338
        %v2439 = vadd.f32 %v2305, %v2326
        %v2440 = vadd.f32 %v2306, %v2330
        %v2441 = vadd.f32 %v2307, %v2334
        %v2442 = vadd.f32 %v2308, %v2338
        %v2443 = vadd.f32 %v2309, %v2326
        %v2444 = vadd.f32 %v2310, %v2330
        %v2445 = vadd.f32 %v2311, %v2334
        %v2446 = vadd.f32 %v2312, %v2338
        %v2447 = vadd.f32 %v2313, %v2326
        %v2448 = vadd.f32 %v2314, %v2330
        %v2449 = vadd.f32 %v2315, %v2334
        %v2450 = vadd.f32 %v2316, %v2338
        %v2451 = vadd.f32 %v2317, %v2326
        %v2452 = vadd.f32 %v2318, %v2330
        %v2453 = vadd.f32 %v2319, %v2334
        %v2454 = vadd.f32 %v2320, %v2338
        %v2455 = vmax.f32 %v2343, 0.0
        %v2456 = vmax.f32 %v2344, 0.0
        %v2457 = vmax.f32 %v2345, 0.0
        %v2458 = vmax.f32 %v2346, 0.0
        %v2459 = vmax.f32 %v2347, 0.0
        %v2460 = vmax.f32 %v2348, 0.0
        %v2461 = vmax.f32 %v2349, 0.0
        %v2462 = vmax.f32 %v2350, 0.0
        %v2463 = vmax.f32 %v2351, 0.0
        %v2464 = vmax.f32 %v2352, 0.0
        %v2465 = vmax.f32 %v2353, 0.0
        %v2466 = vmax.f32 %v2354, 0.0
        %v2467 = vmax.f32 %v2355, 0.0
        %v2468 = vmax.f32 %v2356, 0.0
        %v2469 = vmax.f32 %v2357, 0.0
        %v2470 = vmax.f32 %v2358, 0.0
        %v2471 = vmax.f32 %v2359, 0.0
        %v2472 = vmax.f32 %v2360, 0.0
        %v2473 = vmax.f32 %v2361, 0.0
        %v2474 = vmax.f32 %v2362, 0.0
        %v2475 = vmax.f32 %v2363, 0.0
        %v2476 = vmax.f32 %v2364, 0.0
        %v2477 = vmax.f32 %v2365, 0.0
        %v2478 = vmax.f32 %v2366, 0.0
        %v2479 = vmax.f32 %v2367, 0.0
        %v2480 = vmax.f32 %v2368, 0.0
        %v2481 = vmax.f32 %v2369, 0.0
        %v2482 = vmax.f32 %v2370, 0.0
        %v2483 = vmax.f32 %v2371, 0.0
        %v2484 = vmax.f32 %v2372, 0.0
        %v2485 = vmax.f32 %v2373, 0.0
        %v2486 = vmax.f32 %v2374, 0.0
        %v2487 = vmax.f32 %v2375, 0.0
        %v2488 = vmax.f32 %v2376, 0.0
        %v2489 = vmax.f32 %v2377, 0.0
        %v2490 = vmax.f32 %v2378, 0.0
        %v2491 = vmax.f32 %v2379, 0.0
        %v2492 = vmax.f32 %v2380, 0.0
        %v2493 = vmax.f32 %v2381, 0.0
        %v2494 = vmax.f32 %v2382, 0.0
        %v2495 = vmax.f32 %v2383, 0.0
        %v2496 = vmax.f32 %v2384, 0.0
        %v2497 = vmax.f32 %v2385, 0.0
        %v2498 = vmax.f32 %v2386, 0.0
        %v2499 = vmax.f32 %v2387, 0.0
        %v2500 = vmax.f32 %v2388, 0.0
        %v2501 = vmax.f32 %v2389, 0.0
        %v2502 = vmax.f32 %v2390, 0.0
        %v2503 = vmax.f32 %v2391, 0.0
        %v2504 = vmax.f32 %v2392, 0.0
        %v2505 = vmax.f32 %v2393, 0.0
        %v2506 = vmax.f32 %v2394, 0.0
        %v2507 = vmax.f32 %v2395, 0.0
        %v2508 = vmax.f32 %v2396, 0.0
        %v2509 = vmax.f32 %v2397, 0.0
        %v2510 = vmax.f32 %v2398, 0.0
        %v2511 = vmax.f32 %v2399, 0.0
        %v2512 = vmax.f32 %v2400, 0.0
        %v2513 = vmax.f32 %v2401, 0.0
        %v2514 = vmax.f32 %v2402, 0.0
        %v2515 = vmax.f32 %v2403, 0.0
        %v2516 = vmax.f32 %v2404, 0.0
        %v2517 = vmax.f32 %v2405, 0.0
        %v2518 = vmax.f32 %v2406, 0.0
        %v2519 = vmax.f32 %v2407, 0.0
        %v2520 = vmax.f32 %v2408, 0.0
        %v2521 = vmax.f32 %v2409, 0.0
        %v2522 = vmax.f32 %v2410, 0.0
        %v2523 = vmax.f32 %v2411, 0.0
        %v2524 = vmax.f32 %v2412, 0.0
        %v2525 = vmax.f32 %v2413, 0.0
        %v2526 = vmax.f32 %v2414, 0.0
        %v2527 = vmax.f32 %v2415, 0.0
        %v2528 = vmax.f32 %v2416, 0.0
        %v2529 = vmax.f32 %v2417, 0.0
        %v2530 = vmax.f32 %v2418, 0.0
        %v2531 = vmax.f32 %v2419, 0.0
        %v2532 = vmax.f32 %v2420, 0.0
        %v2533 = vmax.f32 %v2421, 0.0
        %v2534 = vmax.f32 %v2422, 0.0
        %v2535 = vmax.f32 %v2423, 0.0
        %v2536 = vmax.f32 %v2424, 0.0
        %v2537 = vmax.f32 %v2425, 0.0
        %v2538 = vmax.f32 %v2426, 0.0
        %v2539 = vmax.f32 %v2427, 0.0
        %v2540 = vmax.f32 %v2428, 0.0
        %v2541 = vmax.f32 %v2429, 0.0
        %v2542 = vmax.f32 %v2430, 0.0
        %v2543 = vmax.f32 %v2431, 0.0
        %v2544 = vmax.f32 %v2432, 0.0
        %v2545 = vmax.f32 %v2433, 0.0
        %v2546 = vmax.f32 %v2434, 0.0
        %v2547 = vmax.f32 %v2435, 0.0
        %v2548 = vmax.f32 %v2436, 0.0
        %v2549 = vmax.f32 %v2437, 0.0
        %v2550 = vmax.f32 %v2438, 0.0
        %v2551 = vmax.f32 %v2439, 0.0
        %v2552 = vmax.f32 %v2440, 0.0
        %v2553 = vmax.f32 %v2441, 0.0
        %v2554 = vmax.f32 %v2442, 0.0
        %v2555 = vmax.f32 %v2443, 0.0
        %v2556 = vmax.f32 %v2444, 0.0
        %v2557 = vmax.f32 %v2445, 0.0
        %v2558 = vmax.f32 %v2446, 0.0
        %v2559 = vmax.f32 %v2447, 0.0
        %v2560 = vmax.f32 %v2448, 0.0
        %v2561 = vmax.f32 %v2449, 0.0
        %v2562 = vmax.f32 %v2450, 0.0
        %v2563 = vmax.f32 %v2451, 0.0
        %v2564 = vmax.f32 %v2452, 0.0
        %v2565 = vmax.f32 %v2453, 0.0
        %v2566 = vmax.f32 %v2454, 0.0
        %v2567 = vmax.f32 %v2455, %v2457
        %v2568 = vmax.f32 %v2456, %v2458
        %v2569 = vmax.f32 %v2459, %v2461
        %v2570 = vmax.f32 %v2460, %v2462
        %v2571 = vmax.f32 %v2463, %v2465
        %v2572 = vmax.f32 %v2464, %v2466
        %v2573 = vmax.f32 %v2467, %v2469
        %v2574 = vmax.f32 %v2468, %v2470
        %v2575 = vmax.f32 %v2471, %v2473
        %v2576 = vmax.f32 %v2472, %v2474
        %v2577 = vmax.f32 %v2475, %v2477
        %v2578 = vmax.f32 %v2476, %v2478
        %v2579 = vmax.f32 %v2479, %v2481
        %v2580 = vmax.f32 %v2480, %v2482
        %v2581 = vmax.f32 %v2483, %v2485
        %v2582 = vmax.f32 %v2484, %v2486
        %v2583 = vmax.f32 %v2487, %v2489
        %v2584 = vmax.f32 %v2488, %v2490
        %v2585 = vmax.f32 %v2491, %v2493
        %v2586 = vmax.f32 %v2492, %v2494
        %v2587 = vmax.f32 %v2495, %v2497
        %v2588 = vmax.f32 %v2496, %v2498
        %v2589 = vmax.f32 %v2499, %v2501
        %v2590 = vmax.f32 %v2500, %v2502
        %v2591 = vmax.f32 %v2503, %v2505
        %v2592 = vmax.f32 %v2504, %v2506
        %v2593 = vmax.f32 %v2507, %v2509
        %v2594 = vmax.f32 %v2508, %v2510
        %v2595 = vmax.f32 %v2511, %v2513
        %v2596 = vmax.f32 %v2512, %v2514
        %v2597 = vmax.f32 %v2515, %v2517
        %v2598 = vmax.f32 %v2516, %v2518
        %v2599 = vmax.f32 %v2519, %v2521
        %v2600 = vmax.f32 %v2520, %v2522
        %v2601 = vmax.f32 %v2523, %v2525
        %v2602 = vmax.f32 %v2524, %v2526
        %v2603 = vmax.f32 %v2527, %v2529
        %v2604 = vmax.f32 %v2528, %v2530
        %v2605 = vmax.f32 %v2531, %v2533
        %v2606 = vmax.f32 %v2532, %v2534
        %v2607 = vmax.f32 %v2535, %v2537
        %v2608 = vmax.f32 %v2536, %v2538
        %v2609 = vmax.f32 %v2539, %v2541
        %v2610 = vmax.f32 %v2540, %v2542
        %v2611 = vmax.f32 %v2543, %v2545
        %v2612 = vmax.f32 %v2544, %v2546
        %v2613 = vmax.f32 %v2547, %v2549
        %v2614 = vmax.f32 %v2548, %v2550
        %v2615 = vmax.f32 %v2551, %v2553
        %v2616 = vmax.f32 %v2552, %v2554
        %v2617 = vmax.f32 %v2555, %v2557
        %v2618 = vmax.f32 %v2556, %v2558
        %v2619 = vmax.f32 %v2559, %v2561
        %v2620 = vmax.f32 %v2560, %v2562
        %v2621 = vmax.f32 %v2563, %v2565
        %v2622 = vmax.f32 %v2564, %v2566
        %v2623 = vld [vmem:[%s3] sm:$0xff]
        %v2624 = vld [vmem:[%s3 + $0x8] sm:$0xff]
        %v2625 = vld [vmem:[%s3 + $0x10] sm:$0xff]
        %v2626 = vld [vmem:[%s3 + $0x18] sm:$0xff]
        %v2627 = vld [vmem:[%s3 + $0x20] sm:$0xff]
        %v2628 = vld [vmem:[%s3 + $0x28] sm:$0xff]
        %v2629 = vld [vmem:[%s3 + $0x30] sm:$0xff]
        %v2630 = vld [vmem:[%s3 + $0x38] sm:$0xff]
        %v2631 = vld [vmem:[%s3 + $0x40] sm:$0xff]
        %v2632 = vld [vmem:[%s3 + $0x48] sm:$0xff]
        %v2633 = vld [vmem:[%s3 + $0x50] sm:$0xff]
        %v2634 = vld [vmem:[%s3 + $0x58] sm:$0xff]
        %v2635 = vld [vmem:[%s3 + $0x60] sm:$0xff]
        %v2636 = vld [vmem:[%s3 + $0x68] sm:$0xff]
        %v2637 = vld [vmem:[%s3 + $0x70] sm:$0xff]
        %v2638 = vld [vmem:[%s3 + $0x78] sm:$0xff]
        %v2639 = vld [vmem:[%s3 + $0x80] sm:$0xff]
        %v2640 = vld [vmem:[%s3 + $0x88] sm:$0xff]
        %v2641 = vld [vmem:[%s3 + $0x90] sm:$0xff]
        %v2642 = vld [vmem:[%s3 + $0x98] sm:$0xff]
        %v2643 = vld [vmem:[%s3 + $0xa0] sm:$0xff]
        %v2644 = vld [vmem:[%s3 + $0xa8] sm:$0xff]
        %v2645 = vld [vmem:[%s3 + $0xb0] sm:$0xff]
        %v2646 = vld [vmem:[%s3 + $0xb8] sm:$0xff]
        %v2647 = vld [vmem:[%s3 + $0xc0] sm:$0xff]
        %v2648 = vld [vmem:[%s3 + $0xc8] sm:$0xff]
        %vm2649 = vcmask 769024
        %v2651 = vsel %vm2649, %v2624, 0
        %v2654 = vsel %vm2649, %v2626, 0
        %v2657 = vsel %vm2649, %v2628, 0
        %v2660 = vsel %vm2649, %v2630, 0
        %v2663 = vsel %vm2649, %v2632, 0
        %v2666 = vsel %vm2649, %v2634, 0
        %v2669 = vsel %vm2649, %v2636, 0
        %v2672 = vsel %vm2649, %v2638, 0
        %v2675 = vsel %vm2649, %v2640, 0
        %v2678 = vsel %vm2649, %v2642, 0
        %v2681 = vsel %vm2649, %v2644, 0
        %v2684 = vsel %vm2649, %v2646, 0
        %v2687 = vsel %vm2649, %v2648, 0
        %v2690 = vsel %vm1619, %v2621, 0
        %v2693 = vsel %vm1619, %v2622, 0
        %2695 = vmatprep.subr.mxu0 %v2598
        %2696 = vmatpush1.msra.mxu0 %v2597
        %2697 = vmatprep.subr.mxu0 %v2596
        %2698 = vmatpush1.msra.mxu0 %v2595
        %2699 = vmatprep.subr.mxu0 %v2594
        %2700 = vmatpush1.msra.mxu0 %v2593
        %2701 = vmatprep.subr.mxu0 %v2592
        %2702 = vmatpush1.msra.mxu0 %v2591
        %2703 = vmatprep.subr.mxu0 %v2590
        %2704 = vmatpush1.msra.mxu0 %v2589
        %2705 = vmatprep.subr.mxu0 %v2588
        %2706 = vmatpush1.msra.mxu0 %v2587
        %2707 = vmatprep.subr.mxu0 %v2586
        %2708 = vmatpush1.msra.mxu0 %v2585
        %2709 = vmatprep.subr.mxu0 %v2584
        %2710 = vmatpush1.msra.mxu0 %v2583
        %2711 = vmatprep.subr.mxu0 %v2582
        %2712 = vmatpush1.msra.mxu0 %v2581
        %2713 = vmatprep.subr.mxu0 %v2580
        %2714 = vmatpush1.msra.mxu0 %v2579
        %2715 = vmatprep.subr.mxu0 %v2578
        %2716 = vmatpush1.msra.mxu0 %v2577
        %2717 = vmatprep.subr.mxu0 %v2576
        %2718 = vmatpush1.msra.mxu0 %v2575
        %2719 = vmatprep.subr.mxu0 %v2574
        %2720 = vmatpush1.msra.mxu0 %v2573
        %2721 = vmatprep.subr.mxu0 %v2572
        %2722 = vmatpush1.msra.mxu0 %v2571
        %2723 = vmatprep.subr.mxu0 %v2570
        %2724 = vmatpush1.msra.mxu0 %v2569
        %2725 = vmatprep.subr.mxu0 %v2568
        %2726 = vmatpush1.msra.mxu0 %v2567
        %2727 = vmatprep.subr.mxu0 0.0
        %2728 = vmatpush2.msra.mxu0 0.0
        %2729 = vmatprep.subr.mxu0 0.0
        %2730 = vmatpush2.msra.mxu0 0.0
        %2731 = vmatprep.subr.mxu0 0.0
        %2732 = vmatpush2.msra.mxu0 0.0
        %2733 = vmatprep.subr.mxu0 0.0
        %2734 = vmatpush2.msra.mxu0 0.0
        %2735 = vmatprep.subr.mxu0 %v2693
        %2736 = vmatpush2.msra.mxu0 %v2690
        %2737 = vmatprep.subr.mxu0 %v2620
        %2738 = vmatpush2.msra.mxu0 %v2619
        %2739 = vmatprep.subr.mxu0 %v2618
        %2740 = vmatpush2.msra.mxu0 %v2617
        %2741 = vmatprep.subr.mxu0 %v2616
        %2742 = vmatpush2.msra.mxu0 %v2615
        %2743 = vmatprep.subr.mxu0 %v2614
        %2744 = vmatpush2.msra.mxu0 %v2613
        %2745 = vmatprep.subr.mxu0 %v2612
        %2746 = vmatpush2.msra.mxu0 %v2611
        %2747 = vmatprep.subr.mxu0 %v2610
        %2748 = vmatpush2.msra.mxu0 %v2609
        %2749 = vmatprep.subr.mxu0 %v2608
        %2750 = vmatpush2.msra.mxu0 %v2607
        %2751 = vmatprep.subr.mxu0 %v2606
        %2752 = vmatpush2.msra.mxu0 %v2605
        %2753 = vmatprep.subr.mxu0 %v2604
        %2754 = vmatpush2.msra.mxu0 %v2603
        %2755 = vmatprep.subr.mxu0 %v2602
        %2756 = vmatpush2.msra.mxu0 %v2601
        %2757 = vmatprep.subr.mxu0 %v2600
        %2758 = vmatpush2.msra.mxu0 %v2599
        %2759 = vmatprep.mubr.f32.mxu0 %v2651
        %2760 = vmatmul.mubr.f32.gmra.mxu0 %v2623
        %v2761 = vpop.f32.mrf.mxu0
        %v2762 = vadd.f32 0.0, %v2761
        %v2763 = vpop.f32.mrf.mxu0
        %v2764 = vadd.f32 0.0, %v2763
        %2765 = vmatprep.mubr.f32.mxu0 %v2654
        %2766 = vmatmul.mubr.f32.gmra.mxu0 %v2625
        %v2767 = vpop.f32.mrf.mxu0
        %v2768 = vadd.f32 0.0, %v2767
        %v2769 = vpop.f32.mrf.mxu0
        %v2770 = vadd.f32 0.0, %v2769
        %2771 = vmatprep.mubr.f32.mxu0 %v2657
        %2772 = vmatmul.mubr.f32.gmra.mxu0 %v2627
        %v2773 = vpop.f32.mrf.mxu0
        %v2774 = vadd.f32 0.0, %v2773
        %v2775 = vpop.f32.mrf.mxu0
        %v2776 = vadd.f32 0.0, %v2775
        %2777 = vmatprep.mubr.f32.mxu0 %v2660
        %2778 = vmatmul.mubr.f32.gmra.mxu0 %v2629
        %v2779 = vpop.f32.mrf.mxu0
        %v2780 = vadd.f32 0.0, %v2779
        %v2781 = vpop.f32.mrf.mxu0
        %v2782 = vadd.f32 0.0, %v2781
        %2783 = vmatprep.mubr.f32.mxu0 %v2663
        %2784 = vmatmul.mubr.f32.gmra.mxu0 %v2631
        %v2785 = vpop.f32.mrf.mxu0
        %v2786 = vadd.f32 0.0, %v2785
        %v2787 = vpop.f32.mrf.mxu0
        %v2788 = vadd.f32 0.0, %v2787
        %2789 = vmatprep.mubr.f32.mxu0 %v2666
        %2790 = vmatmul.mubr.f32.gmra.mxu0 %v2633
        %v2791 = vpop.f32.mrf.mxu0
        %v2792 = vadd.f32 0.0, %v2791
        %v2793 = vpop.f32.mrf.mxu0
        %v2794 = vadd.f32 0.0, %v2793
        %2795 = vmatprep.mubr.f32.mxu0 %v2669
        %2796 = vmatmul.mubr.f32.gmra.mxu0 %v2635
        %v2797 = vpop.f32.mrf.mxu0
        %v2798 = vadd.f32 0.0, %v2797
        %v2799 = vpop.f32.mrf.mxu0
        %v2800 = vadd.f32 0.0, %v2799
        %2801 = vmatprep.mubr.f32.mxu0 %v2672
        %2802 = vmatmul.mubr.f32.gmra.mxu0 %v2637
        %v2803 = vpop.f32.mrf.mxu0
        %v2804 = vadd.f32 0.0, %v2803
        %v2805 = vpop.f32.mrf.mxu0
        %v2806 = vadd.f32 0.0, %v2805
        %2807 = vmatprep.mubr.f32.mxu0 %v2675
        %2808 = vmatmul.mubr.f32.gmra.mxu0 %v2639
        %v2809 = vpop.f32.mrf.mxu0
        %v2810 = vadd.f32 0.0, %v2809
        %v2811 = vpop.f32.mrf.mxu0
        %v2812 = vadd.f32 0.0, %v2811
        %2813 = vmatprep.mubr.f32.mxu0 %v2678
        %2814 = vmatmul.mubr.f32.gmra.mxu0 %v2641
        %v2815 = vpop.f32.mrf.mxu0
        %v2816 = vadd.f32 0.0, %v2815
        %v2817 = vpop.f32.mrf.mxu0
        %v2818 = vadd.f32 0.0, %v2817
        %2819 = vmatprep.mubr.f32.mxu0 %v2681
        %2820 = vmatmul.mubr.f32.gmra.mxu0 %v2643
        %v2821 = vpop.f32.mrf.mxu0
        %v2822 = vadd.f32 0.0, %v2821
        %v2823 = vpop.f32.mrf.mxu0
        %v2824 = vadd.f32 0.0, %v2823
        %2825 = vmatprep.mubr.f32.mxu0 %v2684
        %2826 = vmatmul.mubr.f32.gmra.mxu0 %v2645
        %v2827 = vpop.f32.mrf.mxu0
        %v2828 = vadd.f32 0.0, %v2827
        %v2829 = vpop.f32.mrf.mxu0
        %v2830 = vadd.f32 0.0, %v2829
        %2831 = vmatprep.mubr.f32.mxu0 %v2687
        %2832 = vmatmul.mubr.f32.gmra.mxu0 %v2647
        %v2833 = vpop.f32.mrf.mxu0
        %v2834 = vadd.f32 0.0, %v2833
        %v2835 = vpop.f32.mrf.mxu0
        %v2836 = vadd.f32 0.0, %v2835
        %2837 = vdwg.mxu0
        %v2838 = vld [vmem:[%s4] sm:$0xff]
        %v2839 = vld [vmem:[%s4 + $0x8] sm:$0xff]
        %v2840 = vld [vmem:[%s4 + $0x10] sm:$0xff]
        %v2841 = vld [vmem:[%s4 + $0x18] sm:$0xff]
        %v2842 = vld [vmem:[%s4 + $0x20] sm:$0xff]
        %v2843 = vld [vmem:[%s4 + $0x28] sm:$0xff]
        %v2844 = vld [vmem:[%s4 + $0x30] sm:$0xff]
        %v2845 = vld [vmem:[%s4 + $0x38] sm:$0xff]
        %v2846 = vld [vmem:[%s4 + $0x40] sm:$0xff]
        %v2847 = vld [vmem:[%s4 + $0x48] sm:$0xff]
        %v2848 = vld [vmem:[%s4 + $0x50] sm:$0xff]
        %v2849 = vld [vmem:[%s4 + $0x58] sm:$0xff]
        %v2850 = vld [vmem:[%s4 + $0x60] sm:$0xff]
        %v2851 = vld [vmem:[%s4 + $0x68] sm:$0xff]
        %v2852 = vld [vmem:[%s4 + $0x70] sm:$0xff]
        %v2853 = vld [vmem:[%s4 + $0x78] sm:$0xff]
        %v2854 = vld [vmem:[%s4 + $0x80] sm:$0xff]
        %v2855 = vld [vmem:[%s4 + $0x88] sm:$0xff]
        %v2856 = vld [vmem:[%s4 + $0x90] sm:$0xff]
        %v2857 = vld [vmem:[%s4 + $0x98] sm:$0xff]
        %v2858 = vld [vmem:[%s4 + $0xa0] sm:$0xff]
        %v2859 = vld [vmem:[%s4 + $0xa8] sm:$0xff]
        %v2860 = vld [vmem:[%s4 + $0xb0] sm:$0xff]
        %v2861 = vld [vmem:[%s4 + $0xb8] sm:$0xff]
        %v2862 = vld [vmem:[%s4 + $0xc0] sm:$0xff]
        %v2863 = vld [vmem:[%s4 + $0xc8] sm:$0xff]
        %v2865 = vsel %vm2649, %v2839, 0
        %v2868 = vsel %vm2649, %v2841, 0
        %v2871 = vsel %vm2649, %v2843, 0
        %v2874 = vsel %vm2649, %v2845, 0
        %v2877 = vsel %vm2649, %v2847, 0
        %v2880 = vsel %vm2649, %v2849, 0
        %v2883 = vsel %vm2649, %v2851, 0
        %v2886 = vsel %vm2649, %v2853, 0
        %v2889 = vsel %vm2649, %v2855, 0
        %v2892 = vsel %vm2649, %v2857, 0
        %v2895 = vsel %vm2649, %v2859, 0
        %v2898 = vsel %vm2649, %v2861, 0
        %v2901 = vsel %vm2649, %v2863, 0
        %2903 = vmatprep.subr.mxu0 %v2598
        %2904 = vmatpush1.msra.mxu0 %v2597
        %2905 = vmatprep.subr.mxu0 %v2596
        %2906 = vmatpush1.msra.mxu0 %v2595
        %2907 = vmatprep.subr.mxu0 %v2594
        %2908 = vmatpush1.msra.mxu0 %v2593
        %2909 = vmatprep.subr.mxu0 %v2592
        %2910 = vmatpush1.msra.mxu0 %v2591
        %2911 = vmatprep.subr.mxu0 %v2590
        %2912 = vmatpush1.msra.mxu0 %v2589
        %2913 = vmatprep.subr.mxu0 %v2588
        %2914 = vmatpush1.msra.mxu0 %v2587
        %2915 = vmatprep.subr.mxu0 %v2586
        %2916 = vmatpush1.msra.mxu0 %v2585
        %2917 = vmatprep.subr.mxu0 %v2584
        %2918 = vmatpush1.msra.mxu0 %v2583
        %2919 = vmatprep.subr.mxu0 %v2582
        %2920 = vmatpush1.msra.mxu0 %v2581
        %2921 = vmatprep.subr.mxu0 %v2580
        %2922 = vmatpush1.msra.mxu0 %v2579
        %2923 = vmatprep.subr.mxu0 %v2578
        %2924 = vmatpush1.msra.mxu0 %v2577
        %2925 = vmatprep.subr.mxu0 %v2576
        %2926 = vmatpush1.msra.mxu0 %v2575
        %2927 = vmatprep.subr.mxu0 %v2574
        %2928 = vmatpush1.msra.mxu0 %v2573
        %2929 = vmatprep.subr.mxu0 %v2572
        %2930 = vmatpush1.msra.mxu0 %v2571
        %2931 = vmatprep.subr.mxu0 %v2570
        %2932 = vmatpush1.msra.mxu0 %v2569
        %2933 = vmatprep.subr.mxu0 %v2568
        %2934 = vmatpush1.msra.mxu0 %v2567
        %2935 = vmatprep.subr.mxu0 0.0
        %2936 = vmatpush2.msra.mxu0 0.0
        %2937 = vmatprep.subr.mxu0 0.0
        %2938 = vmatpush2.msra.mxu0 0.0
        %2939 = vmatprep.subr.mxu0 0.0
        %2940 = vmatpush2.msra.mxu0 0.0
        %2941 = vmatprep.subr.mxu0 0.0
        %2942 = vmatpush2.msra.mxu0 0.0
        %2943 = vmatprep.subr.mxu0 %v2693
        %2944 = vmatpush2.msra.mxu0 %v2690
        %2945 = vmatprep.subr.mxu0 %v2620
        %2946 = vmatpush2.msra.mxu0 %v2619
        %2947 = vmatprep.subr.mxu0 %v2618
        %2948 = vmatpush2.msra.mxu0 %v2617
        %2949 = vmatprep.subr.mxu0 %v2616
        %2950 = vmatpush2.msra.mxu0 %v2615
        %2951 = vmatprep.subr.mxu0 %v2614
        %2952 = vmatpush2.msra.mxu0 %v2613
        %2953 = vmatprep.subr.mxu0 %v2612
        %2954 = vmatpush2.msra.mxu0 %v2611
        %2955 = vmatprep.subr.mxu0 %v2610
        %2956 = vmatpush2.msra.mxu0 %v2609
        %2957 = vmatprep.subr.mxu0 %v2608
        %2958 = vmatpush2.msra.mxu0 %v2607
        %2959 = vmatprep.subr.mxu0 %v2606
        %2960 = vmatpush2.msra.mxu0 %v2605
        %2961 = vmatprep.subr.mxu0 %v2604
        %2962 = vmatpush2.msra.mxu0 %v2603
        %2963 = vmatprep.subr.mxu0 %v2602
        %2964 = vmatpush2.msra.mxu0 %v2601
        %2965 = vmatprep.subr.mxu0 %v2600
        %2966 = vmatpush2.msra.mxu0 %v2599
        %2967 = vmatprep.mubr.f32.mxu0 %v2865
        %2968 = vmatmul.mubr.f32.gmra.mxu0 %v2838
        %v2969 = vpop.f32.mrf.mxu0
        %v2970 = vadd.f32 0.0, %v2969
        %v2971 = vpop.f32.mrf.mxu0
        %v2972 = vadd.f32 0.0, %v2971
        %2973 = vmatprep.mubr.f32.mxu0 %v2868
        %2974 = vmatmul.mubr.f32.gmra.mxu0 %v2840
        %v2975 = vpop.f32.mrf.mxu0
        %v2976 = vadd.f32 0.0, %v2975
        %v2977 = vpop.f32.mrf.mxu0
        %v2978 = vadd.f32 0.0, %v2977
        %2979 = vmatprep.mubr.f32.mxu0 %v2871
        %2980 = vmatmul.mubr.f32.gmra.mxu0 %v2842
        %v2981 = vpop.f32.mrf.mxu0
        %v2982 = vadd.f32 0.0, %v2981
        %v2983 = vpop.f32.mrf.mxu0
        %v2984 = vadd.f32 0.0, %v2983
        %2985 = vmatprep.mubr.f32.mxu0 %v2874
        %2986 = vmatmul.mubr.f32.gmra.mxu0 %v2844
        %v2987 = vpop.f32.mrf.mxu0
        %v2988 = vadd.f32 0.0, %v2987
        %v2989 = vpop.f32.mrf.mxu0
        %v2990 = vadd.f32 0.0, %v2989
        %2991 = vmatprep.mubr.f32.mxu0 %v2877
        %2992 = vmatmul.mubr.f32.gmra.mxu0 %v2846
        %v2993 = vpop.f32.mrf.mxu0
        %v2994 = vadd.f32 0.0, %v2993
        %v2995 = vpop.f32.mrf.mxu0
        %v2996 = vadd.f32 0.0, %v2995
        %2997 = vmatprep.mubr.f32.mxu0 %v2880
        %2998 = vmatmul.mubr.f32.gmra.mxu0 %v2848
        %v2999 = vpop.f32.mrf.mxu0
        %v3000 = vadd.f32 0.0, %v2999
        %v3001 = vpop.f32.mrf.mxu0
        %v3002 = vadd.f32 0.0, %v3001
        %3003 = vmatprep.mubr.f32.mxu0 %v2883
        %3004 = vmatmul.mubr.f32.gmra.mxu0 %v2850
        %v3005 = vpop.f32.mrf.mxu0
        %v3006 = vadd.f32 0.0, %v3005
        %v3007 = vpop.f32.mrf.mxu0
        %v3008 = vadd.f32 0.0, %v3007
        %3009 = vmatprep.mubr.f32.mxu0 %v2886
        %3010 = vmatmul.mubr.f32.gmra.mxu0 %v2852
        %v3011 = vpop.f32.mrf.mxu0
        %v3012 = vadd.f32 0.0, %v3011
        %v3013 = vpop.f32.mrf.mxu0
        %v3014 = vadd.f32 0.0, %v3013
        %3015 = vmatprep.mubr.f32.mxu0 %v2889
        %3016 = vmatmul.mubr.f32.gmra.mxu0 %v2854
        %v3017 = vpop.f32.mrf.mxu0
        %v3018 = vadd.f32 0.0, %v3017
        %v3019 = vpop.f32.mrf.mxu0
        %v3020 = vadd.f32 0.0, %v3019
        %3021 = vmatprep.mubr.f32.mxu0 %v2892
        %3022 = vmatmul.mubr.f32.gmra.mxu0 %v2856
        %v3023 = vpop.f32.mrf.mxu0
        %v3024 = vadd.f32 0.0, %v3023
        %v3025 = vpop.f32.mrf.mxu0
        %v3026 = vadd.f32 0.0, %v3025
        %3027 = vmatprep.mubr.f32.mxu0 %v2895
        %3028 = vmatmul.mubr.f32.gmra.mxu0 %v2858
        %v3029 = vpop.f32.mrf.mxu0
        %v3030 = vadd.f32 0.0, %v3029
        %v3031 = vpop.f32.mrf.mxu0
        %v3032 = vadd.f32 0.0, %v3031
        %3033 = vmatprep.mubr.f32.mxu0 %v2898
        %3034 = vmatmul.mubr.f32.gmra.mxu0 %v2860
        %v3035 = vpop.f32.mrf.mxu0
        %v3036 = vadd.f32 0.0, %v3035
        %v3037 = vpop.f32.mrf.mxu0
        %v3038 = vadd.f32 0.0, %v3037
        %3039 = vmatprep.mubr.f32.mxu0 %v2901
        %3040 = vmatmul.mubr.f32.gmra.mxu0 %v2862
        %v3041 = vpop.f32.mrf.mxu0
        %v3042 = vadd.f32 0.0, %v3041
        %v3043 = vpop.f32.mrf.mxu0
        %v3044 = vadd.f32 0.0, %v3043
        %3045 = vdwg.mxu0
        %v3046 = vmax.f32 %v2762, %v2970
        %v3047 = vmax.f32 %v2764, %v2972
        %v3048 = vmax.f32 %v2768, %v2976
        %v3049 = vmax.f32 %v2770, %v2978
        %v3050 = vmax.f32 %v2774, %v2982
        %v3051 = vmax.f32 %v2776, %v2984
        %v3052 = vmax.f32 %v2780, %v2988
        %v3053 = vmax.f32 %v2782, %v2990
        %v3054 = vmax.f32 %v2786, %v2994
        %v3055 = vmax.f32 %v2788, %v2996
        %v3056 = vmax.f32 %v2792, %v3000
        %v3057 = vmax.f32 %v2794, %v3002
        %v3058 = vmax.f32 %v2798, %v3006
        %v3059 = vmax.f32 %v2800, %v3008
        %v3060 = vmax.f32 %v2804, %v3012
        %v3061 = vmax.f32 %v2806, %v3014
        %v3062 = vmax.f32 %v2810, %v3018
        %v3063 = vmax.f32 %v2812, %v3020
        %v3064 = vmax.f32 %v2816, %v3024
        %v3065 = vmax.f32 %v2818, %v3026
        %v3066 = vmax.f32 %v2822, %v3030
        %v3067 = vmax.f32 %v2824, %v3032
        %v3068 = vmax.f32 %v2828, %v3036
        %v3069 = vmax.f32 %v2830, %v3038
        %v3070 = vmax.f32 %v2834, %v3042
        %v3071 = vmax.f32 %v2836, %v3044
        %v3072 = vld [vmem:[%s5] sm:$0xff]
        %v3073 = vld [vmem:[%s5 + $0x8] sm:$0xff]
        %v3074 = vld [vmem:[%s5 + $0x10] sm:$0xff]
        %v3075 = vld [vmem:[%s5 + $0x18] sm:$0xff]
        %v3076 = vld [vmem:[%s5 + $0x20] sm:$0xff]
        %v3077 = vld [vmem:[%s5 + $0x28] sm:$0xff]
        %v3078 = vld [vmem:[%s5 + $0x30] sm:$0xff]
        %v3079 = vld [vmem:[%s5 + $0x38] sm:$0xff]
        %v3080 = vld [vmem:[%s5 + $0x40] sm:$0xff]
        %v3081 = vld [vmem:[%s5 + $0x48] sm:$0xff]
        %v3082 = vld [vmem:[%s5 + $0x50] sm:$0xff]
        %v3083 = vld [vmem:[%s5 + $0x58] sm:$0xff]
        %v3084 = vld [vmem:[%s5 + $0x60] sm:$0xff]
        %v3085 = vld [vmem:[%s5 + $0x68] sm:$0xff]
        %v3086 = vld [vmem:[%s5 + $0x70] sm:$0xff]
        %v3087 = vld [vmem:[%s5 + $0x78] sm:$0xff]
        %v3088 = vld [vmem:[%s5 + $0x80] sm:$0xff]
        %v3089 = vld [vmem:[%s5 + $0x88] sm:$0xff]
        %v3090 = vld [vmem:[%s5 + $0x90] sm:$0xff]
        %v3091 = vld [vmem:[%s5 + $0x98] sm:$0xff]
        %v3092 = vld [vmem:[%s5 + $0xa0] sm:$0xff]
        %v3093 = vld [vmem:[%s5 + $0xa8] sm:$0xff]
        %v3094 = vld [vmem:[%s5 + $0xb0] sm:$0xff]
        %v3095 = vld [vmem:[%s5 + $0xb8] sm:$0xff]
        %v3096 = vld [vmem:[%s5 + $0xc0] sm:$0xff]
        %v3097 = vld [vmem:[%s5 + $0xc8] sm:$0xff]
        %v3098 = vld [vmem:[%s5 + $0xd0] sm:$0xff]
        %v3099 = vld [vmem:[%s5 + $0xd8] sm:$0xff]
        %v3100 = vld [vmem:[%s5 + $0xe0] sm:$0xff]
        %v3101 = vld [vmem:[%s5 + $0xe8] sm:$0xff]
        %v3102 = vld [vmem:[%s5 + $0xf0] sm:$0xff]
        %v3103 = vld [vmem:[%s5 + $0xf8] sm:$0xff]
        %v3104 = vld [vmem:[%s5 + $0x100] sm:$0xff]
        %v3105 = vld [vmem:[%s5 + $0x108] sm:$0xff]
        %v3106 = vld [vmem:[%s5 + $0x110] sm:$0xff]
        %v3107 = vld [vmem:[%s5 + $0x118] sm:$0xff]
        %v3108 = vld [vmem:[%s5 + $0x120] sm:$0xff]
        %v3109 = vld [vmem:[%s5 + $0x128] sm:$0xff]
        %v3110 = vld [vmem:[%s5 + $0x130] sm:$0xff]
        %v3111 = vld [vmem:[%s5 + $0x138] sm:$0xff]
        %v3112 = vld [vmem:[%s5 + $0x140] sm:$0xff]
        %v3113 = vld [vmem:[%s5 + $0x148] sm:$0xff]
        %v3114 = vld [vmem:[%s5 + $0x150] sm:$0xff]
        %v3115 = vld [vmem:[%s5 + $0x158] sm:$0xff]
        %v3116 = vld [vmem:[%s5 + $0x160] sm:$0xff]
        %v3117 = vld [vmem:[%s5 + $0x168] sm:$0xff]
        %v3118 = vld [vmem:[%s5 + $0x170] sm:$0xff]
        %v3119 = vld [vmem:[%s5 + $0x178] sm:$0xff]
        %v3120 = vld [vmem:[%s5 + $0x180] sm:$0xff]
        %v3121 = vld [vmem:[%s5 + $0x188] sm:$0xff]
        %v3122 = vld [vmem:[%s5 + $0x190] sm:$0xff]
        %v3123 = vld [vmem:[%s5 + $0x198] sm:$0xff]
        %v3124 = vld [vmem:[%s5 + $0x1a0] sm:$0xff]
        %v3125 = vld [vmem:[%s5 + $0x1a8] sm:$0xff]
        %v3126 = vld [vmem:[%s5 + $0x1b0] sm:$0xff]
        %v3127 = vld [vmem:[%s5 + $0x1b8] sm:$0xff]
        %v3128 = vld [vmem:[%s5 + $0x1c0] sm:$0xff]
        %v3129 = vld [vmem:[%s5 + $0x1c8] sm:$0xff]
        %v3130 = vld [vmem:[%s5 + $0x1d0] sm:$0xff]
        %v3131 = vld [vmem:[%s5 + $0x1d8] sm:$0xff]
        %v3132 = vld [vmem:[%s5 + $0x1e0] sm:$0xff]
        %v3133 = vld [vmem:[%s5 + $0x1e8] sm:$0xff]
        %v3134 = vld [vmem:[%s5 + $0x1f0] sm:$0xff]
        %v3135 = vld [vmem:[%s5 + $0x1f8] sm:$0xff]
        %v3136 = vld [vmem:[%s5 + $0x200] sm:$0xff]
        %v3137 = vld [vmem:[%s5 + $0x208] sm:$0xff]
        %v3138 = vld [vmem:[%s5 + $0x210] sm:$0xff]
        %v3139 = vld [vmem:[%s5 + $0x218] sm:$0xff]
        %v3140 = vld [vmem:[%s5 + $0x220] sm:$0xff]
        %v3141 = vld [vmem:[%s5 + $0x228] sm:$0xff]
        %v3142 = vld [vmem:[%s5 + $0x230] sm:$0xff]
        %v3143 = vld [vmem:[%s5 + $0x238] sm:$0xff]
        %v3144 = vld [vmem:[%s5 + $0x240] sm:$0xff]
        %v3145 = vld [vmem:[%s5 + $0x248] sm:$0xff]
        %v3146 = vld [vmem:[%s5 + $0x250] sm:$0xff]
        %v3147 = vld [vmem:[%s5 + $0x258] sm:$0xff]
        %v3148 = vld [vmem:[%s5 + $0x260] sm:$0xff]
        %v3149 = vld [vmem:[%s5 + $0x268] sm:$0xff]
        %v3150 = vld [vmem:[%s5 + $0x270] sm:$0xff]
        %v3151 = vld [vmem:[%s5 + $0x278] sm:$0xff]
        %v3152 = vld [vmem:[%s5 + $0x280] sm:$0xff]
        %v3153 = vld [vmem:[%s5 + $0x288] sm:$0xff]
        %v3154 = vld [vmem:[%s5 + $0x290] sm:$0xff]
        %v3155 = vld [vmem:[%s5 + $0x298] sm:$0xff]
        %v3156 = vld [vmem:[%s5 + $0x2a0] sm:$0xff]
        %v3157 = vld [vmem:[%s5 + $0x2a8] sm:$0xff]
        %v3158 = vld [vmem:[%s5 + $0x2b0] sm:$0xff]
        %v3159 = vld [vmem:[%s5 + $0x2b8] sm:$0xff]
        %v3160 = vld [vmem:[%s5 + $0x2c0] sm:$0xff]
        %v3161 = vld [vmem:[%s5 + $0x2c8] sm:$0xff]
        %v3162 = vld [vmem:[%s5 + $0x2d0] sm:$0xff]
        %v3163 = vld [vmem:[%s5 + $0x2d8] sm:$0xff]
        %v3164 = vld [vmem:[%s5 + $0x2e0] sm:$0xff]
        %v3165 = vld [vmem:[%s5 + $0x2e8] sm:$0xff]
        %v3166 = vld [vmem:[%s5 + $0x2f0] sm:$0xff]
        %v3167 = vld [vmem:[%s5 + $0x2f8] sm:$0xff]
        %v3168 = vld [vmem:[%s5 + $0x300] sm:$0xff]
        %v3169 = vld [vmem:[%s5 + $0x308] sm:$0xff]
        %v3170 = vld [vmem:[%s5 + $0x310] sm:$0xff]
        %v3171 = vld [vmem:[%s5 + $0x318] sm:$0xff]
        %v3172 = vld [vmem:[%s5 + $0x320] sm:$0xff]
        %v3173 = vld [vmem:[%s5 + $0x328] sm:$0xff]
        %v3174 = vld [vmem:[%s5 + $0x330] sm:$0xff]
        %v3175 = vld [vmem:[%s5 + $0x338] sm:$0xff]
        %s3176 = scalar_lea.vmem %s5, 832
        %v3177 = vld [vmem:[%s3176] sm:$0xff]
        %v3178 = vld [vmem:[%s3176 + $0x8] sm:$0xff]
        %v3179 = vld [vmem:[%s3176 + $0x10] sm:$0xff]
        %v3180 = vld [vmem:[%s3176 + $0x18] sm:$0xff]
        %v3181 = vld [vmem:[%s3176 + $0x20] sm:$0xff]
        %v3182 = vld [vmem:[%s3176 + $0x28] sm:$0xff]
        %v3183 = vld [vmem:[%s3176 + $0x30] sm:$0xff]
        %v3184 = vld [vmem:[%s3176 + $0x38] sm:$0xff]
        %v3185 = vld [vmem:[%s3176 + $0x40] sm:$0xff]
        %v3186 = vld [vmem:[%s3176 + $0x48] sm:$0xff]
        %v3187 = vld [vmem:[%s3176 + $0x50] sm:$0xff]
        %v3188 = vld [vmem:[%s3176 + $0x58] sm:$0xff]
        %v3189 = vld [vmem:[%s3176 + $0x60] sm:$0xff]
        %v3190 = vld [vmem:[%s3176 + $0x68] sm:$0xff]
        %v3191 = vld [vmem:[%s3176 + $0x70] sm:$0xff]
        %v3192 = vld [vmem:[%s3176 + $0x78] sm:$0xff]
        %v3193 = vld [vmem:[%s3176 + $0x80] sm:$0xff]
        %v3194 = vld [vmem:[%s3176 + $0x88] sm:$0xff]
        %v3195 = vld [vmem:[%s3176 + $0x90] sm:$0xff]
        %v3196 = vld [vmem:[%s3176 + $0x98] sm:$0xff]
        %v3197 = vld [vmem:[%s3176 + $0xa0] sm:$0xff]
        %v3198 = vld [vmem:[%s3176 + $0xa8] sm:$0xff]
        %v3199 = vld [vmem:[%s3176 + $0xb0] sm:$0xff]
        %v3200 = vld [vmem:[%s3176 + $0xb8] sm:$0xff]
        %v3201 = vld [vmem:[%s3176 + $0xc0] sm:$0xff]
        %v3202 = vld [vmem:[%s3176 + $0xc8] sm:$0xff]
        %v3203 = vld [vmem:[%s3176 + $0xd0] sm:$0xff]
        %v3204 = vld [vmem:[%s3176 + $0xd8] sm:$0xff]
        %v3205 = vld [vmem:[%s3176 + $0xe0] sm:$0xff]
        %v3206 = vld [vmem:[%s3176 + $0xe8] sm:$0xff]
        %v3207 = vld [vmem:[%s3176 + $0xf0] sm:$0xff]
        %v3208 = vld [vmem:[%s3176 + $0xf8] sm:$0xff]
        %v3209 = vld [vmem:[%s3176 + $0x100] sm:$0xff]
        %v3210 = vld [vmem:[%s3176 + $0x108] sm:$0xff]
        %v3211 = vld [vmem:[%s3176 + $0x110] sm:$0xff]
        %v3212 = vld [vmem:[%s3176 + $0x118] sm:$0xff]
        %v3213 = vld [vmem:[%s3176 + $0x120] sm:$0xff]
        %v3214 = vld [vmem:[%s3176 + $0x128] sm:$0xff]
        %v3215 = vld [vmem:[%s3176 + $0x130] sm:$0xff]
        %v3216 = vld [vmem:[%s3176 + $0x138] sm:$0xff]
        %v3217 = vld [vmem:[%s3176 + $0x140] sm:$0xff]
        %v3218 = vld [vmem:[%s3176 + $0x148] sm:$0xff]
        %v3219 = vld [vmem:[%s3176 + $0x150] sm:$0xff]
        %v3220 = vld [vmem:[%s3176 + $0x158] sm:$0xff]
        %v3221 = vld [vmem:[%s3176 + $0x160] sm:$0xff]
        %v3222 = vld [vmem:[%s3176 + $0x168] sm:$0xff]
        %v3223 = vld [vmem:[%s3176 + $0x170] sm:$0xff]
        %v3224 = vld [vmem:[%s3176 + $0x178] sm:$0xff]
        %v3225 = vld [vmem:[%s3176 + $0x180] sm:$0xff]
        %v3226 = vld [vmem:[%s3176 + $0x188] sm:$0xff]
        %v3227 = vld [vmem:[%s3176 + $0x190] sm:$0xff]
        %v3228 = vld [vmem:[%s3176 + $0x198] sm:$0xff]
        %v3229 = vld [vmem:[%s3176 + $0x1a0] sm:$0xff]
        %v3230 = vld [vmem:[%s3176 + $0x1a8] sm:$0xff]
        %v3231 = vld [vmem:[%s3176 + $0x1b0] sm:$0xff]
        %v3232 = vld [vmem:[%s3176 + $0x1b8] sm:$0xff]
        %v3233 = vld [vmem:[%s3176 + $0x1c0] sm:$0xff]
        %v3234 = vld [vmem:[%s3176 + $0x1c8] sm:$0xff]
        %v3235 = vld [vmem:[%s3176 + $0x1d0] sm:$0xff]
        %v3236 = vld [vmem:[%s3176 + $0x1d8] sm:$0xff]
        %v3237 = vld [vmem:[%s3176 + $0x1e0] sm:$0xff]
        %v3238 = vld [vmem:[%s3176 + $0x1e8] sm:$0xff]
        %v3239 = vld [vmem:[%s3176 + $0x1f0] sm:$0xff]
        %v3240 = vld [vmem:[%s3176 + $0x1f8] sm:$0xff]
        %v3241 = vld [vmem:[%s3176 + $0x200] sm:$0xff]
        %v3242 = vld [vmem:[%s3176 + $0x208] sm:$0xff]
        %v3243 = vld [vmem:[%s3176 + $0x210] sm:$0xff]
        %v3244 = vld [vmem:[%s3176 + $0x218] sm:$0xff]
        %v3245 = vld [vmem:[%s3176 + $0x220] sm:$0xff]
        %v3246 = vld [vmem:[%s3176 + $0x228] sm:$0xff]
        %v3247 = vld [vmem:[%s3176 + $0x230] sm:$0xff]
        %v3248 = vld [vmem:[%s3176 + $0x238] sm:$0xff]
        %v3249 = vld [vmem:[%s3176 + $0x240] sm:$0xff]
        %v3250 = vld [vmem:[%s3176 + $0x248] sm:$0xff]
        %v3251 = vld [vmem:[%s3176 + $0x250] sm:$0xff]
        %v3252 = vld [vmem:[%s3176 + $0x258] sm:$0xff]
        %v3253 = vld [vmem:[%s3176 + $0x260] sm:$0xff]
        %v3254 = vld [vmem:[%s3176 + $0x268] sm:$0xff]
        %v3255 = vld [vmem:[%s3176 + $0x270] sm:$0xff]
        %v3256 = vld [vmem:[%s3176 + $0x278] sm:$0xff]
        %v3257 = vld [vmem:[%s3176 + $0x280] sm:$0xff]
        %v3258 = vld [vmem:[%s3176 + $0x288] sm:$0xff]
        %v3259 = vld [vmem:[%s3176 + $0x290] sm:$0xff]
        %v3260 = vld [vmem:[%s3176 + $0x298] sm:$0xff]
        %v3261 = vld [vmem:[%s3176 + $0x2a0] sm:$0xff]
        %v3262 = vld [vmem:[%s3176 + $0x2a8] sm:$0xff]
        %v3263 = vld [vmem:[%s3176 + $0x2b0] sm:$0xff]
        %v3264 = vld [vmem:[%s3176 + $0x2b8] sm:$0xff]
        %v3265 = vld [vmem:[%s3176 + $0x2c0] sm:$0xff]
        %v3266 = vld [vmem:[%s3176 + $0x2c8] sm:$0xff]
        %v3267 = vld [vmem:[%s3176 + $0x2d0] sm:$0xff]
        %v3268 = vld [vmem:[%s3176 + $0x2d8] sm:$0xff]
        %v3269 = vld [vmem:[%s3176 + $0x2e0] sm:$0xff]
        %v3270 = vld [vmem:[%s3176 + $0x2e8] sm:$0xff]
        %v3271 = vld [vmem:[%s3176 + $0x2f0] sm:$0xff]
        %v3272 = vld [vmem:[%s3176 + $0x2f8] sm:$0xff]
        %v3273 = vld [vmem:[%s3176 + $0x300] sm:$0xff]
        %v3274 = vld [vmem:[%s3176 + $0x308] sm:$0xff]
        %v3275 = vld [vmem:[%s3176 + $0x310] sm:$0xff]
        %v3276 = vld [vmem:[%s3176 + $0x318] sm:$0xff]
        %v3277 = vld [vmem:[%s3176 + $0x320] sm:$0xff]
        %v3278 = vld [vmem:[%s3176 + $0x328] sm:$0xff]
        %v3279 = vld [vmem:[%s3176 + $0x330] sm:$0xff]
        %v3280 = vld [vmem:[%s3176 + $0x338] sm:$0xff]
        %v3307 = vrot.slane %v3046, 1
        %v3308 = vrot.slane %v3048, 1
        %v3309 = vsel %vm476, %v3307, %v3308
        %v3310 = vrot.slane %v3047, 1
        %v3311 = vrot.slane %v3049, 1
        %v3312 = vsel %vm476, %v3310, %v3311
        %v3313 = vrot.slane %v3050, 1
        %v3314 = vsel %vm476, %v3308, %v3313
        %v3315 = vrot.slane %v3051, 1
        %v3316 = vsel %vm476, %v3311, %v3315
        %v3317 = vrot.slane %v3052, 1
        %v3318 = vsel %vm476, %v3313, %v3317
        %v3319 = vrot.slane %v3053, 1
        %v3320 = vsel %vm476, %v3315, %v3319
        %v3321 = vrot.slane %v3054, 1
        %v3322 = vsel %vm476, %v3317, %v3321
        %v3323 = vrot.slane %v3055, 1
        %v3324 = vsel %vm476, %v3319, %v3323
        %v3325 = vrot.slane %v3056, 1
        %v3326 = vsel %vm476, %v3321, %v3325
        %v3327 = vrot.slane %v3057, 1
        %v3328 = vsel %vm476, %v3323, %v3327
        %v3329 = vrot.slane %v3058, 1
        %v3330 = vsel %vm476, %v3325, %v3329
        %v3331 = vrot.slane %v3059, 1
        %v3332 = vsel %vm476, %v3327, %v3331
        %v3333 = vrot.slane %v3060, 1
        %v3334 = vsel %vm476, %v3329, %v3333
        %v3335 = vrot.slane %v3061, 1
        %v3336 = vsel %vm476, %v3331, %v3335
        %v3337 = vrot.slane %v3062, 1
        %v3338 = vsel %vm476, %v3333, %v3337
        %v3339 = vrot.slane %v3063, 1
        %v3340 = vsel %vm476, %v3335, %v3339
        %v3341 = vrot.slane %v3064, 1
        %v3342 = vsel %vm476, %v3337, %v3341
        %v3343 = vrot.slane %v3065, 1
        %v3344 = vsel %vm476, %v3339, %v3343
        %v3345 = vrot.slane %v3066, 1
        %v3346 = vsel %vm476, %v3341, %v3345
        %v3347 = vrot.slane %v3067, 1
        %v3348 = vsel %vm476, %v3343, %v3347
        %v3349 = vrot.slane %v3068, 1
        %v3350 = vsel %vm476, %v3345, %v3349
        %v3351 = vrot.slane %v3069, 1
        %v3352 = vsel %vm476, %v3347, %v3351
        %v3353 = vrot.slane %v3070, 1
        %v3354 = vsel %vm476, %v3349, %v3353
        %v3355 = vrot.slane %v3071, 1
        %v3356 = vsel %vm476, %v3351, %v3355
        %vm3370 = vcmask 654336
        %v3371 = vsel %vm3370, %v3312, 0
        %v3373 = vsel %vm3370, %v3316, 0
        %v3375 = vsel %vm3370, %v3320, 0
        %v3377 = vsel %vm3370, %v3324, 0
        %v3379 = vsel %vm3370, %v3328, 0
        %v3381 = vsel %vm3370, %v3332, 0
        %v3383 = vsel %vm3370, %v3336, 0
        %v3385 = vsel %vm3370, %v3340, 0
        %v3387 = vsel %vm3370, %v3344, 0
        %v3389 = vsel %vm3370, %v3348, 0
        %v3391 = vsel %vm3370, %v3352, 0
        %v3393 = vsel %vm3370, %v3356, 0
        %v3395 = vsel %vm3370, %v3355, 0
        %3397 = vmatprep.subr.mxu0 %v3238
        %3398 = vmatpush1.msra.mxu0 %v3237
        %3399 = vmatprep.subr.mxu0 %v3234
        %3400 = vmatpush1.msra.mxu0 %v3233
        %3401 = vmatprep.subr.mxu0 %v3230
        %3402 = vmatpush1.msra.mxu0 %v3229
        %3403 = vmatprep.subr.mxu0 %v3226
        %3404 = vmatpush1.msra.mxu0 %v3225
        %3405 = vmatprep.subr.mxu0 %v3222
        %3406 = vmatpush1.msra.mxu0 %v3221
        %3407 = vmatprep.subr.mxu0 %v3218
        %3408 = vmatpush1.msra.mxu0 %v3217
        %3409 = vmatprep.subr.mxu0 %v3214
        %3410 = vmatpush1.msra.mxu0 %v3213
        %3411 = vmatprep.subr.mxu0 %v3210
        %3412 = vmatpush1.msra.mxu0 %v3209
        %3413 = vmatprep.subr.mxu0 %v3206
        %3414 = vmatpush1.msra.mxu0 %v3205
        %3415 = vmatprep.subr.mxu0 %v3202
        %3416 = vmatpush1.msra.mxu0 %v3201
        %3417 = vmatprep.subr.mxu0 %v3198
        %3418 = vmatpush1.msra.mxu0 %v3197
        %3419 = vmatprep.subr.mxu0 %v3194
        %3420 = vmatpush1.msra.mxu0 %v3193
        %3421 = vmatprep.subr.mxu0 %v3190
        %3422 = vmatpush1.msra.mxu0 %v3189
        %3423 = vmatprep.subr.mxu0 %v3186
        %3424 = vmatpush1.msra.mxu0 %v3185
        %3425 = vmatprep.subr.mxu0 %v3182
        %3426 = vmatpush1.msra.mxu0 %v3181
        %3427 = vmatprep.subr.mxu0 %v3178
        %3428 = vmatpush1.msra.mxu0 %v3177
        %3429 = vmatprep.subr.mxu0 0.0
        %3430 = vmatpush2.msra.mxu0 0.0
        %3431 = vmatprep.subr.mxu0 0.0
        %3432 = vmatpush2.msra.mxu0 0.0
        %3433 = vmatprep.subr.mxu0 0.0
        %3434 = vmatpush2.msra.mxu0 0.0
        %3435 = vmatprep.subr.mxu0 0.0
        %3436 = vmatpush2.msra.mxu0 0.0
        %3437 = vmatprep.subr.mxu0 0.0
        %3438 = vmatpush2.msra.mxu0 0.0
        %3439 = vmatprep.subr.mxu0 0.0
        %3440 = vmatpush2.msra.mxu0 0.0
        %3441 = vmatprep.subr.mxu0 %v3278
        %3442 = vmatpush2.msra.mxu0 %v3277
        %3443 = vmatprep.subr.mxu0 %v3274
        %3444 = vmatpush2.msra.mxu0 %v3273
        %3445 = vmatprep.subr.mxu0 %v3270
        %3446 = vmatpush2.msra.mxu0 %v3269
        %3447 = vmatprep.subr.mxu0 %v3266
        %3448 = vmatpush2.msra.mxu0 %v3265
        %3449 = vmatprep.subr.mxu0 %v3262
        %3450 = vmatpush2.msra.mxu0 %v3261
        %3451 = vmatprep.subr.mxu0 %v3258
        %3452 = vmatpush2.msra.mxu0 %v3257
        %3453 = vmatprep.subr.mxu0 %v3254
        %3454 = vmatpush2.msra.mxu0 %v3253
        %3455 = vmatprep.subr.mxu0 %v3250
        %3456 = vmatpush2.msra.mxu0 %v3249
        %3457 = vmatprep.subr.mxu0 %v3246
        %3458 = vmatpush2.msra.mxu0 %v3245
        %3459 = vmatprep.subr.mxu0 %v3242
        %3460 = vmatpush2.msra.mxu0 %v3241
        %3461 = vmatprep.mubr.f32.mxu0 %v3371
        %3462 = vmatmul.mubr.f32.gmra.mxu0 %v3309
        %v3463 = vpop.f32.mrf.mxu0
        %v3464 = vadd.f32 0.0, %v3463
        %v3465 = vpop.f32.mrf.mxu0
        %v3466 = vadd.f32 0.0, %v3465
        %3467 = vmatprep.mubr.f32.mxu0 %v3373
        %3468 = vmatmul.mubr.f32.gmra.mxu0 %v3314
        %v3469 = vpop.f32.mrf.mxu0
        %v3470 = vadd.f32 0.0, %v3469
        %v3471 = vpop.f32.mrf.mxu0
        %v3472 = vadd.f32 0.0, %v3471
        %3473 = vmatprep.mubr.f32.mxu0 %v3375
        %3474 = vmatmul.mubr.f32.gmra.mxu0 %v3318
        %v3475 = vpop.f32.mrf.mxu0
        %v3476 = vadd.f32 0.0, %v3475
        %v3477 = vpop.f32.mrf.mxu0
        %v3478 = vadd.f32 0.0, %v3477
        %3479 = vmatprep.mubr.f32.mxu0 %v3377
        %3480 = vmatmul.mubr.f32.gmra.mxu0 %v3322
        %v3481 = vpop.f32.mrf.mxu0
        %v3482 = vadd.f32 0.0, %v3481
        %v3483 = vpop.f32.mrf.mxu0
        %v3484 = vadd.f32 0.0, %v3483
        %3485 = vmatprep.mubr.f32.mxu0 %v3379
        %3486 = vmatmul.mubr.f32.gmra.mxu0 %v3326
        %v3487 = vpop.f32.mrf.mxu0
        %v3488 = vadd.f32 0.0, %v3487
        %v3489 = vpop.f32.mrf.mxu0
        %v3490 = vadd.f32 0.0, %v3489
        %3491 = vmatprep.mubr.f32.mxu0 %v3381
        %3492 = vmatmul.mubr.f32.gmra.mxu0 %v3330
        %v3493 = vpop.f32.mrf.mxu0
        %v3494 = vadd.f32 0.0, %v3493
        %v3495 = vpop.f32.mrf.mxu0
        %v3496 = vadd.f32 0.0, %v3495
        %3497 = vmatprep.mubr.f32.mxu0 %v3383
        %3498 = vmatmul.mubr.f32.gmra.mxu0 %v3334
        %v3499 = vpop.f32.mrf.mxu0
        %v3500 = vadd.f32 0.0, %v3499
        %v3501 = vpop.f32.mrf.mxu0
        %v3502 = vadd.f32 0.0, %v3501
        %3503 = vmatprep.mubr.f32.mxu0 %v3385
        %3504 = vmatmul.mubr.f32.gmra.mxu0 %v3338
        %v3505 = vpop.f32.mrf.mxu0
        %v3506 = vadd.f32 0.0, %v3505
        %v3507 = vpop.f32.mrf.mxu0
        %v3508 = vadd.f32 0.0, %v3507
        %3509 = vmatprep.mubr.f32.mxu0 %v3387
        %3510 = vmatmul.mubr.f32.gmra.mxu0 %v3342
        %v3511 = vpop.f32.mrf.mxu0
        %v3512 = vadd.f32 0.0, %v3511
        %v3513 = vpop.f32.mrf.mxu0
        %v3514 = vadd.f32 0.0, %v3513
        %3515 = vmatprep.mubr.f32.mxu0 %v3389
        %3516 = vmatmul.mubr.f32.gmra.mxu0 %v3346
        %v3517 = vpop.f32.mrf.mxu0
        %v3518 = vadd.f32 0.0, %v3517
        %v3519 = vpop.f32.mrf.mxu0
        %v3520 = vadd.f32 0.0, %v3519
        %3521 = vmatprep.mubr.f32.mxu0 %v3391
        %3522 = vmatmul.mubr.f32.gmra.mxu0 %v3350
        %v3523 = vpop.f32.mrf.mxu0
        %v3524 = vadd.f32 0.0, %v3523
        %v3525 = vpop.f32.mrf.mxu0
        %v3526 = vadd.f32 0.0, %v3525
        %3527 = vmatprep.mubr.f32.mxu0 %v3393
        %3528 = vmatmul.mubr.f32.gmra.mxu0 %v3354
        %v3529 = vpop.f32.mrf.mxu0
        %v3530 = vadd.f32 0.0, %v3529
        %v3531 = vpop.f32.mrf.mxu0
        %v3532 = vadd.f32 0.0, %v3531
        %3533 = vmatprep.mubr.f32.mxu0 %v3395
        %3534 = vmatmul.mubr.f32.gmra.mxu0 %v3353
        %v3535 = vpop.f32.mrf.mxu0
        %v3536 = vadd.f32 0.0, %v3535
        %v3537 = vpop.f32.mrf.mxu0
        %v3538 = vadd.f32 0.0, %v3537
        %3539 = vdwg.mxu0
        %3540 = vmatprep.subr.mxu0 %v3240
        %3541 = vmatpush1.msra.mxu0 %v3239
        %3542 = vmatprep.subr.mxu0 %v3236
        %3543 = vmatpush1.msra.mxu0 %v3235
        %3544 = vmatprep.subr.mxu0 %v3232
        %3545 = vmatpush1.msra.mxu0 %v3231
        %3546 = vmatprep.subr.mxu0 %v3228
        %3547 = vmatpush1.msra.mxu0 %v3227
        %3548 = vmatprep.subr.mxu0 %v3224
        %3549 = vmatpush1.msra.mxu0 %v3223
        %3550 = vmatprep.subr.mxu0 %v3220
        %3551 = vmatpush1.msra.mxu0 %v3219
        %3552 = vmatprep.subr.mxu0 %v3216
        %3553 = vmatpush1.msra.mxu0 %v3215
        %3554 = vmatprep.subr.mxu0 %v3212
        %3555 = vmatpush1.msra.mxu0 %v3211
        %3556 = vmatprep.subr.mxu0 %v3208
        %3557 = vmatpush1.msra.mxu0 %v3207
        %3558 = vmatprep.subr.mxu0 %v3204
        %3559 = vmatpush1.msra.mxu0 %v3203
        %3560 = vmatprep.subr.mxu0 %v3200
        %3561 = vmatpush1.msra.mxu0 %v3199
        %3562 = vmatprep.subr.mxu0 %v3196
        %3563 = vmatpush1.msra.mxu0 %v3195
        %3564 = vmatprep.subr.mxu0 %v3192
        %3565 = vmatpush1.msra.mxu0 %v3191
        %3566 = vmatprep.subr.mxu0 %v3188
        %3567 = vmatpush1.msra.mxu0 %v3187
        %3568 = vmatprep.subr.mxu0 %v3184
        %3569 = vmatpush1.msra.mxu0 %v3183
        %3570 = vmatprep.subr.mxu0 %v3180
        %3571 = vmatpush1.msra.mxu0 %v3179
        %3572 = vmatprep.subr.mxu0 0.0
        %3573 = vmatpush2.msra.mxu0 0.0
        %3574 = vmatprep.subr.mxu0 0.0
        %3575 = vmatpush2.msra.mxu0 0.0
        %3576 = vmatprep.subr.mxu0 0.0
        %3577 = vmatpush2.msra.mxu0 0.0
        %3578 = vmatprep.subr.mxu0 0.0
        %3579 = vmatpush2.msra.mxu0 0.0
        %3580 = vmatprep.subr.mxu0 0.0
        %3581 = vmatpush2.msra.mxu0 0.0
        %3582 = vmatprep.subr.mxu0 0.0
        %3583 = vmatpush2.msra.mxu0 0.0
        %3584 = vmatprep.subr.mxu0 %v3280
        %3585 = vmatpush2.msra.mxu0 %v3279
        %3586 = vmatprep.subr.mxu0 %v3276
        %3587 = vmatpush2.msra.mxu0 %v3275
        %3588 = vmatprep.subr.mxu0 %v3272
        %3589 = vmatpush2.msra.mxu0 %v3271
        %3590 = vmatprep.subr.mxu0 %v3268
        %3591 = vmatpush2.msra.mxu0 %v3267
        %3592 = vmatprep.subr.mxu0 %v3264
        %3593 = vmatpush2.msra.mxu0 %v3263
        %3594 = vmatprep.subr.mxu0 %v3260
        %3595 = vmatpush2.msra.mxu0 %v3259
        %3596 = vmatprep.subr.mxu0 %v3256
        %3597 = vmatpush2.msra.mxu0 %v3255
        %3598 = vmatprep.subr.mxu0 %v3252
        %3599 = vmatpush2.msra.mxu0 %v3251
        %3600 = vmatprep.subr.mxu0 %v3248
        %3601 = vmatpush2.msra.mxu0 %v3247
        %3602 = vmatprep.subr.mxu0 %v3244
        %3603 = vmatpush2.msra.mxu0 %v3243
        %3604 = vmatprep.mubr.f32.mxu0 %v3371
        %3605 = vmatmul.mubr.f32.gmra.mxu0 %v3309
        %v3606 = vpop.f32.mrf.mxu0
        %v3607 = vadd.f32 0.0, %v3606
        %v3608 = vpop.f32.mrf.mxu0
        %v3609 = vadd.f32 0.0, %v3608
        %3610 = vmatprep.mubr.f32.mxu0 %v3373
        %3611 = vmatmul.mubr.f32.gmra.mxu0 %v3314
        %v3612 = vpop.f32.mrf.mxu0
        %v3613 = vadd.f32 0.0, %v3612
        %v3614 = vpop.f32.mrf.mxu0
        %v3615 = vadd.f32 0.0, %v3614
        %3616 = vmatprep.mubr.f32.mxu0 %v3375
        %3617 = vmatmul.mubr.f32.gmra.mxu0 %v3318
        %v3618 = vpop.f32.mrf.mxu0
        %v3619 = vadd.f32 0.0, %v3618
        %v3620 = vpop.f32.mrf.mxu0
        %v3621 = vadd.f32 0.0, %v3620
        %3622 = vmatprep.mubr.f32.mxu0 %v3377
        %3623 = vmatmul.mubr.f32.gmra.mxu0 %v3322
        %v3624 = vpop.f32.mrf.mxu0
        %v3625 = vadd.f32 0.0, %v3624
        %v3626 = vpop.f32.mrf.mxu0
        %v3627 = vadd.f32 0.0, %v3626
        %3628 = vmatprep.mubr.f32.mxu0 %v3379
        %3629 = vmatmul.mubr.f32.gmra.mxu0 %v3326
        %v3630 = vpop.f32.mrf.mxu0
        %v3631 = vadd.f32 0.0, %v3630
        %v3632 = vpop.f32.mrf.mxu0
        %v3633 = vadd.f32 0.0, %v3632
        %3634 = vmatprep.mubr.f32.mxu0 %v3381
        %3635 = vmatmul.mubr.f32.gmra.mxu0 %v3330
        %v3636 = vpop.f32.mrf.mxu0
        %v3637 = vadd.f32 0.0, %v3636
        %v3638 = vpop.f32.mrf.mxu0
        %v3639 = vadd.f32 0.0, %v3638
        %3640 = vmatprep.mubr.f32.mxu0 %v3383
        %3641 = vmatmul.mubr.f32.gmra.mxu0 %v3334
        %v3642 = vpop.f32.mrf.mxu0
        %v3643 = vadd.f32 0.0, %v3642
        %v3644 = vpop.f32.mrf.mxu0
        %v3645 = vadd.f32 0.0, %v3644
        %3646 = vmatprep.mubr.f32.mxu0 %v3385
        %3647 = vmatmul.mubr.f32.gmra.mxu0 %v3338
        %v3648 = vpop.f32.mrf.mxu0
        %v3649 = vadd.f32 0.0, %v3648
        %v3650 = vpop.f32.mrf.mxu0
        %v3651 = vadd.f32 0.0, %v3650
        %3652 = vmatprep.mubr.f32.mxu0 %v3387
        %3653 = vmatmul.mubr.f32.gmra.mxu0 %v3342
        %v3654 = vpop.f32.mrf.mxu0
        %v3655 = vadd.f32 0.0, %v3654
        %v3656 = vpop.f32.mrf.mxu0
        %v3657 = vadd.f32 0.0, %v3656
        %3658 = vmatprep.mubr.f32.mxu0 %v3389
        %3659 = vmatmul.mubr.f32.gmra.mxu0 %v3346
        %v3660 = vpop.f32.mrf.mxu0
        %v3661 = vadd.f32 0.0, %v3660
        %v3662 = vpop.f32.mrf.mxu0
        %v3663 = vadd.f32 0.0, %v3662
        %3664 = vmatprep.mubr.f32.mxu0 %v3391
        %3665 = vmatmul.mubr.f32.gmra.mxu0 %v3350
        %v3666 = vpop.f32.mrf.mxu0
        %v3667 = vadd.f32 0.0, %v3666
        %v3668 = vpop.f32.mrf.mxu0
        %v3669 = vadd.f32 0.0, %v3668
        %3670 = vmatprep.mubr.f32.mxu0 %v3393
        %3671 = vmatmul.mubr.f32.gmra.mxu0 %v3354
        %v3672 = vpop.f32.mrf.mxu0
        %v3673 = vadd.f32 0.0, %v3672
        %v3674 = vpop.f32.mrf.mxu0
        %v3675 = vadd.f32 0.0, %v3674
        %3676 = vmatprep.mubr.f32.mxu0 %v3395
        %3677 = vmatmul.mubr.f32.gmra.mxu0 %v3353
        %v3678 = vpop.f32.mrf.mxu0
        %v3679 = vadd.f32 0.0, %v3678
        %v3680 = vpop.f32.mrf.mxu0
        %v3681 = vadd.f32 0.0, %v3680
        %3682 = vdwg.mxu0
        %v3683 = vsel %vm3370, %v3047, 0
        %v3685 = vsel %vm3370, %v3049, 0
        %v3687 = vsel %vm3370, %v3051, 0
        %v3689 = vsel %vm3370, %v3053, 0
        %v3691 = vsel %vm3370, %v3055, 0
        %v3693 = vsel %vm3370, %v3057, 0
        %v3695 = vsel %vm3370, %v3059, 0
        %v3697 = vsel %vm3370, %v3061, 0
        %v3699 = vsel %vm3370, %v3063, 0
        %v3701 = vsel %vm3370, %v3065, 0
        %v3703 = vsel %vm3370, %v3067, 0
        %v3705 = vsel %vm3370, %v3069, 0
        %v3707 = vsel %vm3370, %v3071, 0
        %3709 = vmatprep.subr.mxu0 %v3133
        %3710 = vmatpush1.msra.mxu0 %v3132
        %3711 = vmatprep.subr.mxu0 %v3129
        %3712 = vmatpush1.msra.mxu0 %v3128
        %3713 = vmatprep.subr.mxu0 %v3125
        %3714 = vmatpush1.msra.mxu0 %v3124
        %3715 = vmatprep.subr.mxu0 %v3121
        %3716 = vmatpush1.msra.mxu0 %v3120
        %3717 = vmatprep.subr.mxu0 %v3117
        %3718 = vmatpush1.msra.mxu0 %v3116
        %3719 = vmatprep.subr.mxu0 %v3113
        %3720 = vmatpush1.msra.mxu0 %v3112
        %3721 = vmatprep.subr.mxu0 %v3109
        %3722 = vmatpush1.msra.mxu0 %v3108
        %3723 = vmatprep.subr.mxu0 %v3105
        %3724 = vmatpush1.msra.mxu0 %v3104
        %3725 = vmatprep.subr.mxu0 %v3101
        %3726 = vmatpush1.msra.mxu0 %v3100
        %3727 = vmatprep.subr.mxu0 %v3097
        %3728 = vmatpush1.msra.mxu0 %v3096
        %3729 = vmatprep.subr.mxu0 %v3093
        %3730 = vmatpush1.msra.mxu0 %v3092
        %3731 = vmatprep.subr.mxu0 %v3089
        %3732 = vmatpush1.msra.mxu0 %v3088
        %3733 = vmatprep.subr.mxu0 %v3085
        %3734 = vmatpush1.msra.mxu0 %v3084
        %3735 = vmatprep.subr.mxu0 %v3081
        %3736 = vmatpush1.msra.mxu0 %v3080
        %3737 = vmatprep.subr.mxu0 %v3077
        %3738 = vmatpush1.msra.mxu0 %v3076
        %3739 = vmatprep.subr.mxu0 %v3073
        %3740 = vmatpush1.msra.mxu0 %v3072
        %3741 = vmatprep.subr.mxu0 0.0
        %3742 = vmatpush2.msra.mxu0 0.0
        %3743 = vmatprep.subr.mxu0 0.0
        %3744 = vmatpush2.msra.mxu0 0.0
        %3745 = vmatprep.subr.mxu0 0.0
        %3746 = vmatpush2.msra.mxu0 0.0
        %3747 = vmatprep.subr.mxu0 0.0
        %3748 = vmatpush2.msra.mxu0 0.0
        %3749 = vmatprep.subr.mxu0 0.0
        %3750 = vmatpush2.msra.mxu0 0.0
        %3751 = vmatprep.subr.mxu0 0.0
        %3752 = vmatpush2.msra.mxu0 0.0
        %3753 = vmatprep.subr.mxu0 %v3173
        %3754 = vmatpush2.msra.mxu0 %v3172
        %3755 = vmatprep.subr.mxu0 %v3169
        %3756 = vmatpush2.msra.mxu0 %v3168
        %3757 = vmatprep.subr.mxu0 %v3165
        %3758 = vmatpush2.msra.mxu0 %v3164
        %3759 = vmatprep.subr.mxu0 %v3161
        %3760 = vmatpush2.msra.mxu0 %v3160
        %3761 = vmatprep.subr.mxu0 %v3157
        %3762 = vmatpush2.msra.mxu0 %v3156
        %3763 = vmatprep.subr.mxu0 %v3153
        %3764 = vmatpush2.msra.mxu0 %v3152
        %3765 = vmatprep.subr.mxu0 %v3149
        %3766 = vmatpush2.msra.mxu0 %v3148
        %3767 = vmatprep.subr.mxu0 %v3145
        %3768 = vmatpush2.msra.mxu0 %v3144
        %3769 = vmatprep.subr.mxu0 %v3141
        %3770 = vmatpush2.msra.mxu0 %v3140
        %3771 = vmatprep.subr.mxu0 %v3137
        %3772 = vmatpush2.msra.mxu0 %v3136
        %3773 = vmatprep.mubr.f32.mxu0 %v3683
        %3774 = vmatmul.mubr.f32.gmra.mxu0 %v3046
        %v3775 = vpop.f32.mrf.mxu0
        %v3776 = vadd.f32 %v3464, %v3775
        %v3777 = vpop.f32.mrf.mxu0
        %v3778 = vadd.f32 %v3466, %v3777
        %3779 = vmatprep.mubr.f32.mxu0 %v3685
        %3780 = vmatmul.mubr.f32.gmra.mxu0 %v3048
        %v3781 = vpop.f32.mrf.mxu0
        %v3782 = vadd.f32 %v3470, %v3781
        %v3783 = vpop.f32.mrf.mxu0
        %v3784 = vadd.f32 %v3472, %v3783
        %3785 = vmatprep.mubr.f32.mxu0 %v3687
        %3786 = vmatmul.mubr.f32.gmra.mxu0 %v3050
        %v3787 = vpop.f32.mrf.mxu0
        %v3788 = vadd.f32 %v3476, %v3787
        %v3789 = vpop.f32.mrf.mxu0
        %v3790 = vadd.f32 %v3478, %v3789
        %3791 = vmatprep.mubr.f32.mxu0 %v3689
        %3792 = vmatmul.mubr.f32.gmra.mxu0 %v3052
        %v3793 = vpop.f32.mrf.mxu0
        %v3794 = vadd.f32 %v3482, %v3793
        %v3795 = vpop.f32.mrf.mxu0
        %v3796 = vadd.f32 %v3484, %v3795
        %3797 = vmatprep.mubr.f32.mxu0 %v3691
        %3798 = vmatmul.mubr.f32.gmra.mxu0 %v3054
        %v3799 = vpop.f32.mrf.mxu0
        %v3800 = vadd.f32 %v3488, %v3799
        %v3801 = vpop.f32.mrf.mxu0
        %v3802 = vadd.f32 %v3490, %v3801
        %3803 = vmatprep.mubr.f32.mxu0 %v3693
        %3804 = vmatmul.mubr.f32.gmra.mxu0 %v3056
        %v3805 = vpop.f32.mrf.mxu0
        %v3806 = vadd.f32 %v3494, %v3805
        %v3807 = vpop.f32.mrf.mxu0
        %v3808 = vadd.f32 %v3496, %v3807
        %3809 = vmatprep.mubr.f32.mxu0 %v3695
        %3810 = vmatmul.mubr.f32.gmra.mxu0 %v3058
        %v3811 = vpop.f32.mrf.mxu0
        %v3812 = vadd.f32 %v3500, %v3811
        %v3813 = vpop.f32.mrf.mxu0
        %v3814 = vadd.f32 %v3502, %v3813
        %3815 = vmatprep.mubr.f32.mxu0 %v3697
        %3816 = vmatmul.mubr.f32.gmra.mxu0 %v3060
        %v3817 = vpop.f32.mrf.mxu0
        %v3818 = vadd.f32 %v3506, %v3817
        %v3819 = vpop.f32.mrf.mxu0
        %v3820 = vadd.f32 %v3508, %v3819
        %3821 = vmatprep.mubr.f32.mxu0 %v3699
        %3822 = vmatmul.mubr.f32.gmra.mxu0 %v3062
        %v3823 = vpop.f32.mrf.mxu0
        %v3824 = vadd.f32 %v3512, %v3823
        %v3825 = vpop.f32.mrf.mxu0
        %v3826 = vadd.f32 %v3514, %v3825
        %3827 = vmatprep.mubr.f32.mxu0 %v3701
        %3828 = vmatmul.mubr.f32.gmra.mxu0 %v3064
        %v3829 = vpop.f32.mrf.mxu0
        %v3830 = vadd.f32 %v3518, %v3829
        %v3831 = vpop.f32.mrf.mxu0
        %v3832 = vadd.f32 %v3520, %v3831
        %3833 = vmatprep.mubr.f32.mxu0 %v3703
        %3834 = vmatmul.mubr.f32.gmra.mxu0 %v3066
        %v3835 = vpop.f32.mrf.mxu0
        %v3836 = vadd.f32 %v3524, %v3835
        %v3837 = vpop.f32.mrf.mxu0
        %v3838 = vadd.f32 %v3526, %v3837
        %3839 = vmatprep.mubr.f32.mxu0 %v3705
        %3840 = vmatmul.mubr.f32.gmra.mxu0 %v3068
        %v3841 = vpop.f32.mrf.mxu0
        %v3842 = vadd.f32 %v3530, %v3841
        %v3843 = vpop.f32.mrf.mxu0
        %v3844 = vadd.f32 %v3532, %v3843
        %3845 = vmatprep.mubr.f32.mxu0 %v3707
        %3846 = vmatmul.mubr.f32.gmra.mxu0 %v3070
        %v3847 = vpop.f32.mrf.mxu0
        %v3848 = vadd.f32 %v3536, %v3847
        %v3849 = vpop.f32.mrf.mxu0
        %v3850 = vadd.f32 %v3538, %v3849
        %3851 = vdwg.mxu0
        %3852 = vmatprep.subr.mxu0 %v3135
        %3853 = vmatpush1.msra.mxu0 %v3134
        %3854 = vmatprep.subr.mxu0 %v3131
        %3855 = vmatpush1.msra.mxu0 %v3130
        %3856 = vmatprep.subr.mxu0 %v3127
        %3857 = vmatpush1.msra.mxu0 %v3126
        %3858 = vmatprep.subr.mxu0 %v3123
        %3859 = vmatpush1.msra.mxu0 %v3122
        %3860 = vmatprep.subr.mxu0 %v3119
        %3861 = vmatpush1.msra.mxu0 %v3118
        %3862 = vmatprep.subr.mxu0 %v3115
        %3863 = vmatpush1.msra.mxu0 %v3114
        %3864 = vmatprep.subr.mxu0 %v3111
        %3865 = vmatpush1.msra.mxu0 %v3110
        %3866 = vmatprep.subr.mxu0 %v3107
        %3867 = vmatpush1.msra.mxu0 %v3106
        %3868 = vmatprep.subr.mxu0 %v3103
        %3869 = vmatpush1.msra.mxu0 %v3102
        %3870 = vmatprep.subr.mxu0 %v3099
        %3871 = vmatpush1.msra.mxu0 %v3098
        %3872 = vmatprep.subr.mxu0 %v3095
        %3873 = vmatpush1.msra.mxu0 %v3094
        %3874 = vmatprep.subr.mxu0 %v3091
        %3875 = vmatpush1.msra.mxu0 %v3090
        %3876 = vmatprep.subr.mxu0 %v3087
        %3877 = vmatpush1.msra.mxu0 %v3086
        %3878 = vmatprep.subr.mxu0 %v3083
        %3879 = vmatpush1.msra.mxu0 %v3082
        %3880 = vmatprep.subr.mxu0 %v3079
        %3881 = vmatpush1.msra.mxu0 %v3078
        %3882 = vmatprep.subr.mxu0 %v3075
        %3883 = vmatpush1.msra.mxu0 %v3074
        %3884 = vmatprep.subr.mxu0 0.0
        %3885 = vmatpush2.msra.mxu0 0.0
        %3886 = vmatprep.subr.mxu0 0.0
        %3887 = vmatpush2.msra.mxu0 0.0
        %3888 = vmatprep.subr.mxu0 0.0
        %3889 = vmatpush2.msra.mxu0 0.0
        %3890 = vmatprep.subr.mxu0 0.0
        %3891 = vmatpush2.msra.mxu0 0.0
        %3892 = vmatprep.subr.mxu0 0.0
        %3893 = vmatpush2.msra.mxu0 0.0
        %3894 = vmatprep.subr.mxu0 0.0
        %3895 = vmatpush2.msra.mxu0 0.0
        %3896 = vmatprep.subr.mxu0 %v3175
        %3897 = vmatpush2.msra.mxu0 %v3174
        %3898 = vmatprep.subr.mxu0 %v3171
        %3899 = vmatpush2.msra.mxu0 %v3170
        %3900 = vmatprep.subr.mxu0 %v3167
        %3901 = vmatpush2.msra.mxu0 %v3166
        %3902 = vmatprep.subr.mxu0 %v3163
        %3903 = vmatpush2.msra.mxu0 %v3162
        %3904 = vmatprep.subr.mxu0 %v3159
        %3905 = vmatpush2.msra.mxu0 %v3158
        %3906 = vmatprep.subr.mxu0 %v3155
        %3907 = vmatpush2.msra.mxu0 %v3154
        %3908 = vmatprep.subr.mxu0 %v3151
        %3909 = vmatpush2.msra.mxu0 %v3150
        %3910 = vmatprep.subr.mxu0 %v3147
        %3911 = vmatpush2.msra.mxu0 %v3146
        %3912 = vmatprep.subr.mxu0 %v3143
        %3913 = vmatpush2.msra.mxu0 %v3142
        %3914 = vmatprep.subr.mxu0 %v3139
        %3915 = vmatpush2.msra.mxu0 %v3138
        %3916 = vmatprep.mubr.f32.mxu0 %v3683
        %3917 = vmatmul.mubr.f32.gmra.mxu0 %v3046
        %v3918 = vpop.f32.mrf.mxu0
        %v3919 = vadd.f32 %v3607, %v3918
        %v3920 = vpop.f32.mrf.mxu0
        %v3921 = vadd.f32 %v3609, %v3920
        %3922 = vmatprep.mubr.f32.mxu0 %v3685
        %3923 = vmatmul.mubr.f32.gmra.mxu0 %v3048
        %v3924 = vpop.f32.mrf.mxu0
        %v3925 = vadd.f32 %v3613, %v3924
        %v3926 = vpop.f32.mrf.mxu0
        %v3927 = vadd.f32 %v3615, %v3926
        %3928 = vmatprep.mubr.f32.mxu0 %v3687
        %3929 = vmatmul.mubr.f32.gmra.mxu0 %v3050
        %v3930 = vpop.f32.mrf.mxu0
        %v3931 = vadd.f32 %v3619, %v3930
        %v3932 = vpop.f32.mrf.mxu0
        %v3933 = vadd.f32 %v3621, %v3932
        %3934 = vmatprep.mubr.f32.mxu0 %v3689
        %3935 = vmatmul.mubr.f32.gmra.mxu0 %v3052
        %v3936 = vpop.f32.mrf.mxu0
        %v3937 = vadd.f32 %v3625, %v3936
        %v3938 = vpop.f32.mrf.mxu0
        %v3939 = vadd.f32 %v3627, %v3938
        %3940 = vmatprep.mubr.f32.mxu0 %v3691
        %3941 = vmatmul.mubr.f32.gmra.mxu0 %v3054
        %v3942 = vpop.f32.mrf.mxu0
        %v3943 = vadd.f32 %v3631, %v3942
        %v3944 = vpop.f32.mrf.mxu0
        %v3945 = vadd.f32 %v3633, %v3944
        %3946 = vmatprep.mubr.f32.mxu0 %v3693
        %3947 = vmatmul.mubr.f32.gmra.mxu0 %v3056
        %v3948 = vpop.f32.mrf.mxu0
        %v3949 = vadd.f32 %v3637, %v3948
        %v3950 = vpop.f32.mrf.mxu0
        %v3951 = vadd.f32 %v3639, %v3950
        %3952 = vmatprep.mubr.f32.mxu0 %v3695
        %3953 = vmatmul.mubr.f32.gmra.mxu0 %v3058
        %v3954 = vpop.f32.mrf.mxu0
        %v3955 = vadd.f32 %v3643, %v3954
        %v3956 = vpop.f32.mrf.mxu0
        %v3957 = vadd.f32 %v3645, %v3956
        %3958 = vmatprep.mubr.f32.mxu0 %v3697
        %3959 = vmatmul.mubr.f32.gmra.mxu0 %v3060
        %v3960 = vpop.f32.mrf.mxu0
        %v3961 = vadd.f32 %v3649, %v3960
        %v3962 = vpop.f32.mrf.mxu0
        %v3963 = vadd.f32 %v3651, %v3962
        %3964 = vmatprep.mubr.f32.mxu0 %v3699
        %3965 = vmatmul.mubr.f32.gmra.mxu0 %v3062
        %v3966 = vpop.f32.mrf.mxu0
        %v3967 = vadd.f32 %v3655, %v3966
        %v3968 = vpop.f32.mrf.mxu0
        %v3969 = vadd.f32 %v3657, %v3968
        %3970 = vmatprep.mubr.f32.mxu0 %v3701
        %3971 = vmatmul.mubr.f32.gmra.mxu0 %v3064
        %v3972 = vpop.f32.mrf.mxu0
        %v3973 = vadd.f32 %v3661, %v3972
        %v3974 = vpop.f32.mrf.mxu0
        %v3975 = vadd.f32 %v3663, %v3974
        %3976 = vmatprep.mubr.f32.mxu0 %v3703
        %3977 = vmatmul.mubr.f32.gmra.mxu0 %v3066
        %v3978 = vpop.f32.mrf.mxu0
        %v3979 = vadd.f32 %v3667, %v3978
        %v3980 = vpop.f32.mrf.mxu0
        %v3981 = vadd.f32 %v3669, %v3980
        %3982 = vmatprep.mubr.f32.mxu0 %v3705
        %3983 = vmatmul.mubr.f32.gmra.mxu0 %v3068
        %v3984 = vpop.f32.mrf.mxu0
        %v3985 = vadd.f32 %v3673, %v3984
        %v3986 = vpop.f32.mrf.mxu0
        %v3987 = vadd.f32 %v3675, %v3986
        %3988 = vmatprep.mubr.f32.mxu0 %v3707
        %3989 = vmatmul.mubr.f32.gmra.mxu0 %v3070
        %v3990 = vpop.f32.mrf.mxu0
        %v3991 = vadd.f32 %v3679, %v3990
        %v3992 = vpop.f32.mrf.mxu0
        %v3993 = vadd.f32 %v3681, %v3992
        %3994 = vdwg.mxu0
        %s3995 = scalar_lea.vmem %s5, 1664
        %v3996 = vld [vmem:[%s3995] sm:$0xff]
        %v3997 = vld [vmem:[%s3995 + $0x8] sm:$0xff]
        %v3998 = vld [vmem:[%s3995 + $0x10] sm:$0xff]
        %v3999 = vld [vmem:[%s3995 + $0x18] sm:$0xff]
        %v4000 = vld [vmem:[%s3995 + $0x20] sm:$0xff]
        %v4001 = vld [vmem:[%s3995 + $0x28] sm:$0xff]
        %v4002 = vld [vmem:[%s3995 + $0x30] sm:$0xff]
        %v4003 = vld [vmem:[%s3995 + $0x38] sm:$0xff]
        %v4004 = vld [vmem:[%s3995 + $0x40] sm:$0xff]
        %v4005 = vld [vmem:[%s3995 + $0x48] sm:$0xff]
        %v4006 = vld [vmem:[%s3995 + $0x50] sm:$0xff]
        %v4007 = vld [vmem:[%s3995 + $0x58] sm:$0xff]
        %v4008 = vld [vmem:[%s3995 + $0x60] sm:$0xff]
        %v4009 = vld [vmem:[%s3995 + $0x68] sm:$0xff]
        %v4010 = vld [vmem:[%s3995 + $0x70] sm:$0xff]
        %v4011 = vld [vmem:[%s3995 + $0x78] sm:$0xff]
        %v4012 = vld [vmem:[%s3995 + $0x80] sm:$0xff]
        %v4013 = vld [vmem:[%s3995 + $0x88] sm:$0xff]
        %v4014 = vld [vmem:[%s3995 + $0x90] sm:$0xff]
        %v4015 = vld [vmem:[%s3995 + $0x98] sm:$0xff]
        %v4016 = vld [vmem:[%s3995 + $0xa0] sm:$0xff]
        %v4017 = vld [vmem:[%s3995 + $0xa8] sm:$0xff]
        %v4018 = vld [vmem:[%s3995 + $0xb0] sm:$0xff]
        %v4019 = vld [vmem:[%s3995 + $0xb8] sm:$0xff]
        %v4020 = vld [vmem:[%s3995 + $0xc0] sm:$0xff]
        %v4021 = vld [vmem:[%s3995 + $0xc8] sm:$0xff]
        %v4022 = vld [vmem:[%s3995 + $0xd0] sm:$0xff]
        %v4023 = vld [vmem:[%s3995 + $0xd8] sm:$0xff]
        %v4024 = vld [vmem:[%s3995 + $0xe0] sm:$0xff]
        %v4025 = vld [vmem:[%s3995 + $0xe8] sm:$0xff]
        %v4026 = vld [vmem:[%s3995 + $0xf0] sm:$0xff]
        %v4027 = vld [vmem:[%s3995 + $0xf8] sm:$0xff]
        %v4028 = vld [vmem:[%s3995 + $0x100] sm:$0xff]
        %v4029 = vld [vmem:[%s3995 + $0x108] sm:$0xff]
        %v4030 = vld [vmem:[%s3995 + $0x110] sm:$0xff]
        %v4031 = vld [vmem:[%s3995 + $0x118] sm:$0xff]
        %v4032 = vld [vmem:[%s3995 + $0x120] sm:$0xff]
        %v4033 = vld [vmem:[%s3995 + $0x128] sm:$0xff]
        %v4034 = vld [vmem:[%s3995 + $0x130] sm:$0xff]
        %v4035 = vld [vmem:[%s3995 + $0x138] sm:$0xff]
        %v4036 = vld [vmem:[%s3995 + $0x140] sm:$0xff]
        %v4037 = vld [vmem:[%s3995 + $0x148] sm:$0xff]
        %v4038 = vld [vmem:[%s3995 + $0x150] sm:$0xff]
        %v4039 = vld [vmem:[%s3995 + $0x158] sm:$0xff]
        %v4040 = vld [vmem:[%s3995 + $0x160] sm:$0xff]
        %v4041 = vld [vmem:[%s3995 + $0x168] sm:$0xff]
        %v4042 = vld [vmem:[%s3995 + $0x170] sm:$0xff]
        %v4043 = vld [vmem:[%s3995 + $0x178] sm:$0xff]
        %v4044 = vld [vmem:[%s3995 + $0x180] sm:$0xff]
        %v4045 = vld [vmem:[%s3995 + $0x188] sm:$0xff]
        %v4046 = vld [vmem:[%s3995 + $0x190] sm:$0xff]
        %v4047 = vld [vmem:[%s3995 + $0x198] sm:$0xff]
        %v4048 = vld [vmem:[%s3995 + $0x1a0] sm:$0xff]
        %v4049 = vld [vmem:[%s3995 + $0x1a8] sm:$0xff]
        %v4050 = vld [vmem:[%s3995 + $0x1b0] sm:$0xff]
        %v4051 = vld [vmem:[%s3995 + $0x1b8] sm:$0xff]
        %v4052 = vld [vmem:[%s3995 + $0x1c0] sm:$0xff]
        %v4053 = vld [vmem:[%s3995 + $0x1c8] sm:$0xff]
        %v4054 = vld [vmem:[%s3995 + $0x1d0] sm:$0xff]
        %v4055 = vld [vmem:[%s3995 + $0x1d8] sm:$0xff]
        %v4056 = vld [vmem:[%s3995 + $0x1e0] sm:$0xff]
        %v4057 = vld [vmem:[%s3995 + $0x1e8] sm:$0xff]
        %v4058 = vld [vmem:[%s3995 + $0x1f0] sm:$0xff]
        %v4059 = vld [vmem:[%s3995 + $0x1f8] sm:$0xff]
        %v4060 = vld [vmem:[%s3995 + $0x200] sm:$0xff]
        %v4061 = vld [vmem:[%s3995 + $0x208] sm:$0xff]
        %v4062 = vld [vmem:[%s3995 + $0x210] sm:$0xff]
        %v4063 = vld [vmem:[%s3995 + $0x218] sm:$0xff]
        %v4064 = vld [vmem:[%s3995 + $0x220] sm:$0xff]
        %v4065 = vld [vmem:[%s3995 + $0x228] sm:$0xff]
        %v4066 = vld [vmem:[%s3995 + $0x230] sm:$0xff]
        %v4067 = vld [vmem:[%s3995 + $0x238] sm:$0xff]
        %v4068 = vld [vmem:[%s3995 + $0x240] sm:$0xff]
        %v4069 = vld [vmem:[%s3995 + $0x248] sm:$0xff]
        %v4070 = vld [vmem:[%s3995 + $0x250] sm:$0xff]
        %v4071 = vld [vmem:[%s3995 + $0x258] sm:$0xff]
        %v4072 = vld [vmem:[%s3995 + $0x260] sm:$0xff]
        %v4073 = vld [vmem:[%s3995 + $0x268] sm:$0xff]
        %v4074 = vld [vmem:[%s3995 + $0x270] sm:$0xff]
        %v4075 = vld [vmem:[%s3995 + $0x278] sm:$0xff]
        %v4076 = vld [vmem:[%s3995 + $0x280] sm:$0xff]
        %v4077 = vld [vmem:[%s3995 + $0x288] sm:$0xff]
        %v4078 = vld [vmem:[%s3995 + $0x290] sm:$0xff]
        %v4079 = vld [vmem:[%s3995 + $0x298] sm:$0xff]
        %v4080 = vld [vmem:[%s3995 + $0x2a0] sm:$0xff]
        %v4081 = vld [vmem:[%s3995 + $0x2a8] sm:$0xff]
        %v4082 = vld [vmem:[%s3995 + $0x2b0] sm:$0xff]
        %v4083 = vld [vmem:[%s3995 + $0x2b8] sm:$0xff]
        %v4084 = vld [vmem:[%s3995 + $0x2c0] sm:$0xff]
        %v4085 = vld [vmem:[%s3995 + $0x2c8] sm:$0xff]
        %v4086 = vld [vmem:[%s3995 + $0x2d0] sm:$0xff]
        %v4087 = vld [vmem:[%s3995 + $0x2d8] sm:$0xff]
        %v4088 = vld [vmem:[%s3995 + $0x2e0] sm:$0xff]
        %v4089 = vld [vmem:[%s3995 + $0x2e8] sm:$0xff]
        %v4090 = vld [vmem:[%s3995 + $0x2f0] sm:$0xff]
        %v4091 = vld [vmem:[%s3995 + $0x2f8] sm:$0xff]
        %v4092 = vld [vmem:[%s3995 + $0x300] sm:$0xff]
        %v4093 = vld [vmem:[%s3995 + $0x308] sm:$0xff]
        %v4094 = vld [vmem:[%s3995 + $0x310] sm:$0xff]
        %v4095 = vld [vmem:[%s3995 + $0x318] sm:$0xff]
        %v4096 = vld [vmem:[%s3995 + $0x320] sm:$0xff]
        %v4097 = vld [vmem:[%s3995 + $0x328] sm:$0xff]
        %v4098 = vld [vmem:[%s3995 + $0x330] sm:$0xff]
        %v4099 = vld [vmem:[%s3995 + $0x338] sm:$0xff]
        %v4100 = vrot.slane %v3046, 2
        %v4101 = vrot.slane %v3048, 2
        %v4102 = vsel %vm1619, %v4100, %v4101
        %v4103 = vrot.slane %v3047, 2
        %v4104 = vrot.slane %v3049, 2
        %v4105 = vsel %vm1619, %v4103, %v4104
        %v4106 = vrot.slane %v3050, 2
        %v4107 = vsel %vm1619, %v4101, %v4106
        %v4108 = vrot.slane %v3051, 2
        %v4109 = vsel %vm1619, %v4104, %v4108
        %v4110 = vrot.slane %v3052, 2
        %v4111 = vsel %vm1619, %v4106, %v4110
        %v4112 = vrot.slane %v3053, 2
        %v4113 = vsel %vm1619, %v4108, %v4112
        %v4114 = vrot.slane %v3054, 2
        %v4115 = vsel %vm1619, %v4110, %v4114
        %v4116 = vrot.slane %v3055, 2
        %v4117 = vsel %vm1619, %v4112, %v4116
        %v4118 = vrot.slane %v3056, 2
        %v4119 = vsel %vm1619, %v4114, %v4118
        %v4120 = vrot.slane %v3057, 2
        %v4121 = vsel %vm1619, %v4116, %v4120
        %v4122 = vrot.slane %v3058, 2
        %v4123 = vsel %vm1619, %v4118, %v4122
        %v4124 = vrot.slane %v3059, 2
        %v4125 = vsel %vm1619, %v4120, %v4124
        %v4126 = vrot.slane %v3060, 2
        %v4127 = vsel %vm1619, %v4122, %v4126
        %v4128 = vrot.slane %v3061, 2
        %v4129 = vsel %vm1619, %v4124, %v4128
        %v4130 = vrot.slane %v3062, 2
        %v4131 = vsel %vm1619, %v4126, %v4130
        %v4132 = vrot.slane %v3063, 2
        %v4133 = vsel %vm1619, %v4128, %v4132
        %v4134 = vrot.slane %v3064, 2
        %v4135 = vsel %vm1619, %v4130, %v4134
        %v4136 = vrot.slane %v3065, 2
        %v4137 = vsel %vm1619, %v4132, %v4136
        %v4138 = vrot.slane %v3066, 2
        %v4139 = vsel %vm1619, %v4134, %v4138
        %v4140 = vrot.slane %v3067, 2
        %v4141 = vsel %vm1619, %v4136, %v4140
        %v4142 = vrot.slane %v3068, 2
        %v4143 = vsel %vm1619, %v4138, %v4142
        %v4144 = vrot.slane %v3069, 2
        %v4145 = vsel %vm1619, %v4140, %v4144
        %v4146 = vrot.slane %v3070, 2
        %v4147 = vsel %vm1619, %v4142, %v4146
        %v4148 = vrot.slane %v3071, 2
        %v4149 = vsel %vm1619, %v4144, %v4148
        %v4163 = vsel %vm3370, %v4105, 0
        %v4165 = vsel %vm3370, %v4109, 0
        %v4167 = vsel %vm3370, %v4113, 0
        %v4169 = vsel %vm3370, %v4117, 0
        %v4171 = vsel %vm3370, %v4121, 0
        %v4173 = vsel %vm3370, %v4125, 0
        %v4175 = vsel %vm3370, %v4129, 0
        %v4177 = vsel %vm3370, %v4133, 0
        %v4179 = vsel %vm3370, %v4137, 0
        %v4181 = vsel %vm3370, %v4141, 0
        %v4183 = vsel %vm3370, %v4145, 0
        %v4185 = vsel %vm3370, %v4149, 0
        %v4187 = vsel %vm3370, %v4148, 0
        %4189 = vmatprep.subr.mxu0 %v4057
        %4190 = vmatpush1.msra.mxu0 %v4056
        %4191 = vmatprep.subr.mxu0 %v4053
        %4192 = vmatpush1.msra.mxu0 %v4052
        %4193 = vmatprep.subr.mxu0 %v4049
        %4194 = vmatpush1.msra.mxu0 %v4048
        %4195 = vmatprep.subr.mxu0 %v4045
        %4196 = vmatpush1.msra.mxu0 %v4044
        %4197 = vmatprep.subr.mxu0 %v4041
        %4198 = vmatpush1.msra.mxu0 %v4040
        %4199 = vmatprep.subr.mxu0 %v4037
        %4200 = vmatpush1.msra.mxu0 %v4036
        %4201 = vmatprep.subr.mxu0 %v4033
        %4202 = vmatpush1.msra.mxu0 %v4032
        %4203 = vmatprep.subr.mxu0 %v4029
        %4204 = vmatpush1.msra.mxu0 %v4028
        %4205 = vmatprep.subr.mxu0 %v4025
        %4206 = vmatpush1.msra.mxu0 %v4024
        %4207 = vmatprep.subr.mxu0 %v4021
        %4208 = vmatpush1.msra.mxu0 %v4020
        %4209 = vmatprep.subr.mxu0 %v4017
        %4210 = vmatpush1.msra.mxu0 %v4016
        %4211 = vmatprep.subr.mxu0 %v4013
        %4212 = vmatpush1.msra.mxu0 %v4012
        %4213 = vmatprep.subr.mxu0 %v4009
        %4214 = vmatpush1.msra.mxu0 %v4008
        %4215 = vmatprep.subr.mxu0 %v4005
        %4216 = vmatpush1.msra.mxu0 %v4004
        %4217 = vmatprep.subr.mxu0 %v4001
        %4218 = vmatpush1.msra.mxu0 %v4000
        %4219 = vmatprep.subr.mxu0 %v3997
        %4220 = vmatpush1.msra.mxu0 %v3996
        %4221 = vmatprep.subr.mxu0 0.0
        %4222 = vmatpush2.msra.mxu0 0.0
        %4223 = vmatprep.subr.mxu0 0.0
        %4224 = vmatpush2.msra.mxu0 0.0
        %4225 = vmatprep.subr.mxu0 0.0
        %4226 = vmatpush2.msra.mxu0 0.0
        %4227 = vmatprep.subr.mxu0 0.0
        %4228 = vmatpush2.msra.mxu0 0.0
        %4229 = vmatprep.subr.mxu0 0.0
        %4230 = vmatpush2.msra.mxu0 0.0
        %4231 = vmatprep.subr.mxu0 0.0
        %4232 = vmatpush2.msra.mxu0 0.0
        %4233 = vmatprep.subr.mxu0 %v4097
        %4234 = vmatpush2.msra.mxu0 %v4096
        %4235 = vmatprep.subr.mxu0 %v4093
        %4236 = vmatpush2.msra.mxu0 %v4092
        %4237 = vmatprep.subr.mxu0 %v4089
        %4238 = vmatpush2.msra.mxu0 %v4088
        %4239 = vmatprep.subr.mxu0 %v4085
        %4240 = vmatpush2.msra.mxu0 %v4084
        %4241 = vmatprep.subr.mxu0 %v4081
        %4242 = vmatpush2.msra.mxu0 %v4080
        %4243 = vmatprep.subr.mxu0 %v4077
        %4244 = vmatpush2.msra.mxu0 %v4076
        %4245 = vmatprep.subr.mxu0 %v4073
        %4246 = vmatpush2.msra.mxu0 %v4072
        %4247 = vmatprep.subr.mxu0 %v4069
        %4248 = vmatpush2.msra.mxu0 %v4068
        %4249 = vmatprep.subr.mxu0 %v4065
        %4250 = vmatpush2.msra.mxu0 %v4064
        %4251 = vmatprep.subr.mxu0 %v4061
        %4252 = vmatpush2.msra.mxu0 %v4060
        %4253 = vmatprep.mubr.f32.mxu0 %v4163
        %4254 = vmatmul.mubr.f32.gmra.mxu0 %v4102
        %v4255 = vpop.f32.mrf.mxu0
        %v4256 = vadd.f32 0.0, %v4255
        %v4257 = vpop.f32.mrf.mxu0
        %v4258 = vadd.f32 0.0, %v4257
        %4259 = vmatprep.mubr.f32.mxu0 %v4165
        %4260 = vmatmul.mubr.f32.gmra.mxu0 %v4107
        %v4261 = vpop.f32.mrf.mxu0
        %v4262 = vadd.f32 0.0, %v4261
        %v4263 = vpop.f32.mrf.mxu0
        %v4264 = vadd.f32 0.0, %v4263
        %4265 = vmatprep.mubr.f32.mxu0 %v4167
        %4266 = vmatmul.mubr.f32.gmra.mxu0 %v4111
        %v4267 = vpop.f32.mrf.mxu0
        %v4268 = vadd.f32 0.0, %v4267
        %v4269 = vpop.f32.mrf.mxu0
        %v4270 = vadd.f32 0.0, %v4269
        %4271 = vmatprep.mubr.f32.mxu0 %v4169
        %4272 = vmatmul.mubr.f32.gmra.mxu0 %v4115
        %v4273 = vpop.f32.mrf.mxu0
        %v4274 = vadd.f32 0.0, %v4273
        %v4275 = vpop.f32.mrf.mxu0
        %v4276 = vadd.f32 0.0, %v4275
        %4277 = vmatprep.mubr.f32.mxu0 %v4171
        %4278 = vmatmul.mubr.f32.gmra.mxu0 %v4119
        %v4279 = vpop.f32.mrf.mxu0
        %v4280 = vadd.f32 0.0, %v4279
        %v4281 = vpop.f32.mrf.mxu0
        %v4282 = vadd.f32 0.0, %v4281
        %4283 = vmatprep.mubr.f32.mxu0 %v4173
        %4284 = vmatmul.mubr.f32.gmra.mxu0 %v4123
        %v4285 = vpop.f32.mrf.mxu0
        %v4286 = vadd.f32 0.0, %v4285
        %v4287 = vpop.f32.mrf.mxu0
        %v4288 = vadd.f32 0.0, %v4287
        %4289 = vmatprep.mubr.f32.mxu0 %v4175
        %4290 = vmatmul.mubr.f32.gmra.mxu0 %v4127
        %v4291 = vpop.f32.mrf.mxu0
        %v4292 = vadd.f32 0.0, %v4291
        %v4293 = vpop.f32.mrf.mxu0
        %v4294 = vadd.f32 0.0, %v4293
        %4295 = vmatprep.mubr.f32.mxu0 %v4177
        %4296 = vmatmul.mubr.f32.gmra.mxu0 %v4131
        %v4297 = vpop.f32.mrf.mxu0
        %v4298 = vadd.f32 0.0, %v4297
        %v4299 = vpop.f32.mrf.mxu0
        %v4300 = vadd.f32 0.0, %v4299
        %4301 = vmatprep.mubr.f32.mxu0 %v4179
        %4302 = vmatmul.mubr.f32.gmra.mxu0 %v4135
        %v4303 = vpop.f32.mrf.mxu0
        %v4304 = vadd.f32 0.0, %v4303
        %v4305 = vpop.f32.mrf.mxu0
        %v4306 = vadd.f32 0.0, %v4305
        %4307 = vmatprep.mubr.f32.mxu0 %v4181
        %4308 = vmatmul.mubr.f32.gmra.mxu0 %v4139
        %v4309 = vpop.f32.mrf.mxu0
        %v4310 = vadd.f32 0.0, %v4309
        %v4311 = vpop.f32.mrf.mxu0
        %v4312 = vadd.f32 0.0, %v4311
        %4313 = vmatprep.mubr.f32.mxu0 %v4183
        %4314 = vmatmul.mubr.f32.gmra.mxu0 %v4143
        %v4315 = vpop.f32.mrf.mxu0
        %v4316 = vadd.f32 0.0, %v4315
        %v4317 = vpop.f32.mrf.mxu0
        %v4318 = vadd.f32 0.0, %v4317
        %4319 = vmatprep.mubr.f32.mxu0 %v4185
        %4320 = vmatmul.mubr.f32.gmra.mxu0 %v4147
        %v4321 = vpop.f32.mrf.mxu0
        %v4322 = vadd.f32 0.0, %v4321
        %v4323 = vpop.f32.mrf.mxu0
        %v4324 = vadd.f32 0.0, %v4323
        %4325 = vmatprep.mubr.f32.mxu0 %v4187
        %4326 = vmatmul.mubr.f32.gmra.mxu0 %v4146
        %v4327 = vpop.f32.mrf.mxu0
        %v4328 = vadd.f32 0.0, %v4327
        %v4329 = vpop.f32.mrf.mxu0
        %v4330 = vadd.f32 0.0, %v4329
        %4331 = vdwg.mxu0
        %4332 = vmatprep.subr.mxu0 %v4059
        %4333 = vmatpush1.msra.mxu0 %v4058
        %4334 = vmatprep.subr.mxu0 %v4055
        %4335 = vmatpush1.msra.mxu0 %v4054
        %4336 = vmatprep.subr.mxu0 %v4051
        %4337 = vmatpush1.msra.mxu0 %v4050
        %4338 = vmatprep.subr.mxu0 %v4047
        %4339 = vmatpush1.msra.mxu0 %v4046
        %4340 = vmatprep.subr.mxu0 %v4043
        %4341 = vmatpush1.msra.mxu0 %v4042
        %4342 = vmatprep.subr.mxu0 %v4039
        %4343 = vmatpush1.msra.mxu0 %v4038
        %4344 = vmatprep.subr.mxu0 %v4035
        %4345 = vmatpush1.msra.mxu0 %v4034
        %4346 = vmatprep.subr.mxu0 %v4031
        %4347 = vmatpush1.msra.mxu0 %v4030
        %4348 = vmatprep.subr.mxu0 %v4027
        %4349 = vmatpush1.msra.mxu0 %v4026
        %4350 = vmatprep.subr.mxu0 %v4023
        %4351 = vmatpush1.msra.mxu0 %v4022
        %4352 = vmatprep.subr.mxu0 %v4019
        %4353 = vmatpush1.msra.mxu0 %v4018
        %4354 = vmatprep.subr.mxu0 %v4015
        %4355 = vmatpush1.msra.mxu0 %v4014
        %4356 = vmatprep.subr.mxu0 %v4011
        %4357 = vmatpush1.msra.mxu0 %v4010
        %4358 = vmatprep.subr.mxu0 %v4007
        %4359 = vmatpush1.msra.mxu0 %v4006
        %4360 = vmatprep.subr.mxu0 %v4003
        %4361 = vmatpush1.msra.mxu0 %v4002
        %4362 = vmatprep.subr.mxu0 %v3999
        %4363 = vmatpush1.msra.mxu0 %v3998
        %4364 = vmatprep.subr.mxu0 0.0
        %4365 = vmatpush2.msra.mxu0 0.0
        %4366 = vmatprep.subr.mxu0 0.0
        %4367 = vmatpush2.msra.mxu0 0.0
        %4368 = vmatprep.subr.mxu0 0.0
        %4369 = vmatpush2.msra.mxu0 0.0
        %4370 = vmatprep.subr.mxu0 0.0
        %4371 = vmatpush2.msra.mxu0 0.0
        %4372 = vmatprep.subr.mxu0 0.0
        %4373 = vmatpush2.msra.mxu0 0.0
        %4374 = vmatprep.subr.mxu0 0.0
        %4375 = vmatpush2.msra.mxu0 0.0
        %4376 = vmatprep.subr.mxu0 %v4099
        %4377 = vmatpush2.msra.mxu0 %v4098
        %4378 = vmatprep.subr.mxu0 %v4095
        %4379 = vmatpush2.msra.mxu0 %v4094
        %4380 = vmatprep.subr.mxu0 %v4091
        %4381 = vmatpush2.msra.mxu0 %v4090
        %4382 = vmatprep.subr.mxu0 %v4087
        %4383 = vmatpush2.msra.mxu0 %v4086
        %4384 = vmatprep.subr.mxu0 %v4083
        %4385 = vmatpush2.msra.mxu0 %v4082
        %4386 = vmatprep.subr.mxu0 %v4079
        %4387 = vmatpush2.msra.mxu0 %v4078
        %4388 = vmatprep.subr.mxu0 %v4075
        %4389 = vmatpush2.msra.mxu0 %v4074
        %4390 = vmatprep.subr.mxu0 %v4071
        %4391 = vmatpush2.msra.mxu0 %v4070
        %4392 = vmatprep.subr.mxu0 %v4067
        %4393 = vmatpush2.msra.mxu0 %v4066
        %4394 = vmatprep.subr.mxu0 %v4063
        %4395 = vmatpush2.msra.mxu0 %v4062
        %4396 = vmatprep.mubr.f32.mxu0 %v4163
        %4397 = vmatmul.mubr.f32.gmra.mxu0 %v4102
        %v4398 = vpop.f32.mrf.mxu0
        %v4399 = vadd.f32 0.0, %v4398
        %v4400 = vpop.f32.mrf.mxu0
        %v4401 = vadd.f32 0.0, %v4400
        %4402 = vmatprep.mubr.f32.mxu0 %v4165
        %4403 = vmatmul.mubr.f32.gmra.mxu0 %v4107
        %v4404 = vpop.f32.mrf.mxu0
        %v4405 = vadd.f32 0.0, %v4404
        %v4406 = vpop.f32.mrf.mxu0
        %v4407 = vadd.f32 0.0, %v4406
        %4408 = vmatprep.mubr.f32.mxu0 %v4167
        %4409 = vmatmul.mubr.f32.gmra.mxu0 %v4111
        %v4410 = vpop.f32.mrf.mxu0
        %v4411 = vadd.f32 0.0, %v4410
        %v4412 = vpop.f32.mrf.mxu0
        %v4413 = vadd.f32 0.0, %v4412
        %4414 = vmatprep.mubr.f32.mxu0 %v4169
        %4415 = vmatmul.mubr.f32.gmra.mxu0 %v4115
        %v4416 = vpop.f32.mrf.mxu0
        %v4417 = vadd.f32 0.0, %v4416
        %v4418 = vpop.f32.mrf.mxu0
        %v4419 = vadd.f32 0.0, %v4418
        %4420 = vmatprep.mubr.f32.mxu0 %v4171
        %4421 = vmatmul.mubr.f32.gmra.mxu0 %v4119
        %v4422 = vpop.f32.mrf.mxu0
        %v4423 = vadd.f32 0.0, %v4422
        %v4424 = vpop.f32.mrf.mxu0
        %v4425 = vadd.f32 0.0, %v4424
        %4426 = vmatprep.mubr.f32.mxu0 %v4173
        %4427 = vmatmul.mubr.f32.gmra.mxu0 %v4123
        %v4428 = vpop.f32.mrf.mxu0
        %v4429 = vadd.f32 0.0, %v4428
        %v4430 = vpop.f32.mrf.mxu0
        %v4431 = vadd.f32 0.0, %v4430
        %4432 = vmatprep.mubr.f32.mxu0 %v4175
        %4433 = vmatmul.mubr.f32.gmra.mxu0 %v4127
        %v4434 = vpop.f32.mrf.mxu0
        %v4435 = vadd.f32 0.0, %v4434
        %v4436 = vpop.f32.mrf.mxu0
        %v4437 = vadd.f32 0.0, %v4436
        %4438 = vmatprep.mubr.f32.mxu0 %v4177
        %4439 = vmatmul.mubr.f32.gmra.mxu0 %v4131
        %v4440 = vpop.f32.mrf.mxu0
        %v4441 = vadd.f32 0.0, %v4440
        %v4442 = vpop.f32.mrf.mxu0
        %v4443 = vadd.f32 0.0, %v4442
        %4444 = vmatprep.mubr.f32.mxu0 %v4179
        %4445 = vmatmul.mubr.f32.gmra.mxu0 %v4135
        %v4446 = vpop.f32.mrf.mxu0
        %v4447 = vadd.f32 0.0, %v4446
        %v4448 = vpop.f32.mrf.mxu0
        %v4449 = vadd.f32 0.0, %v4448
        %4450 = vmatprep.mubr.f32.mxu0 %v4181
        %4451 = vmatmul.mubr.f32.gmra.mxu0 %v4139
        %v4452 = vpop.f32.mrf.mxu0
        %v4453 = vadd.f32 0.0, %v4452
        %v4454 = vpop.f32.mrf.mxu0
        %v4455 = vadd.f32 0.0, %v4454
        %4456 = vmatprep.mubr.f32.mxu0 %v4183
        %4457 = vmatmul.mubr.f32.gmra.mxu0 %v4143
        %v4458 = vpop.f32.mrf.mxu0
        %v4459 = vadd.f32 0.0, %v4458
        %v4460 = vpop.f32.mrf.mxu0
        %v4461 = vadd.f32 0.0, %v4460
        %4462 = vmatprep.mubr.f32.mxu0 %v4185
        %4463 = vmatmul.mubr.f32.gmra.mxu0 %v4147
        %v4464 = vpop.f32.mrf.mxu0
        %v4465 = vadd.f32 0.0, %v4464
        %v4466 = vpop.f32.mrf.mxu0
        %v4467 = vadd.f32 0.0, %v4466
        %4468 = vmatprep.mubr.f32.mxu0 %v4187
        %4469 = vmatmul.mubr.f32.gmra.mxu0 %v4146
        %v4470 = vpop.f32.mrf.mxu0
        %v4471 = vadd.f32 0.0, %v4470
        %v4472 = vpop.f32.mrf.mxu0
        %v4473 = vadd.f32 0.0, %v4472
        %4474 = vdwg.mxu0
        %v4475 = vadd.f32 %v3776, %v4256
        %v4476 = vadd.f32 %v3778, %v4258
        %v4477 = vadd.f32 %v3919, %v4399
        %v4478 = vadd.f32 %v3921, %v4401
        %v4479 = vadd.f32 %v3782, %v4262
        %v4480 = vadd.f32 %v3784, %v4264
        %v4481 = vadd.f32 %v3925, %v4405
        %v4482 = vadd.f32 %v3927, %v4407
        %v4483 = vadd.f32 %v3788, %v4268
        %v4484 = vadd.f32 %v3790, %v4270
        %v4485 = vadd.f32 %v3931, %v4411
        %v4486 = vadd.f32 %v3933, %v4413
        %v4487 = vadd.f32 %v3794, %v4274
        %v4488 = vadd.f32 %v3796, %v4276
        %v4489 = vadd.f32 %v3937, %v4417
        %v4490 = vadd.f32 %v3939, %v4419
        %v4491 = vadd.f32 %v3800, %v4280
        %v4492 = vadd.f32 %v3802, %v4282
        %v4493 = vadd.f32 %v3943, %v4423
        %v4494 = vadd.f32 %v3945, %v4425
        %v4495 = vadd.f32 %v3806, %v4286
        %v4496 = vadd.f32 %v3808, %v4288
        %v4497 = vadd.f32 %v3949, %v4429
        %v4498 = vadd.f32 %v3951, %v4431
        %v4499 = vadd.f32 %v3812, %v4292
        %v4500 = vadd.f32 %v3814, %v4294
        %v4501 = vadd.f32 %v3955, %v4435
        %v4502 = vadd.f32 %v3957, %v4437
        %v4503 = vadd.f32 %v3818, %v4298
        %v4504 = vadd.f32 %v3820, %v4300
        %v4505 = vadd.f32 %v3961, %v4441
        %v4506 = vadd.f32 %v3963, %v4443
        %v4507 = vadd.f32 %v3824, %v4304
        %v4508 = vadd.f32 %v3826, %v4306
        %v4509 = vadd.f32 %v3967, %v4447
        %v4510 = vadd.f32 %v3969, %v4449
        %v4511 = vadd.f32 %v3830, %v4310
        %v4512 = vadd.f32 %v3832, %v4312
        %v4513 = vadd.f32 %v3973, %v4453
        %v4514 = vadd.f32 %v3975, %v4455
        %v4515 = vadd.f32 %v3836, %v4316
        %v4516 = vadd.f32 %v3838, %v4318
        %v4517 = vadd.f32 %v3979, %v4459
        %v4518 = vadd.f32 %v3981, %v4461
        %v4519 = vadd.f32 %v3842, %v4322
        %v4520 = vadd.f32 %v3844, %v4324
        %v4521 = vadd.f32 %v3985, %v4465
        %v4522 = vadd.f32 %v3987, %v4467
        %v4523 = vadd.f32 %v3848, %v4328
        %v4524 = vadd.f32 %v3850, %v4330
        %v4525 = vadd.f32 %v3991, %v4471
        %v4526 = vadd.f32 %v3993, %v4473
        %v4527 = vld [vmem:[%s6] sm:$0xf]
        %v4529 = vlaneseq
        %v4530 = vshrl.u32 %v4529, 7
        %v4531 = vsub.s32 0, %v4530
        %v4532 = vrot.slane %v4527, %v4531
        %v4533 = vlaneseq
        %v4534 = vshrl.u32 %v4533, 7
        %v4535 = vsub.s32 1, %v4534
        %v4536 = vrot.slane %v4527, %v4535
        %v4537 = vlaneseq
        %v4538 = vshrl.u32 %v4537, 7
        %v4539 = vsub.s32 2, %v4538
        %v4540 = vrot.slane %v4527, %v4539
        %v4541 = vlaneseq
        %v4542 = vshrl.u32 %v4541, 7
        %v4543 = vsub.s32 3, %v4542
        %v4544 = vrot.slane %v4527, %v4543
        %v4549 = vadd.f32 %v4475, %v4532
        %v4550 = vadd.f32 %v4476, %v4536
        %v4551 = vadd.f32 %v4477, %v4540
        %v4552 = vadd.f32 %v4478, %v4544
        %v4553 = vadd.f32 %v4479, %v4532
        %v4554 = vadd.f32 %v4480, %v4536
        %v4555 = vadd.f32 %v4481, %v4540
        %v4556 = vadd.f32 %v4482, %v4544
        %v4557 = vadd.f32 %v4483, %v4532
        %v4558 = vadd.f32 %v4484, %v4536
        %v4559 = vadd.f32 %v4485, %v4540
        %v4560 = vadd.f32 %v4486, %v4544
        %v4561 = vadd.f32 %v4487, %v4532
        %v4562 = vadd.f32 %v4488, %v4536
        %v4563 = vadd.f32 %v4489, %v4540
        %v4564 = vadd.f32 %v4490, %v4544
        %v4565 = vadd.f32 %v4491, %v4532
        %v4566 = vadd.f32 %v4492, %v4536
        %v4567 = vadd.f32 %v4493, %v4540
        %v4568 = vadd.f32 %v4494, %v4544
        %v4569 = vadd.f32 %v4495, %v4532
        %v4570 = vadd.f32 %v4496, %v4536
        %v4571 = vadd.f32 %v4497, %v4540
        %v4572 = vadd.f32 %v4498, %v4544
        %v4573 = vadd.f32 %v4499, %v4532
        %v4574 = vadd.f32 %v4500, %v4536
        %v4575 = vadd.f32 %v4501, %v4540
        %v4576 = vadd.f32 %v4502, %v4544
        %v4577 = vadd.f32 %v4503, %v4532
        %v4578 = vadd.f32 %v4504, %v4536
        %v4579 = vadd.f32 %v4505, %v4540
        %v4580 = vadd.f32 %v4506, %v4544
        %v4581 = vadd.f32 %v4507, %v4532
        %v4582 = vadd.f32 %v4508, %v4536
        %v4583 = vadd.f32 %v4509, %v4540
        %v4584 = vadd.f32 %v4510, %v4544
        %v4585 = vadd.f32 %v4511, %v4532
        %v4586 = vadd.f32 %v4512, %v4536
        %v4587 = vadd.f32 %v4513, %v4540
        %v4588 = vadd.f32 %v4514, %v4544
        %v4589 = vadd.f32 %v4515, %v4532
        %v4590 = vadd.f32 %v4516, %v4536
        %v4591 = vadd.f32 %v4517, %v4540
        %v4592 = vadd.f32 %v4518, %v4544
        %v4593 = vadd.f32 %v4519, %v4532
        %v4594 = vadd.f32 %v4520, %v4536
        %v4595 = vadd.f32 %v4521, %v4540
        %v4596 = vadd.f32 %v4522, %v4544
        %v4597 = vadd.f32 %v4523, %v4532
        %v4598 = vadd.f32 %v4524, %v4536
        %v4599 = vadd.f32 %v4525, %v4540
        %v4600 = vadd.f32 %v4526, %v4544
        %v4601 = vmax.f32 %v4549, 0.0
        %v4602 = vmax.f32 %v4550, 0.0
        %v4603 = vmax.f32 %v4551, 0.0
        %v4604 = vmax.f32 %v4552, 0.0
        %v4605 = vmax.f32 %v4553, 0.0
        %v4606 = vmax.f32 %v4554, 0.0
        %v4607 = vmax.f32 %v4555, 0.0
        %v4608 = vmax.f32 %v4556, 0.0
        %v4609 = vmax.f32 %v4557, 0.0
        %v4610 = vmax.f32 %v4558, 0.0
        %v4611 = vmax.f32 %v4559, 0.0
        %v4612 = vmax.f32 %v4560, 0.0
        %v4613 = vmax.f32 %v4561, 0.0
        %v4614 = vmax.f32 %v4562, 0.0
        %v4615 = vmax.f32 %v4563, 0.0
        %v4616 = vmax.f32 %v4564, 0.0
        %v4617 = vmax.f32 %v4565, 0.0
        %v4618 = vmax.f32 %v4566, 0.0
        %v4619 = vmax.f32 %v4567, 0.0
        %v4620 = vmax.f32 %v4568, 0.0
        %v4621 = vmax.f32 %v4569, 0.0
        %v4622 = vmax.f32 %v4570, 0.0
        %v4623 = vmax.f32 %v4571, 0.0
        %v4624 = vmax.f32 %v4572, 0.0
        %v4625 = vmax.f32 %v4573, 0.0
        %v4626 = vmax.f32 %v4574, 0.0
        %v4627 = vmax.f32 %v4575, 0.0
        %v4628 = vmax.f32 %v4576, 0.0
        %v4629 = vmax.f32 %v4577, 0.0
        %v4630 = vmax.f32 %v4578, 0.0
        %v4631 = vmax.f32 %v4579, 0.0
        %v4632 = vmax.f32 %v4580, 0.0
        %v4633 = vmax.f32 %v4581, 0.0
        %v4634 = vmax.f32 %v4582, 0.0
        %v4635 = vmax.f32 %v4583, 0.0
        %v4636 = vmax.f32 %v4584, 0.0
        %v4637 = vmax.f32 %v4585, 0.0
        %v4638 = vmax.f32 %v4586, 0.0
        %v4639 = vmax.f32 %v4587, 0.0
        %v4640 = vmax.f32 %v4588, 0.0
        %v4641 = vmax.f32 %v4589, 0.0
        %v4642 = vmax.f32 %v4590, 0.0
        %v4643 = vmax.f32 %v4591, 0.0
        %v4644 = vmax.f32 %v4592, 0.0
        %v4645 = vmax.f32 %v4593, 0.0
        %v4646 = vmax.f32 %v4594, 0.0
        %v4647 = vmax.f32 %v4595, 0.0
        %v4648 = vmax.f32 %v4596, 0.0
        %v4649 = vmax.f32 %v4597, 0.0
        %v4650 = vmax.f32 %v4598, 0.0
        %v4651 = vmax.f32 %v4599, 0.0
        %v4652 = vmax.f32 %v4600, 0.0
        %v4653 = vmax.f32 %v4601, %v4603
        %v4654 = vmax.f32 %v4602, %v4604
        %v4655 = vmax.f32 %v4605, %v4607
        %v4656 = vmax.f32 %v4606, %v4608
        %v4657 = vmax.f32 %v4609, %v4611
        %v4658 = vmax.f32 %v4610, %v4612
        %v4659 = vmax.f32 %v4613, %v4615
        %v4660 = vmax.f32 %v4614, %v4616
        %v4661 = vmax.f32 %v4617, %v4619
        %v4662 = vmax.f32 %v4618, %v4620
        %v4663 = vmax.f32 %v4621, %v4623
        %v4664 = vmax.f32 %v4622, %v4624
        %v4665 = vmax.f32 %v4625, %v4627
        %v4666 = vmax.f32 %v4626, %v4628
        %v4667 = vmax.f32 %v4629, %v4631
        %v4668 = vmax.f32 %v4630, %v4632
        %v4669 = vmax.f32 %v4633, %v4635
        %v4670 = vmax.f32 %v4634, %v4636
        %v4671 = vmax.f32 %v4637, %v4639
        %v4672 = vmax.f32 %v4638, %v4640
        %v4673 = vmax.f32 %v4641, %v4643
        %v4674 = vmax.f32 %v4642, %v4644
        %v4675 = vmax.f32 %v4645, %v4647
        %v4676 = vmax.f32 %v4646, %v4648
        %v4677 = vmax.f32 %v4649, %v4651
        %v4678 = vmax.f32 %v4650, %v4652
        %v4679 = vld [vmem:[%s7] sm:$0xff]
        %v4680 = vld [vmem:[%s7 + $0x8] sm:$0xff]
        %v4681 = vld [vmem:[%s7 + $0x10] sm:$0xff]
        %v4682 = vld [vmem:[%s7 + $0x18] sm:$0xff]
        %v4683 = vld [vmem:[%s7 + $0x20] sm:$0xff]
        %vm4684 = vcmask 834560
        %v4686 = vsel %vm4684, %v4679, 0
        %v4689 = vsel %vm4684, %v4680, 0
        %v4692 = vsel %vm4684, %v4681, 0
        %v4695 = vsel %vm4684, %v4682, 0
        %v4698 = vsel %vm4684, %v4683, 0
        %v4701 = vsel %vm1619, %v4677, 0
        %v4704 = vsel %vm1619, %v4678, 0
        %4706 = vmatprep.subr.mxu0 0.0
        %4707 = vmatpush1.msra.mxu0 0.0
        %4708 = vmatprep.subr.mxu0 0.0
        %4709 = vmatpush1.msra.mxu0 0.0
        %4710 = vmatprep.subr.mxu0 0.0
        %4711 = vmatpush1.msra.mxu0 0.0
        %4712 = vmatprep.subr.mxu0 %v4704
        %4713 = vmatpush1.msra.mxu0 %v4701
        %4714 = vmatprep.subr.mxu0 %v4676
        %4715 = vmatpush1.msra.mxu0 %v4675
        %4716 = vmatprep.subr.mxu0 %v4674
        %4717 = vmatpush1.msra.mxu0 %v4673
        %4718 = vmatprep.subr.mxu0 %v4672
        %4719 = vmatpush1.msra.mxu0 %v4671
        %4720 = vmatprep.subr.mxu0 %v4670
        %4721 = vmatpush1.msra.mxu0 %v4669
        %4722 = vmatprep.subr.mxu0 %v4668
        %4723 = vmatpush1.msra.mxu0 %v4667
        %4724 = vmatprep.subr.mxu0 %v4666
        %4725 = vmatpush1.msra.mxu0 %v4665
        %4726 = vmatprep.subr.mxu0 %v4664
        %4727 = vmatpush1.msra.mxu0 %v4663
        %4728 = vmatprep.subr.mxu0 %v4662
        %4729 = vmatpush1.msra.mxu0 %v4661
        %4730 = vmatprep.subr.mxu0 %v4660
        %4731 = vmatpush1.msra.mxu0 %v4659
        %4732 = vmatprep.subr.mxu0 %v4658
        %4733 = vmatpush1.msra.mxu0 %v4657
        %4734 = vmatprep.subr.mxu0 %v4656
        %4735 = vmatpush1.msra.mxu0 %v4655
        %4736 = vmatprep.subr.mxu0 %v4654
        %4737 = vmatpush1.msra.mxu0 %v4653
        %4738 = vmatprep.subr.mxu0 0.0
        %4739 = vmatpush2.msra.mxu0 0.0
        %4740 = vmatprep.subr.mxu0 0.0
        %4741 = vmatpush2.msra.mxu0 0.0
        %4742 = vmatprep.subr.mxu0 0.0
        %4743 = vmatpush2.msra.mxu0 0.0
        %4744 = vmatprep.subr.mxu0 0.0
        %4745 = vmatpush2.msra.mxu0 0.0
        %4746 = vmatprep.subr.mxu0 0.0
        %4747 = vmatpush2.msra.mxu0 0.0
        %4748 = vmatprep.subr.mxu0 0.0
        %4749 = vmatpush2.msra.mxu0 0.0
        %4750 = vmatprep.subr.mxu0 0.0
        %4751 = vmatpush2.msra.mxu0 0.0
        %4752 = vmatprep.subr.mxu0 0.0
        %4753 = vmatpush2.msra.mxu0 0.0
        %4754 = vmatprep.subr.mxu0 0.0
        %4755 = vmatpush2.msra.mxu0 0.0
        %4756 = vmatprep.subr.mxu0 0.0
        %4757 = vmatpush2.msra.mxu0 0.0
        %4758 = vmatprep.subr.mxu0 0.0
        %4759 = vmatpush2.msra.mxu0 0.0
        %4760 = vmatprep.subr.mxu0 0.0
        %4761 = vmatpush2.msra.mxu0 0.0
        %4762 = vmatprep.subr.mxu0 0.0
        %4763 = vmatpush2.msra.mxu0 0.0
        %4764 = vmatprep.subr.mxu0 0.0
        %4765 = vmatpush2.msra.mxu0 0.0
        %4766 = vmatprep.subr.mxu0 0.0
        %4767 = vmatpush2.msra.mxu0 0.0
        %4768 = vmatprep.subr.mxu0 0.0
        %4769 = vmatpush2.msra.mxu0 0.0
        %4770 = vmatprep.mubr.f32.mxu0 0.0
        %4771 = vmatmul.mubr.f32.gmra.mxu0 %v4686
        %v4772 = vpop.f32.mrf.mxu0
        %v4773 = vadd.f32 0.0, %v4772
        %v4774 = vpop.f32.mrf.mxu0
        %v4775 = vadd.f32 0.0, %v4774
        %4776 = vmatprep.mubr.f32.mxu0 0.0
        %4777 = vmatmul.mubr.f32.gmra.mxu0 %v4689
        %v4778 = vpop.f32.mrf.mxu0
        %v4779 = vadd.f32 0.0, %v4778
        %v4780 = vpop.f32.mrf.mxu0
        %v4781 = vadd.f32 0.0, %v4780
        %4782 = vmatprep.mubr.f32.mxu0 0.0
        %4783 = vmatmul.mubr.f32.gmra.mxu0 %v4692
        %v4784 = vpop.f32.mrf.mxu0
        %v4785 = vadd.f32 0.0, %v4784
        %v4786 = vpop.f32.mrf.mxu0
        %v4787 = vadd.f32 0.0, %v4786
        %4788 = vmatprep.mubr.f32.mxu0 0.0
        %4789 = vmatmul.mubr.f32.gmra.mxu0 %v4695
        %v4790 = vpop.f32.mrf.mxu0
        %v4791 = vadd.f32 0.0, %v4790
        %v4792 = vpop.f32.mrf.mxu0
        %v4793 = vadd.f32 0.0, %v4792
        %4794 = vmatprep.mubr.f32.mxu0 0.0
        %4795 = vmatmul.mubr.f32.gmra.mxu0 %v4698
        %v4796 = vpop.f32.mrf.mxu0
        %v4797 = vadd.f32 0.0, %v4796
        %v4798 = vpop.f32.mrf.mxu0
        %v4799 = vadd.f32 0.0, %v4798
        %4800 = vdwg.mxu0
        %v4801 = vld [vmem:[%s8] sm:$0xff]
        %v4802 = vld [vmem:[%s8 + $0x8] sm:$0xff]
        %v4803 = vld [vmem:[%s8 + $0x10] sm:$0xff]
        %v4804 = vld [vmem:[%s8 + $0x18] sm:$0xff]
        %v4805 = vld [vmem:[%s8 + $0x20] sm:$0xff]
        %v4807 = vsel %vm4684, %v4801, 0
        %v4810 = vsel %vm4684, %v4802, 0
        %v4813 = vsel %vm4684, %v4803, 0
        %v4816 = vsel %vm4684, %v4804, 0
        %v4819 = vsel %vm4684, %v4805, 0
        %4821 = vmatprep.subr.mxu0 0.0
        %4822 = vmatpush1.msra.mxu0 0.0
        %4823 = vmatprep.subr.mxu0 0.0
        %4824 = vmatpush1.msra.mxu0 0.0
        %4825 = vmatprep.subr.mxu0 0.0
        %4826 = vmatpush1.msra.mxu0 0.0
        %4827 = vmatprep.subr.mxu0 %v4704
        %4828 = vmatpush1.msra.mxu0 %v4701
        %4829 = vmatprep.subr.mxu0 %v4676
        %4830 = vmatpush1.msra.mxu0 %v4675
        %4831 = vmatprep.subr.mxu0 %v4674
        %4832 = vmatpush1.msra.mxu0 %v4673
        %4833 = vmatprep.subr.mxu0 %v4672
        %4834 = vmatpush1.msra.mxu0 %v4671
        %4835 = vmatprep.subr.mxu0 %v4670
        %4836 = vmatpush1.msra.mxu0 %v4669
        %4837 = vmatprep.subr.mxu0 %v4668
        %4838 = vmatpush1.msra.mxu0 %v4667
        %4839 = vmatprep.subr.mxu0 %v4666
        %4840 = vmatpush1.msra.mxu0 %v4665
        %4841 = vmatprep.subr.mxu0 %v4664
        %4842 = vmatpush1.msra.mxu0 %v4663
        %4843 = vmatprep.subr.mxu0 %v4662
        %4844 = vmatpush1.msra.mxu0 %v4661
        %4845 = vmatprep.subr.mxu0 %v4660
        %4846 = vmatpush1.msra.mxu0 %v4659
        %4847 = vmatprep.subr.mxu0 %v4658
        %4848 = vmatpush1.msra.mxu0 %v4657
        %4849 = vmatprep.subr.mxu0 %v4656
        %4850 = vmatpush1.msra.mxu0 %v4655
        %4851 = vmatprep.subr.mxu0 %v4654
        %4852 = vmatpush1.msra.mxu0 %v4653
        %4853 = vmatprep.subr.mxu0 0.0
        %4854 = vmatpush2.msra.mxu0 0.0
        %4855 = vmatprep.subr.mxu0 0.0
        %4856 = vmatpush2.msra.mxu0 0.0
        %4857 = vmatprep.subr.mxu0 0.0
        %4858 = vmatpush2.msra.mxu0 0.0
        %4859 = vmatprep.subr.mxu0 0.0
        %4860 = vmatpush2.msra.mxu0 0.0
        %4861 = vmatprep.subr.mxu0 0.0
        %4862 = vmatpush2.msra.mxu0 0.0
        %4863 = vmatprep.subr.mxu0 0.0
        %4864 = vmatpush2.msra.mxu0 0.0
        %4865 = vmatprep.subr.mxu0 0.0
        %4866 = vmatpush2.msra.mxu0 0.0
        %4867 = vmatprep.subr.mxu0 0.0
        %4868 = vmatpush2.msra.mxu0 0.0
        %4869 = vmatprep.subr.mxu0 0.0
        %4870 = vmatpush2.msra.mxu0 0.0
        %4871 = vmatprep.subr.mxu0 0.0
        %4872 = vmatpush2.msra.mxu0 0.0
        %4873 = vmatprep.subr.mxu0 0.0
        %4874 = vmatpush2.msra.mxu0 0.0
        %4875 = vmatprep.subr.mxu0 0.0
        %4876 = vmatpush2.msra.mxu0 0.0
        %4877 = vmatprep.subr.mxu0 0.0
        %4878 = vmatpush2.msra.mxu0 0.0
        %4879 = vmatprep.subr.mxu0 0.0
        %4880 = vmatpush2.msra.mxu0 0.0
        %4881 = vmatprep.subr.mxu0 0.0
        %4882 = vmatpush2.msra.mxu0 0.0
        %4883 = vmatprep.subr.mxu0 0.0
        %4884 = vmatpush2.msra.mxu0 0.0
        %4885 = vmatprep.mubr.f32.mxu0 0.0
        %4886 = vmatmul.mubr.f32.gmra.mxu0 %v4807
        %v4887 = vpop.f32.mrf.mxu0
        %v4888 = vadd.f32 0.0, %v4887
        %v4889 = vpop.f32.mrf.mxu0
        %v4890 = vadd.f32 0.0, %v4889
        %4891 = vmatprep.mubr.f32.mxu0 0.0
        %4892 = vmatmul.mubr.f32.gmra.mxu0 %v4810
        %v4893 = vpop.f32.mrf.mxu0
        %v4894 = vadd.f32 0.0, %v4893
        %v4895 = vpop.f32.mrf.mxu0
        %v4896 = vadd.f32 0.0, %v4895
        %4897 = vmatprep.mubr.f32.mxu0 0.0
        %4898 = vmatmul.mubr.f32.gmra.mxu0 %v4813
        %v4899 = vpop.f32.mrf.mxu0
        %v4900 = vadd.f32 0.0, %v4899
        %v4901 = vpop.f32.mrf.mxu0
        %v4902 = vadd.f32 0.0, %v4901
        %4903 = vmatprep.mubr.f32.mxu0 0.0
        %4904 = vmatmul.mubr.f32.gmra.mxu0 %v4816
        %v4905 = vpop.f32.mrf.mxu0
        %v4906 = vadd.f32 0.0, %v4905
        %v4907 = vpop.f32.mrf.mxu0
        %v4908 = vadd.f32 0.0, %v4907
        %4909 = vmatprep.mubr.f32.mxu0 0.0
        %4910 = vmatmul.mubr.f32.gmra.mxu0 %v4819
        %v4911 = vpop.f32.mrf.mxu0
        %v4912 = vadd.f32 0.0, %v4911
        %v4913 = vpop.f32.mrf.mxu0
        %v4914 = vadd.f32 0.0, %v4913
        %4915 = vdwg.mxu0
        %v4916 = vmax.f32 %v4773, %v4888
        %v4917 = vmax.f32 %v4775, %v4890
        %v4918 = vmax.f32 %v4779, %v4894
        %v4919 = vmax.f32 %v4781, %v4896
        %v4920 = vmax.f32 %v4785, %v4900
        %v4921 = vmax.f32 %v4787, %v4902
        %v4922 = vmax.f32 %v4791, %v4906
        %v4923 = vmax.f32 %v4793, %v4908
        %v4924 = vmax.f32 %v4797, %v4912
        %v4925 = vmax.f32 %v4799, %v4914
        %v4926 = vld [vmem:[%s9] sm:$0xff]
        %v4927 = vld [vmem:[%s9 + $0x8] sm:$0xff]
        %v4928 = vld [vmem:[%s9 + $0x10] sm:$0xff]
        %v4929 = vld [vmem:[%s9 + $0x18] sm:$0xff]
        %v4930 = vld [vmem:[%s9 + $0x20] sm:$0xff]
        %v4931 = vld [vmem:[%s9 + $0x28] sm:$0xff]
        %v4932 = vld [vmem:[%s9 + $0x30] sm:$0xff]
        %v4933 = vld [vmem:[%s9 + $0x38] sm:$0xff]
        %v4934 = vld [vmem:[%s9 + $0x40] sm:$0xff]
        %v4935 = vld [vmem:[%s9 + $0x48] sm:$0xff]
        %v4936 = vld [vmem:[%s9 + $0x50] sm:$0xff]
        %v4937 = vld [vmem:[%s9 + $0x58] sm:$0xff]
        %v4938 = vld [vmem:[%s9 + $0x60] sm:$0xff]
        %v4939 = vld [vmem:[%s9 + $0x68] sm:$0xff]
        %v4940 = vld [vmem:[%s9 + $0x70] sm:$0xff]
        %v4941 = vld [vmem:[%s9 + $0x78] sm:$0xff]
        %v4942 = vld [vmem:[%s9 + $0x80] sm:$0xff]
        %v4943 = vld [vmem:[%s9 + $0x88] sm:$0xff]
        %v4944 = vld [vmem:[%s9 + $0x90] sm:$0xff]
        %v4945 = vld [vmem:[%s9 + $0x98] sm:$0xff]
        %s4946 = scalar_lea.vmem %s9, 160
        %v4947 = vld [vmem:[%s4946] sm:$0xff]
        %v4948 = vld [vmem:[%s4946 + $0x8] sm:$0xff]
        %v4949 = vld [vmem:[%s4946 + $0x10] sm:$0xff]
        %v4950 = vld [vmem:[%s4946 + $0x18] sm:$0xff]
        %v4951 = vld [vmem:[%s4946 + $0x20] sm:$0xff]
        %v4952 = vld [vmem:[%s4946 + $0x28] sm:$0xff]
        %v4953 = vld [vmem:[%s4946 + $0x30] sm:$0xff]
        %v4954 = vld [vmem:[%s4946 + $0x38] sm:$0xff]
        %v4955 = vld [vmem:[%s4946 + $0x40] sm:$0xff]
        %v4956 = vld [vmem:[%s4946 + $0x48] sm:$0xff]
        %v4957 = vld [vmem:[%s4946 + $0x50] sm:$0xff]
        %v4958 = vld [vmem:[%s4946 + $0x58] sm:$0xff]
        %v4959 = vld [vmem:[%s4946 + $0x60] sm:$0xff]
        %v4960 = vld [vmem:[%s4946 + $0x68] sm:$0xff]
        %v4961 = vld [vmem:[%s4946 + $0x70] sm:$0xff]
        %v4962 = vld [vmem:[%s4946 + $0x78] sm:$0xff]
        %v4963 = vld [vmem:[%s4946 + $0x80] sm:$0xff]
        %v4964 = vld [vmem:[%s4946 + $0x88] sm:$0xff]
        %v4965 = vld [vmem:[%s4946 + $0x90] sm:$0xff]
        %v4966 = vld [vmem:[%s4946 + $0x98] sm:$0xff]
        %vm4967 = vcmask 261120
        %v4969 = vsel %vm4967, %v4919, 0
        %4971 = vmatprep.subr.mxu0 0.0
        %4972 = vmatpush1.msra.mxu0 %v4962
        %4973 = vmatprep.subr.mxu0 0.0
        %4974 = vmatpush1.msra.mxu0 %v4961
        %4975 = vmatprep.subr.mxu0 0.0
        %4976 = vmatpush1.msra.mxu0 %v4960
        %4977 = vmatprep.subr.mxu0 0.0
        %4978 = vmatpush1.msra.mxu0 %v4959
        %4979 = vmatprep.subr.mxu0 0.0
        %4980 = vmatpush1.msra.mxu0 %v4958
        %4981 = vmatprep.subr.mxu0 0.0
        %4982 = vmatpush1.msra.mxu0 %v4957
        %4983 = vmatprep.subr.mxu0 0.0
        %4984 = vmatpush1.msra.mxu0 %v4956
        %4985 = vmatprep.subr.mxu0 0.0
        %4986 = vmatpush1.msra.mxu0 %v4955
        %4987 = vmatprep.subr.mxu0 0.0
        %4988 = vmatpush1.msra.mxu0 %v4954
        %4989 = vmatprep.subr.mxu0 0.0
        %4990 = vmatpush1.msra.mxu0 %v4953
        %4991 = vmatprep.subr.mxu0 0.0
        %4992 = vmatpush1.msra.mxu0 %v4952
        %4993 = vmatprep.subr.mxu0 0.0
        %4994 = vmatpush1.msra.mxu0 %v4951
        %4995 = vmatprep.subr.mxu0 0.0
        %4996 = vmatpush1.msra.mxu0 %v4950
        %4997 = vmatprep.subr.mxu0 0.0
        %4998 = vmatpush1.msra.mxu0 %v4949
        %4999 = vmatprep.subr.mxu0 0.0
        %5000 = vmatpush1.msra.mxu0 %v4948
        %5001 = vmatprep.subr.mxu0 0.0
        %5002 = vmatpush1.msra.mxu0 %v4947
        %5003 = vmatprep.subr.mxu0 0.0
        %5004 = vmatpush2.msra.mxu0 0.0
        %5005 = vmatprep.subr.mxu0 0.0
        %5006 = vmatpush2.msra.mxu0 0.0
        %5007 = vmatprep.subr.mxu0 0.0
        %5008 = vmatpush2.msra.mxu0 0.0
        %5009 = vmatprep.subr.mxu0 0.0
        %5010 = vmatpush2.msra.mxu0 0.0
        %5011 = vmatprep.subr.mxu0 0.0
        %5012 = vmatpush2.msra.mxu0 0.0
        %5013 = vmatprep.subr.mxu0 0.0
        %5014 = vmatpush2.msra.mxu0 0.0
        %5015 = vmatprep.subr.mxu0 0.0
        %5016 = vmatpush2.msra.mxu0 0.0
        %5017 = vmatprep.subr.mxu0 0.0
        %5018 = vmatpush2.msra.mxu0 0.0
        %5019 = vmatprep.subr.mxu0 0.0
        %5020 = vmatpush2.msra.mxu0 0.0
        %5021 = vmatprep.subr.mxu0 0.0
        %5022 = vmatpush2.msra.mxu0 0.0
        %5023 = vmatprep.subr.mxu0 0.0
        %5024 = vmatpush2.msra.mxu0 0.0
        %5025 = vmatprep.subr.mxu0 0.0
        %5026 = vmatpush2.msra.mxu0 0.0
        %5027 = vmatprep.subr.mxu0 0.0
        %5028 = vmatpush2.msra.mxu0 %v4966
        %5029 = vmatprep.subr.mxu0 0.0
        %5030 = vmatpush2.msra.mxu0 %v4965
        %5031 = vmatprep.subr.mxu0 0.0
        %5032 = vmatpush2.msra.mxu0 %v4964
        %5033 = vmatprep.subr.mxu0 0.0
        %5034 = vmatpush2.msra.mxu0 %v4963
        %5035 = vmatprep.mubr.f32.mxu0 %v4969
        %5036 = vmatmul.mubr.f32.gmra.mxu0 %v4918
        %v5037 = vpop.f32.mrf.mxu0
        %v5038 = vadd.f32 0.0, %v5037
        %v5039 = vpop.f32.mrf.mxu0
        %5040 = vdwg.mxu0
        %v5042 = vsel %vm4967, %v4917, 0
        %5044 = vmatprep.subr.mxu0 0.0
        %5045 = vmatpush1.msra.mxu0 %v4941
        %5046 = vmatprep.subr.mxu0 0.0
        %5047 = vmatpush1.msra.mxu0 %v4940
        %5048 = vmatprep.subr.mxu0 0.0
        %5049 = vmatpush1.msra.mxu0 %v4939
        %5050 = vmatprep.subr.mxu0 0.0
        %5051 = vmatpush1.msra.mxu0 %v4938
        %5052 = vmatprep.subr.mxu0 0.0
        %5053 = vmatpush1.msra.mxu0 %v4937
        %5054 = vmatprep.subr.mxu0 0.0
        %5055 = vmatpush1.msra.mxu0 %v4936
        %5056 = vmatprep.subr.mxu0 0.0
        %5057 = vmatpush1.msra.mxu0 %v4935
        %5058 = vmatprep.subr.mxu0 0.0
        %5059 = vmatpush1.msra.mxu0 %v4934
        %5060 = vmatprep.subr.mxu0 0.0
        %5061 = vmatpush1.msra.mxu0 %v4933
        %5062 = vmatprep.subr.mxu0 0.0
        %5063 = vmatpush1.msra.mxu0 %v4932
        %5064 = vmatprep.subr.mxu0 0.0
        %5065 = vmatpush1.msra.mxu0 %v4931
        %5066 = vmatprep.subr.mxu0 0.0
        %5067 = vmatpush1.msra.mxu0 %v4930
        %5068 = vmatprep.subr.mxu0 0.0
        %5069 = vmatpush1.msra.mxu0 %v4929
        %5070 = vmatprep.subr.mxu0 0.0
        %5071 = vmatpush1.msra.mxu0 %v4928
        %5072 = vmatprep.subr.mxu0 0.0
        %5073 = vmatpush1.msra.mxu0 %v4927
        %5074 = vmatprep.subr.mxu0 0.0
        %5075 = vmatpush1.msra.mxu0 %v4926
        %5076 = vmatprep.subr.mxu0 0.0
        %5077 = vmatpush2.msra.mxu0 0.0
        %5078 = vmatprep.subr.mxu0 0.0
        %5079 = vmatpush2.msra.mxu0 0.0
        %5080 = vmatprep.subr.mxu0 0.0
        %5081 = vmatpush2.msra.mxu0 0.0
        %5082 = vmatprep.subr.mxu0 0.0
        %5083 = vmatpush2.msra.mxu0 0.0
        %5084 = vmatprep.subr.mxu0 0.0
        %5085 = vmatpush2.msra.mxu0 0.0
        %5086 = vmatprep.subr.mxu0 0.0
        %5087 = vmatpush2.msra.mxu0 0.0
        %5088 = vmatprep.subr.mxu0 0.0
        %5089 = vmatpush2.msra.mxu0 0.0
        %5090 = vmatprep.subr.mxu0 0.0
        %5091 = vmatpush2.msra.mxu0 0.0
        %5092 = vmatprep.subr.mxu0 0.0
        %5093 = vmatpush2.msra.mxu0 0.0
        %5094 = vmatprep.subr.mxu0 0.0
        %5095 = vmatpush2.msra.mxu0 0.0
        %5096 = vmatprep.subr.mxu0 0.0
        %5097 = vmatpush2.msra.mxu0 0.0
        %5098 = vmatprep.subr.mxu0 0.0
        %5099 = vmatpush2.msra.mxu0 0.0
        %5100 = vmatprep.subr.mxu0 0.0
        %5101 = vmatpush2.msra.mxu0 %v4945
        %5102 = vmatprep.subr.mxu0 0.0
        %5103 = vmatpush2.msra.mxu0 %v4944
        %5104 = vmatprep.subr.mxu0 0.0
        %5105 = vmatpush2.msra.mxu0 %v4943
        %5106 = vmatprep.subr.mxu0 0.0
        %5107 = vmatpush2.msra.mxu0 %v4942
        %5108 = vmatprep.mubr.f32.mxu0 %v5042
        %5109 = vmatmul.mubr.f32.gmra.mxu0 %v4916
        %v5110 = vpop.f32.mrf.mxu0
        %v5111 = vadd.f32 %v5038, %v5110
        %v5112 = vpop.f32.mrf.mxu0
        %5113 = vdwg.mxu0
        %s5114 = scalar_lea.vmem %s9, 320
        %v5115 = vld [vmem:[%s5114] sm:$0xff]
        %v5116 = vld [vmem:[%s5114 + $0x8] sm:$0xff]
        %v5117 = vld [vmem:[%s5114 + $0x10] sm:$0xff]
        %v5118 = vld [vmem:[%s5114 + $0x18] sm:$0xff]
        %v5119 = vld [vmem:[%s5114 + $0x20] sm:$0xff]
        %v5120 = vld [vmem:[%s5114 + $0x28] sm:$0xff]
        %v5121 = vld [vmem:[%s5114 + $0x30] sm:$0xff]
        %v5122 = vld [vmem:[%s5114 + $0x38] sm:$0xff]
        %v5123 = vld [vmem:[%s5114 + $0x40] sm:$0xff]
        %v5124 = vld [vmem:[%s5114 + $0x48] sm:$0xff]
        %v5125 = vld [vmem:[%s5114 + $0x50] sm:$0xff]
        %v5126 = vld [vmem:[%s5114 + $0x58] sm:$0xff]
        %v5127 = vld [vmem:[%s5114 + $0x60] sm:$0xff]
        %v5128 = vld [vmem:[%s5114 + $0x68] sm:$0xff]
        %v5129 = vld [vmem:[%s5114 + $0x70] sm:$0xff]
        %v5130 = vld [vmem:[%s5114 + $0x78] sm:$0xff]
        %v5131 = vld [vmem:[%s5114 + $0x80] sm:$0xff]
        %v5132 = vld [vmem:[%s5114 + $0x88] sm:$0xff]
        %v5133 = vld [vmem:[%s5114 + $0x90] sm:$0xff]
        %v5134 = vld [vmem:[%s5114 + $0x98] sm:$0xff]
        %v5136 = vsel %vm4967, %v4921, 0
        %5138 = vmatprep.subr.mxu0 0.0
        %5139 = vmatpush1.msra.mxu0 %v5130
        %5140 = vmatprep.subr.mxu0 0.0
        %5141 = vmatpush1.msra.mxu0 %v5129
        %5142 = vmatprep.subr.mxu0 0.0
        %5143 = vmatpush1.msra.mxu0 %v5128
        %5144 = vmatprep.subr.mxu0 0.0
        %5145 = vmatpush1.msra.mxu0 %v5127
        %5146 = vmatprep.subr.mxu0 0.0
        %5147 = vmatpush1.msra.mxu0 %v5126
        %5148 = vmatprep.subr.mxu0 0.0
        %5149 = vmatpush1.msra.mxu0 %v5125
        %5150 = vmatprep.subr.mxu0 0.0
        %5151 = vmatpush1.msra.mxu0 %v5124
        %5152 = vmatprep.subr.mxu0 0.0
        %5153 = vmatpush1.msra.mxu0 %v5123
        %5154 = vmatprep.subr.mxu0 0.0
        %5155 = vmatpush1.msra.mxu0 %v5122
        %5156 = vmatprep.subr.mxu0 0.0
        %5157 = vmatpush1.msra.mxu0 %v5121
        %5158 = vmatprep.subr.mxu0 0.0
        %5159 = vmatpush1.msra.mxu0 %v5120
        %5160 = vmatprep.subr.mxu0 0.0
        %5161 = vmatpush1.msra.mxu0 %v5119
        %5162 = vmatprep.subr.mxu0 0.0
        %5163 = vmatpush1.msra.mxu0 %v5118
        %5164 = vmatprep.subr.mxu0 0.0
        %5165 = vmatpush1.msra.mxu0 %v5117
        %5166 = vmatprep.subr.mxu0 0.0
        %5167 = vmatpush1.msra.mxu0 %v5116
        %5168 = vmatprep.subr.mxu0 0.0
        %5169 = vmatpush1.msra.mxu0 %v5115
        %5170 = vmatprep.subr.mxu0 0.0
        %5171 = vmatpush2.msra.mxu0 0.0
        %5172 = vmatprep.subr.mxu0 0.0
        %5173 = vmatpush2.msra.mxu0 0.0
        %5174 = vmatprep.subr.mxu0 0.0
        %5175 = vmatpush2.msra.mxu0 0.0
        %5176 = vmatprep.subr.mxu0 0.0
        %5177 = vmatpush2.msra.mxu0 0.0
        %5178 = vmatprep.subr.mxu0 0.0
        %5179 = vmatpush2.msra.mxu0 0.0
        %5180 = vmatprep.subr.mxu0 0.0
        %5181 = vmatpush2.msra.mxu0 0.0
        %5182 = vmatprep.subr.mxu0 0.0
        %5183 = vmatpush2.msra.mxu0 0.0
        %5184 = vmatprep.subr.mxu0 0.0
        %5185 = vmatpush2.msra.mxu0 0.0
        %5186 = vmatprep.subr.mxu0 0.0
        %5187 = vmatpush2.msra.mxu0 0.0
        %5188 = vmatprep.subr.mxu0 0.0
        %5189 = vmatpush2.msra.mxu0 0.0
        %5190 = vmatprep.subr.mxu0 0.0
        %5191 = vmatpush2.msra.mxu0 0.0
        %5192 = vmatprep.subr.mxu0 0.0
        %5193 = vmatpush2.msra.mxu0 0.0
        %5194 = vmatprep.subr.mxu0 0.0
        %5195 = vmatpush2.msra.mxu0 %v5134
        %5196 = vmatprep.subr.mxu0 0.0
        %5197 = vmatpush2.msra.mxu0 %v5133
        %5198 = vmatprep.subr.mxu0 0.0
        %5199 = vmatpush2.msra.mxu0 %v5132
        %5200 = vmatprep.subr.mxu0 0.0
        %5201 = vmatpush2.msra.mxu0 %v5131
        %5202 = vmatprep.mubr.f32.mxu0 %v5136
        %5203 = vmatmul.mubr.f32.gmra.mxu0 %v4920
        %v5204 = vpop.f32.mrf.mxu0
        %v5205 = vadd.f32 0.0, %v5204
        %v5206 = vpop.f32.mrf.mxu0
        %5207 = vdwg.mxu0
        %v5208 = vadd.f32 %v5111, %v5205
        %s5209 = scalar_lea.vmem %s9, 480
        %v5210 = vld [vmem:[%s5209] sm:$0xff]
        %v5211 = vld [vmem:[%s5209 + $0x8] sm:$0xff]
        %v5212 = vld [vmem:[%s5209 + $0x10] sm:$0xff]
        %v5213 = vld [vmem:[%s5209 + $0x18] sm:$0xff]
        %v5214 = vld [vmem:[%s5209 + $0x20] sm:$0xff]
        %v5215 = vld [vmem:[%s5209 + $0x28] sm:$0xff]
        %v5216 = vld [vmem:[%s5209 + $0x30] sm:$0xff]
        %v5217 = vld [vmem:[%s5209 + $0x38] sm:$0xff]
        %v5218 = vld [vmem:[%s5209 + $0x40] sm:$0xff]
        %v5219 = vld [vmem:[%s5209 + $0x48] sm:$0xff]
        %v5220 = vld [vmem:[%s5209 + $0x50] sm:$0xff]
        %v5221 = vld [vmem:[%s5209 + $0x58] sm:$0xff]
        %v5222 = vld [vmem:[%s5209 + $0x60] sm:$0xff]
        %v5223 = vld [vmem:[%s5209 + $0x68] sm:$0xff]
        %v5224 = vld [vmem:[%s5209 + $0x70] sm:$0xff]
        %v5225 = vld [vmem:[%s5209 + $0x78] sm:$0xff]
        %v5226 = vld [vmem:[%s5209 + $0x80] sm:$0xff]
        %v5227 = vld [vmem:[%s5209 + $0x88] sm:$0xff]
        %v5228 = vld [vmem:[%s5209 + $0x90] sm:$0xff]
        %v5229 = vld [vmem:[%s5209 + $0x98] sm:$0xff]
        %v5231 = vsel %vm4967, %v4923, 0
        %5233 = vmatprep.subr.mxu0 0.0
        %5234 = vmatpush1.msra.mxu0 %v5225
        %5235 = vmatprep.subr.mxu0 0.0
        %5236 = vmatpush1.msra.mxu0 %v5224
        %5237 = vmatprep.subr.mxu0 0.0
        %5238 = vmatpush1.msra.mxu0 %v5223
        %5239 = vmatprep.subr.mxu0 0.0
        %5240 = vmatpush1.msra.mxu0 %v5222
        %5241 = vmatprep.subr.mxu0 0.0
        %5242 = vmatpush1.msra.mxu0 %v5221
        %5243 = vmatprep.subr.mxu0 0.0
        %5244 = vmatpush1.msra.mxu0 %v5220
        %5245 = vmatprep.subr.mxu0 0.0
        %5246 = vmatpush1.msra.mxu0 %v5219
        %5247 = vmatprep.subr.mxu0 0.0
        %5248 = vmatpush1.msra.mxu0 %v5218
        %5249 = vmatprep.subr.mxu0 0.0
        %5250 = vmatpush1.msra.mxu0 %v5217
        %5251 = vmatprep.subr.mxu0 0.0
        %5252 = vmatpush1.msra.mxu0 %v5216
        %5253 = vmatprep.subr.mxu0 0.0
        %5254 = vmatpush1.msra.mxu0 %v5215
        %5255 = vmatprep.subr.mxu0 0.0
        %5256 = vmatpush1.msra.mxu0 %v5214
        %5257 = vmatprep.subr.mxu0 0.0
        %5258 = vmatpush1.msra.mxu0 %v5213
        %5259 = vmatprep.subr.mxu0 0.0
        %5260 = vmatpush1.msra.mxu0 %v5212
        %5261 = vmatprep.subr.mxu0 0.0
        %5262 = vmatpush1.msra.mxu0 %v5211
        %5263 = vmatprep.subr.mxu0 0.0
        %5264 = vmatpush1.msra.mxu0 %v5210
        %5265 = vmatprep.subr.mxu0 0.0
        %5266 = vmatpush2.msra.mxu0 0.0
        %5267 = vmatprep.subr.mxu0 0.0
        %5268 = vmatpush2.msra.mxu0 0.0
        %5269 = vmatprep.subr.mxu0 0.0
        %5270 = vmatpush2.msra.mxu0 0.0
        %5271 = vmatprep.subr.mxu0 0.0
        %5272 = vmatpush2.msra.mxu0 0.0
        %5273 = vmatprep.subr.mxu0 0.0
        %5274 = vmatpush2.msra.mxu0 0.0
        %5275 = vmatprep.subr.mxu0 0.0
        %5276 = vmatpush2.msra.mxu0 0.0
        %5277 = vmatprep.subr.mxu0 0.0
        %5278 = vmatpush2.msra.mxu0 0.0
        %5279 = vmatprep.subr.mxu0 0.0
        %5280 = vmatpush2.msra.mxu0 0.0
        %5281 = vmatprep.subr.mxu0 0.0
        %5282 = vmatpush2.msra.mxu0 0.0
        %5283 = vmatprep.subr.mxu0 0.0
        %5284 = vmatpush2.msra.mxu0 0.0
        %5285 = vmatprep.subr.mxu0 0.0
        %5286 = vmatpush2.msra.mxu0 0.0
        %5287 = vmatprep.subr.mxu0 0.0
        %5288 = vmatpush2.msra.mxu0 0.0
        %5289 = vmatprep.subr.mxu0 0.0
        %5290 = vmatpush2.msra.mxu0 %v5229
        %5291 = vmatprep.subr.mxu0 0.0
        %5292 = vmatpush2.msra.mxu0 %v5228
        %5293 = vmatprep.subr.mxu0 0.0
        %5294 = vmatpush2.msra.mxu0 %v5227
        %5295 = vmatprep.subr.mxu0 0.0
        %5296 = vmatpush2.msra.mxu0 %v5226
        %5297 = vmatprep.mubr.f32.mxu0 %v5231
        %5298 = vmatmul.mubr.f32.gmra.mxu0 %v4922
        %v5299 = vpop.f32.mrf.mxu0
        %v5300 = vadd.f32 0.0, %v5299
        %v5301 = vpop.f32.mrf.mxu0
        %5302 = vdwg.mxu0
        %v5303 = vadd.f32 %v5208, %v5300
        %s5304 = scalar_lea.vmem %s9, 640
        %v5305 = vld [vmem:[%s5304] sm:$0xff]
        %v5306 = vld [vmem:[%s5304 + $0x8] sm:$0xff]
        %v5307 = vld [vmem:[%s5304 + $0x10] sm:$0xff]
        %v5308 = vld [vmem:[%s5304 + $0x18] sm:$0xff]
        %v5309 = vld [vmem:[%s5304 + $0x20] sm:$0xff]
        %v5310 = vld [vmem:[%s5304 + $0x28] sm:$0xff]
        %v5311 = vld [vmem:[%s5304 + $0x30] sm:$0xff]
        %v5312 = vld [vmem:[%s5304 + $0x38] sm:$0xff]
        %v5313 = vld [vmem:[%s5304 + $0x40] sm:$0xff]
        %v5314 = vld [vmem:[%s5304 + $0x48] sm:$0xff]
        %v5315 = vld [vmem:[%s5304 + $0x50] sm:$0xff]
        %v5316 = vld [vmem:[%s5304 + $0x58] sm:$0xff]
        %v5317 = vld [vmem:[%s5304 + $0x60] sm:$0xff]
        %v5318 = vld [vmem:[%s5304 + $0x68] sm:$0xff]
        %v5319 = vld [vmem:[%s5304 + $0x70] sm:$0xff]
        %v5320 = vld [vmem:[%s5304 + $0x78] sm:$0xff]
        %v5321 = vld [vmem:[%s5304 + $0x80] sm:$0xff]
        %v5322 = vld [vmem:[%s5304 + $0x88] sm:$0xff]
        %v5323 = vld [vmem:[%s5304 + $0x90] sm:$0xff]
        %v5324 = vld [vmem:[%s5304 + $0x98] sm:$0xff]
        %v5326 = vsel %vm4967, %v4925, 0
        %5328 = vmatprep.subr.mxu0 0.0
        %5329 = vmatpush1.msra.mxu0 %v5320
        %5330 = vmatprep.subr.mxu0 0.0
        %5331 = vmatpush1.msra.mxu0 %v5319
        %5332 = vmatprep.subr.mxu0 0.0
        %5333 = vmatpush1.msra.mxu0 %v5318
        %5334 = vmatprep.subr.mxu0 0.0
        %5335 = vmatpush1.msra.mxu0 %v5317
        %5336 = vmatprep.subr.mxu0 0.0
        %5337 = vmatpush1.msra.mxu0 %v5316
        %5338 = vmatprep.subr.mxu0 0.0
        %5339 = vmatpush1.msra.mxu0 %v5315
        %5340 = vmatprep.subr.mxu0 0.0
        %5341 = vmatpush1.msra.mxu0 %v5314
        %5342 = vmatprep.subr.mxu0 0.0
        %5343 = vmatpush1.msra.mxu0 %v5313
        %5344 = vmatprep.subr.mxu0 0.0
        %5345 = vmatpush1.msra.mxu0 %v5312
        %5346 = vmatprep.subr.mxu0 0.0
        %5347 = vmatpush1.msra.mxu0 %v5311
        %5348 = vmatprep.subr.mxu0 0.0
        %5349 = vmatpush1.msra.mxu0 %v5310
        %5350 = vmatprep.subr.mxu0 0.0
        %5351 = vmatpush1.msra.mxu0 %v5309
        %5352 = vmatprep.subr.mxu0 0.0
        %5353 = vmatpush1.msra.mxu0 %v5308
        %5354 = vmatprep.subr.mxu0 0.0
        %5355 = vmatpush1.msra.mxu0 %v5307
        %5356 = vmatprep.subr.mxu0 0.0
        %5357 = vmatpush1.msra.mxu0 %v5306
        %5358 = vmatprep.subr.mxu0 0.0
        %5359 = vmatpush1.msra.mxu0 %v5305
        %5360 = vmatprep.subr.mxu0 0.0
        %5361 = vmatpush2.msra.mxu0 0.0
        %5362 = vmatprep.subr.mxu0 0.0
        %5363 = vmatpush2.msra.mxu0 0.0
        %5364 = vmatprep.subr.mxu0 0.0
        %5365 = vmatpush2.msra.mxu0 0.0
        %5366 = vmatprep.subr.mxu0 0.0
        %5367 = vmatpush2.msra.mxu0 0.0
        %5368 = vmatprep.subr.mxu0 0.0
        %5369 = vmatpush2.msra.mxu0 0.0
        %5370 = vmatprep.subr.mxu0 0.0
        %5371 = vmatpush2.msra.mxu0 0.0
        %5372 = vmatprep.subr.mxu0 0.0
        %5373 = vmatpush2.msra.mxu0 0.0
        %5374 = vmatprep.subr.mxu0 0.0
        %5375 = vmatpush2.msra.mxu0 0.0
        %5376 = vmatprep.subr.mxu0 0.0
        %5377 = vmatpush2.msra.mxu0 0.0
        %5378 = vmatprep.subr.mxu0 0.0
        %5379 = vmatpush2.msra.mxu0 0.0
        %5380 = vmatprep.subr.mxu0 0.0
        %5381 = vmatpush2.msra.mxu0 0.0
        %5382 = vmatprep.subr.mxu0 0.0
        %5383 = vmatpush2.msra.mxu0 0.0
        %5384 = vmatprep.subr.mxu0 0.0
        %5385 = vmatpush2.msra.mxu0 %v5324
        %5386 = vmatprep.subr.mxu0 0.0
        %5387 = vmatpush2.msra.mxu0 %v5323
        %5388 = vmatprep.subr.mxu0 0.0
        %5389 = vmatpush2.msra.mxu0 %v5322
        %5390 = vmatprep.subr.mxu0 0.0
        %5391 = vmatpush2.msra.mxu0 %v5321
        %5392 = vmatprep.mubr.f32.mxu0 %v5326
        %5393 = vmatmul.mubr.f32.gmra.mxu0 %v4924
        %v5394 = vpop.f32.mrf.mxu0
        %v5395 = vadd.f32 0.0, %v5394
        %v5396 = vpop.f32.mrf.mxu0
        %5397 = vdwg.mxu0
        %v5398 = vadd.f32 %v5303, %v5395
        %v5399 = vld [vmem:[%s10] sm:$0x1]
        %v5401 = vlaneseq
        %v5402 = vshrl.u32 %v5401, 7
        %v5403 = vsub.s32 0, %v5402
        %v5404 = vrot.slane %v5399, %v5403
        %v5406 = vadd.f32 %v5398, %v5404
        %vm5407 = vcmask 80896
        %5408 = vst.msk [vmem:[%s380] sm:$0xff] %vm5407, %v5406
        %s5409 = sand.u32 %s269, 1
        %s5410 = scalar_lea.sflag [#allocation3], %s5409
        %s5411 = sand.u32 %s269, 1
        %s5412 = smul.addr %s5411, 8
        %s5413 = scalar_lea.vmem [#allocation2], %s5412
        // Predicated region
        $region65: #{cnn_forward.1} parent=63 // pred_check
          %p5414 = pneg %p279
        $region66: #{cnn_forward.1} parent=63 // pred_check_branch
          %5416 = sbr.rel (%p5414) target = $region68
        $region67: #{cnn_forward.1} parent=63 // pred_region
          %s5418 = ssub.s32 128, 128
          %5419 = vsyncadd %s5410, %s5418
          %s5420 = smul.addr %s25, 128
          %s5421 = scalar_lea.hbm %s11, %s5420
          %s5423 = sshll.u32 %s5413, 4
          %s5424 = int_to_ptr.vmem [resolvable:$true] %s5423
          %5426 = dma.vmem_to_hbm [thread:$0]  %s5424, 128, %s5421, %s5410
        $region68: #{cnn_forward.1} parent=63 // pred_fallthru
          _
      $region64: #{cnn_forward.1} parent=5 // pred_fallthru
        _
      %p5427 = scmp.le.s32.totalorder 2, %s20
      // Predicated region
      $region69: #{cnn_forward.1} parent=5 // pred_check
        %p5428 = pneg %p5427
      $region70: #{cnn_forward.1} parent=5 // pred_check_branch
        %5430 = sbr.rel (%p5428) target = $region72
      $region71: #{cnn_forward.1} parent=5 // pred_region
        %s5431 = ssub.s32 %s20, 2
        // Predicated region
        $region73: #{cnn_forward.1} parent=71 // pred_check
          %p5432 = pneg %p285
        $region74: #{cnn_forward.1} parent=71 // pred_check_branch
          %5434 = sbr.rel (%p5432) target = $region76
        $region75: #{cnn_forward.1} parent=71 // pred_region
          %s5435 = sand.u32 %s270, 1
          %s5436 = scalar_lea.sflag [#allocation3], %s5435
          %s5437 = sand.u32 %s270, 1
          %s5438 = smul.addr %s5437, 8
          %s5439 = scalar_lea.vmem [#allocation2], %s5438
          %5440 = dma.done %s5436, 128
        $region76: #{cnn_forward.1} parent=71 // pred_fallthru
          _
      $region72: #{cnn_forward.1} parent=5 // pred_fallthru
        _
    $region6: #{cnn_forward.1} parent=1 // loop_footer
      %s24 = sadd.s32 1, %s20
    $region7: #{cnn_forward.1} parent=1 // loop_footer_branch
      %19 = sbr.rel target = $region3
    $region8: #{cnn_forward.1} parent=1 // loop_exit
      _
    %5441 = vsyncpa [#allocation3], 1
    %s5442 = scalar_lea.sflag [#allocation3], 1
    %5443 = vsyncpa %s5442, 1

</llo_original>
